<compile_context>
chip_gen: v5e
topology: v5e:2x2
jax: 0.10.0
libtpu: 0.0.40
codegen_flags: <defaults>
</compile_context>

<pallas_src>
import jax
import jax.numpy as jnp
from jax.experimental import pallas as pl
from jax.experimental.pallas import tpu as pltpu


def _round_up(a, b):
    return ((a + b - 1) // b) * b


def _map2dto3d_kernel(x_ref, b2_ref, w1_ref, w2_ref, w3_ref, w4_ref, w5_ref,
                      bcat_ref, o_ref):
    x = x_ref[0]          # (8, TN) bf16 — input channels zero-padded 2 -> 8
    b2 = b2_ref[0]        # (nlatent, 1) bf16 — already includes W2 @ latent (fold)

    nl = w1_ref.shape[0]
    c3 = w3_ref.shape[0]
    c4 = w4_ref.shape[0]
    b1 = bcat_ref[0:nl]                     # (nl, 1)   bf16
    b3 = bcat_ref[nl:nl + c3]               # (nl/2, 1) bf16
    b4 = bcat_ref[nl + c3:nl + c3 + c4]     # (nl/4, 1) bf16
    b5 = bcat_ref[nl + c3 + c4:]            # (8, 1)    bf16 (out channels padded 3 -> 8)

    def mm(w_ref, h):
        # bf16 MXU operands, f32 accumulation.
        return jnp.dot(w_ref[...], h, preferred_element_type=jnp.float32)

    # bias + ReLU at bf16 rate; activations stay bf16-resident between layers.
    h = jnp.maximum(mm(w1_ref, x).astype(jnp.bfloat16) + b1, 0)   # relu(conv1)
    h = jnp.maximum(mm(w2_ref, h).astype(jnp.bfloat16) + b2, 0)   # relu(conv2 (+latent))
    h = jnp.maximum(mm(w3_ref, h).astype(jnp.bfloat16) + b3, 0)   # relu(conv3)
    h = jnp.maximum(mm(w4_ref, h).astype(jnp.bfloat16) + b4, 0)   # relu(conv4)
    o_ref[0] = (mm(w5_ref, h) + b5).astype(o_ref.dtype)           # conv5, f32 epilogue


def map2dto3d(x, latent, params, *, tile_n=4096):
    """x: (B, N, 2) f32, latent: (B, nlatent) f32 or None -> (B, N, 3) f32."""
    B, N, cin = x.shape
    assert cin == 2
    nlatent = params["w1"].shape[0]
    c3, c4 = nlatent // 2, nlatent // 4

    # ---- point-tile selection -------------------------------------------------
    n_pad128 = _round_up(N, 128)
    tile_n = min(tile_n, n_pad128)
    # Keep the grid at >=2 steps when possible so both v7x TensorCores get work.
    if B * pl.cdiv(n_pad128, tile_n) < 2 and n_pad128 >= 256:
        tile_n = _round_up(pl.cdiv(n_pad128, 2), 128)
    n_pad = _round_up(N, tile_n)

    # ---- activations: channels-first, channel-padded (2 -> 8), bf16 -----------
    x_t = jnp.transpose(x, (0, 2, 1)).astype(jnp.float32)          # (B, 2, N)
    x_t = jnp.pad(x_t, ((0, 0), (0, 6), (0, n_pad - N)))            # (B, 8, N_pad)
    x_t = x_t.astype(jnp.bfloat16)

    # ---- latent folded into the layer-2 bias:  b2' = b2 + W2 @ latent ---------
    if latent is None:
        latent = jnp.zeros((B, nlatent), dtype=jnp.float32)
    b2p = (params["b2"][None, :].astype(jnp.float32)
           + latent.astype(jnp.float32) @ params["w2"].astype(jnp.float32).T)
    b2p = b2p.astype(jnp.bfloat16).reshape(B, nlatent, 1)           # (B, nlatent, 1)

    # ---- weights (PyTorch (C_out, C_in) layout), bf16; padded where needed ----
    w1 = jnp.pad(params["w1"], ((0, 0), (0, 6))).astype(jnp.bfloat16)    # (nl, 8)
    w2 = params["w2"].astype(jnp.bfloat16)                               # (nl, nl)
    w3 = params["w3"].astype(jnp.bfloat16)                               # (nl/2, nl)
    w4 = params["w4"].astype(jnp.bfloat16)                               # (nl/4, nl/2)
    w5 = jnp.pad(params["w5"], ((0, 5), (0, 0))).astype(jnp.bfloat16)    # (8, nl/4)

    # ---- constant biases b1/b3/b4/b5 concatenated into one (C, 1) slab --------
    def col(v):
        return jnp.asarray(v, jnp.float32).reshape(-1, 1)
    bcat = jnp.concatenate(
        [col(params["b1"]), col(params["b3"]), col(params["b4"]),
         col(jnp.pad(params["b5"], (0, 5)))], axis=0).astype(jnp.bfloat16)

    grid = (B, n_pad // tile_n)

    def const_spec(shape):
        # Small weight/bias array fully resident in VMEM every grid step.
        return pl.BlockSpec(shape, lambda b, n: (0,) * len(shape))

    in_specs = [
        pl.BlockSpec((1, 8, tile_n), lambda b, n: (b, 0, n)),        # x tile
        pl.BlockSpec((1, nlatent, 1), lambda b, n: (b, 0, 0)),       # per-batch b2'
        const_spec(w1.shape), const_spec(w2.shape), const_spec(w3.shape),
        const_spec(w4.shape), const_spec(w5.shape), const_spec(bcat.shape),
    ]
    out_spec = pl.BlockSpec((1, 8, tile_n), lambda b, n: (b, 0, n))   # full-sublane store

    flops = 2 * B * n_pad * (nlatent * 8 + nlatent * nlatent + c3 * nlatent
                             + c4 * c3 + 8 * c4)
    bytes_accessed = (x_t.size * 2 + B * 8 * n_pad * 4 + b2p.size * 2
                      + 2 * (w1.size + w2.size + w3.size + w4.size + w5.size
                             + bcat.size))

    cp = dict(dimension_semantics=("parallel", "parallel"))
    if tile_n > 2048:
        # v5e's scoped-VMEM default is only 16 MiB; large tiles need more headroom
        # (48 MiB is still safe on v7x's 64 MiB physical VMEM per TensorCore).
        cp["vmem_limit_bytes"] = 48 * 1024 * 1024

    out_t = pl.pallas_call(
        _map2dto3d_kernel,
        out_shape=jax.ShapeDtypeStruct((B, 8, n_pad), jnp.float32),
        grid_spec=pltpu.PrefetchScalarGridSpec(
            num_scalar_prefetch=0,
            grid=grid,
            in_specs=in_specs,
            out_specs=out_spec,
        ),
        compiler_params=pltpu.CompilerParams(**cp),
        cost_estimate=pl.CostEstimate(flops=flops, transcendentals=0,
                                      bytes_accessed=bytes_accessed),
    )(x_t, b2p, w1, w2, w3, w4, w5, bcat)

    # (B, 8, N_pad) -> (B, N, 3), dropping channel/point padding.
    return jnp.transpose(out_t[:, :3, :N], (0, 2, 1))


def init_params(key, nlatent=256, dtype=jnp.float32):
    """Deterministic synthetic parameters in PyTorch Conv1d(kernel=1) layout:
    w_i: (C_out, C_in), b_i: (C_out,)."""
    dims = [(nlatent, 2), (nlatent, nlatent), (nlatent // 2, nlatent),
            (nlatent // 4, nlatent // 2), (3, nlatent // 4)]
    params = {}
    for i, (cout, cin) in enumerate(dims, start=1):
        key, kw, kb = jax.random.split(key, 3)
        scale = 1.0 / jnp.sqrt(jnp.array(cin, dtype))
        params[f"w{i}"] = (jax.random.uniform(kw, (cout, cin), dtype,
                                              minval=-1.0, maxval=1.0) * scale)
        params[f"b{i}"] = (jax.random.uniform(kb, (cout,), dtype,
                                              minval=-1.0, maxval=1.0) * scale)
    return params


def reference(x, latent, params):
    """Pure-JAX f32 reference matching the PyTorch forward semantics."""
    h = jnp.maximum(x @ params["w1"].T + params["b1"], 0.0)
    if latent is not None:
        h = h + latent[:, None, :]
    h = jnp.maximum(h @ params["w2"].T + params["b2"], 0.0)
    h = jnp.maximum(h @ params["w3"].T + params["b3"], 0.0)
    h = jnp.maximum(h @ params["w4"].T + params["b4"], 0.0)
    return h @ params["w5"].T + params["b5"]


if __name__ == "__main__":
    nlatent = 256
    B, N = 2, 256

    key = jax.random.PRNGKey(0)
    key, kx, kl = jax.random.split(key, 3)
    params = init_params(key, nlatent=nlatent)
    x = jax.random.normal(kx, (B, N, 2), jnp.float32)
    latent = jax.random.normal(kl, (B, nlatent), jnp.float32)

    out = map2dto3d(x, latent, params)
    out = jax.block_until_ready(out)

    ref = reference(x, latent, params)
    assert out.shape == (B, N, 3)
    # bf16 MXU operands + bf16 bias/ReLU through a 5-layer chain -> loosened tolerance
    # vs the pure-f32 reference.
    assert jnp.allclose(out, ref, atol=3e-2, rtol=3e-2), "mismatch vs reference"

    print("KERNEL_OK")
</pallas_src>

<mosaic_0001>
module attributes {stable_mosaic.version = 11 : i64} {
  func.func @_map2dto3d_kernel(%arg0: i32, %arg1: i32, %arg2: memref<1x8x256xbf16, #tpu.memory_space<vmem>>, %arg3: memref<1x256x1xbf16, #tpu.memory_space<vmem>>, %arg4: memref<256x8xbf16, #tpu.memory_space<vmem>>, %arg5: memref<256x256xbf16, #tpu.memory_space<vmem>>, %arg6: memref<128x256xbf16, #tpu.memory_space<vmem>>, %arg7: memref<64x128xbf16, #tpu.memory_space<vmem>>, %arg8: memref<8x64xbf16, #tpu.memory_space<vmem>>, %arg9: memref<456x1xbf16, #tpu.memory_space<vmem>>, %arg10: memref<1x8x256xf32, #tpu.memory_space<vmem>>) attributes {dimension_semantics = [#tpu.dimension_semantics<parallel>, #tpu.dimension_semantics<parallel>], iteration_bounds = array<i64: 2, 1>, scalar_prefetch = 0 : i64, scratch_operands = 0 : i64, tpu.core_type = #tpu.core_type<tc>, window_params = [{transform_indices = @transform_0, window_bounds = array<i64: 1, 8, 256>}, {transform_indices = @transform_1, window_bounds = array<i64: 1, 256, 1>}, {pipeline_mode = #tpu.pipeline_mode<synchronous>, transform_indices = @transform_2, window_bounds = array<i64: 256, 8>}, {pipeline_mode = #tpu.pipeline_mode<synchronous>, transform_indices = @transform_3, window_bounds = array<i64: 256, 256>}, {pipeline_mode = #tpu.pipeline_mode<synchronous>, transform_indices = @transform_4, window_bounds = array<i64: 128, 256>}, {pipeline_mode = #tpu.pipeline_mode<synchronous>, transform_indices = @transform_5, window_bounds = array<i64: 64, 128>}, {pipeline_mode = #tpu.pipeline_mode<synchronous>, transform_indices = @transform_6, window_bounds = array<i64: 8, 64>}, {pipeline_mode = #tpu.pipeline_mode<synchronous>, transform_indices = @transform_7, window_bounds = array<i64: 456, 1>}, {transform_indices = @transform_8, window_bounds = array<i64: 1, 8, 256>}]} {
    %c0 = arith.constant 0 : index
    %c0_0 = arith.constant 0 : index
    %c0_1 = arith.constant 0 : index
    %0 = vector.load %arg2[%c0, %c0_0, %c0_1] : memref<1x8x256xbf16, #tpu.memory_space<vmem>>, vector<1x8x256xbf16>
    %1 = vector.shape_cast %0 : vector<1x8x256xbf16> to vector<8x256xbf16>
    %c0_2 = arith.constant 0 : index
    %c0_3 = arith.constant 0 : index
    %c0_4 = arith.constant 0 : index
    %2 = vector.load %arg3[%c0_2, %c0_3, %c0_4] : memref<1x256x1xbf16, #tpu.memory_space<vmem>>, vector<1x256x1xbf16>
    %3 = vector.shape_cast %2 : vector<1x256x1xbf16> to vector<256x1xbf16>
    %c0_5 = arith.constant 0 : index
    %c0_6 = arith.constant 0 : index
    %4 = vector.load %arg9[%c0_5, %c0_6] : memref<456x1xbf16, #tpu.memory_space<vmem>>, vector<256x1xbf16>
    %c256 = arith.constant 256 : index
    %c0_7 = arith.constant 0 : index
    %5 = vector.load %arg9[%c256, %c0_7] : memref<456x1xbf16, #tpu.memory_space<vmem>>, vector<128x1xbf16>
    %c384 = arith.constant 384 : index
    %c0_8 = arith.constant 0 : index
    %6 = vector.load %arg9[%c384, %c0_8] : memref<456x1xbf16, #tpu.memory_space<vmem>>, vector<64x1xbf16>
    %c448 = arith.constant 448 : index
    %c0_9 = arith.constant 0 : index
    %7 = vector.load %arg9[%c448, %c0_9] : memref<456x1xbf16, #tpu.memory_space<vmem>>, vector<8x1xbf16>
    %c0_10 = arith.constant 0 : index
    %c0_11 = arith.constant 0 : index
    %8 = vector.load %arg4[%c0_10, %c0_11] : memref<256x8xbf16, #tpu.memory_space<vmem>>, vector<256x8xbf16>
    %cst = arith.constant dense<0.000000e+00> : vector<256x256xf32>
    %9 = tpu.matmul %8, %1, %cst {dimension_numbers = #tpu.dot_dimension_numbers<[1], [0], [0], [1], [0, 0, 1, 1], [], []>} : vector<256x8xbf16>, vector<8x256xbf16>, vector<256x256xf32> -> vector<256x256xf32>
    %10 = arith.truncf %9 : vector<256x256xf32> to vector<256x256xbf16>
    %11 = vector.broadcast %4 : vector<256x1xbf16> to vector<256x256xbf16>
    %12 = arith.addf %10, %11 : vector<256x256xbf16>
    %cst_12 = arith.constant 0.000000e+00 : bf16
    %13 = vector.broadcast %cst_12 : bf16 to vector<256x256xbf16>
    %14 = arith.maximumf %12, %13 : vector<256x256xbf16>
    %c0_13 = arith.constant 0 : index
    %c0_14 = arith.constant 0 : index
    %15 = vector.load %arg5[%c0_13, %c0_14] : memref<256x256xbf16, #tpu.memory_space<vmem>>, vector<256x256xbf16>
    %cst_15 = arith.constant dense<0.000000e+00> : vector<256x256xf32>
    %16 = tpu.matmul %15, %14, %cst_15 {dimension_numbers = #tpu.dot_dimension_numbers<[1], [0], [0], [1], [0, 0, 1, 1], [], []>} : vector<256x256xbf16>, vector<256x256xbf16>, vector<256x256xf32> -> vector<256x256xf32>
    %17 = arith.truncf %16 : vector<256x256xf32> to vector<256x256xbf16>
    %18 = vector.broadcast %3 : vector<256x1xbf16> to vector<256x256xbf16>
    %19 = arith.addf %17, %18 : vector<256x256xbf16>
    %cst_16 = arith.constant 0.000000e+00 : bf16
    %20 = vector.broadcast %cst_16 : bf16 to vector<256x256xbf16>
    %21 = arith.maximumf %19, %20 : vector<256x256xbf16>
    %c0_17 = arith.constant 0 : index
    %c0_18 = arith.constant 0 : index
    %22 = vector.load %arg6[%c0_17, %c0_18] : memref<128x256xbf16, #tpu.memory_space<vmem>>, vector<128x256xbf16>
    %cst_19 = arith.constant dense<0.000000e+00> : vector<128x256xf32>
    %23 = tpu.matmul %22, %21, %cst_19 {dimension_numbers = #tpu.dot_dimension_numbers<[1], [0], [0], [1], [0, 0, 1, 1], [], []>} : vector<128x256xbf16>, vector<256x256xbf16>, vector<128x256xf32> -> vector<128x256xf32>
    %24 = arith.truncf %23 : vector<128x256xf32> to vector<128x256xbf16>
    %25 = vector.broadcast %5 : vector<128x1xbf16> to vector<128x256xbf16>
    %26 = arith.addf %24, %25 : vector<128x256xbf16>
    %cst_20 = arith.constant 0.000000e+00 : bf16
    %27 = vector.broadcast %cst_20 : bf16 to vector<128x256xbf16>
    %28 = arith.maximumf %26, %27 : vector<128x256xbf16>
    %c0_21 = arith.constant 0 : index
    %c0_22 = arith.constant 0 : index
    %29 = vector.load %arg7[%c0_21, %c0_22] : memref<64x128xbf16, #tpu.memory_space<vmem>>, vector<64x128xbf16>
    %cst_23 = arith.constant dense<0.000000e+00> : vector<64x256xf32>
    %30 = tpu.matmul %29, %28, %cst_23 {dimension_numbers = #tpu.dot_dimension_numbers<[1], [0], [0], [1], [0, 0, 1, 1], [], []>} : vector<64x128xbf16>, vector<128x256xbf16>, vector<64x256xf32> -> vector<64x256xf32>
    %31 = arith.truncf %30 : vector<64x256xf32> to vector<64x256xbf16>
    %32 = vector.broadcast %6 : vector<64x1xbf16> to vector<64x256xbf16>
    %33 = arith.addf %31, %32 : vector<64x256xbf16>
    %cst_24 = arith.constant 0.000000e+00 : bf16
    %34 = vector.broadcast %cst_24 : bf16 to vector<64x256xbf16>
    %35 = arith.maximumf %33, %34 : vector<64x256xbf16>
    %c0_25 = arith.constant 0 : index
    %c0_26 = arith.constant 0 : index
    %36 = vector.load %arg8[%c0_25, %c0_26] : memref<8x64xbf16, #tpu.memory_space<vmem>>, vector<8x64xbf16>
    %cst_27 = arith.constant dense<0.000000e+00> : vector<8x256xf32>
    %37 = tpu.matmul %36, %35, %cst_27 {dimension_numbers = #tpu.dot_dimension_numbers<[1], [0], [0], [1], [0, 0, 1, 1], [], []>} : vector<8x64xbf16>, vector<64x256xbf16>, vector<8x256xf32> -> vector<8x256xf32>
    %38 = arith.extf %7 : vector<8x1xbf16> to vector<8x1xf32>
    %39 = vector.broadcast %38 : vector<8x1xf32> to vector<8x256xf32>
    %40 = arith.addf %37, %39 : vector<8x256xf32>
    %c0_28 = arith.constant 0 : index
    %c0_29 = arith.constant 0 : index
    %c0_30 = arith.constant 0 : index
    %41 = vector.load %arg10[%c0_28, %c0_29, %c0_30] : memref<1x8x256xf32, #tpu.memory_space<vmem>>, vector<1x8x256xf32>
    %42 = vector.shape_cast %41 : vector<1x8x256xf32> to vector<8x256xf32>
    %43 = vector.shape_cast %40 : vector<8x256xf32> to vector<1x8x256xf32>
    tpu.vector_store %arg10[%c0_28, %c0_29, %c0_30], %43 {strides = array<i32>} : memref<1x8x256xf32, #tpu.memory_space<vmem>>, vector<1x8x256xf32>,
    return
  }
  func.func @transform_0(%arg0: i32, %arg1: i32) -> (i32, i32, i32) {
    %c0_i32 = arith.constant 0 : i32
    %c0_i32_0 = arith.constant 0 : i32
    return %arg0, %c0_i32, %arg1 : i32, i32, i32
  }
  func.func @transform_1(%arg0: i32, %arg1: i32) -> (i32, i32, i32) {
    %c0_i32 = arith.constant 0 : i32
    %c0_i32_0 = arith.constant 0 : i32
    %c0_i32_1 = arith.constant 0 : i32
    return %arg0, %c0_i32, %c0_i32_0 : i32, i32, i32
  }
  func.func @transform_2(%arg0: i32, %arg1: i32) -> (i32, i32) {
    %c0_i32 = arith.constant 0 : i32
    %c0_i32_0 = arith.constant 0 : i32
    %c0_i32_1 = arith.constant 0 : i32
    return %c0_i32, %c0_i32_0 : i32, i32
  }
  func.func @transform_3(%arg0: i32, %arg1: i32) -> (i32, i32) {
    %c0_i32 = arith.constant 0 : i32
    %c0_i32_0 = arith.constant 0 : i32
    %c0_i32_1 = arith.constant 0 : i32
    return %c0_i32, %c0_i32_0 : i32, i32
  }
  func.func @transform_4(%arg0: i32, %arg1: i32) -> (i32, i32) {
    %c0_i32 = arith.constant 0 : i32
    %c0_i32_0 = arith.constant 0 : i32
    %c0_i32_1 = arith.constant 0 : i32
    return %c0_i32, %c0_i32_0 : i32, i32
  }
  func.func @transform_5(%arg0: i32, %arg1: i32) -> (i32, i32) {
    %c0_i32 = arith.constant 0 : i32
    %c0_i32_0 = arith.constant 0 : i32
    %c0_i32_1 = arith.constant 0 : i32
    return %c0_i32, %c0_i32_0 : i32, i32
  }
  func.func @transform_6(%arg0: i32, %arg1: i32) -> (i32, i32) {
    %c0_i32 = arith.constant 0 : i32
    %c0_i32_0 = arith.constant 0 : i32
    %c0_i32_1 = arith.constant 0 : i32
    return %c0_i32, %c0_i32_0 : i32, i32
  }
  func.func @transform_7(%arg0: i32, %arg1: i32) -> (i32, i32) {
    %c0_i32 = arith.constant 0 : i32
    %c0_i32_0 = arith.constant 0 : i32
    %c0_i32_1 = arith.constant 0 : i32
    return %c0_i32, %c0_i32_0 : i32, i32
  }
  func.func @transform_8(%arg0: i32, %arg1: i32) -> (i32, i32, i32) {
    %c0_i32 = arith.constant 0 : i32
    %c0_i32_0 = arith.constant 0 : i32
    return %arg0, %c0_i32, %arg1 : i32, i32, i32
  }
}

</mosaic_0001>

<llo_original>
// kernel: tpu_custom_call.1
$region0: #{tpu_custom_call.1}
  #allocation0 [shape = 'u32[]', space=smem, size = 0x4, offset = 0x4, fixed_abs, tag = 'smem constant byte address 0x4 - core index']
  #allocation1 [shape = 'u32[72,128]{1,0:T(1,128)}', space=vmem, size = 0x9000, scoped, tag = 'internal scratch']
  %s0 = inlined_call_operand.vmem [shape: bf16[2,8,256], index: 0, kind: input, shape index: {}]
  %s1 = inlined_call_operand.vmem [shape: bf16[2,256,1], index: 1, kind: input, shape index: {}]
  %s2 = inlined_call_operand.vmem [shape: bf16[256,8], index: 2, kind: input, shape index: {}]
  %s3 = inlined_call_operand.vmem [shape: bf16[256,256], index: 3, kind: input, shape index: {}]
  %s4 = inlined_call_operand.vmem [shape: bf16[128,256], index: 4, kind: input, shape index: {}]
  %s5 = inlined_call_operand.vmem [shape: bf16[64,128], index: 5, kind: input, shape index: {}]
  %s6 = inlined_call_operand.vmem [shape: bf16[8,64], index: 6, kind: input, shape index: {}]
  %s7 = inlined_call_operand.vmem [shape: bf16[456,1], index: 7, kind: input, shape index: {}]
  %s8 = inlined_call_operand.hbm [shape: f32[2,8,256], index: 8, kind: output, shape index: {}]
  %s9 = sld [smem:[#allocation0]]
  $region65: #{tpu_custom_call.1} parent=0
    _
  %s11 = ssub.s32 1, %s9
  %s12 = scalar_select 0, %s11, %s9
  $region1: #{tpu_custom_call.1} parent=0
    #allocation2 [shape = 'u8[16384]{0}', space=vmem, size = 0x4000, scoped, tag = 'output window, operand 0']
    #allocation3 [shape = 's32[2]{0}', space=sflag, size = 0x8, scoped, tag = 'scoped memory for tpu_custom_call.1']
    %13 = vsyncpa [#allocation3], 0
    %s14 = scalar_lea.sflag [#allocation3], 1
    %15 = vsyncpa %s14, 0
    loop: start=0, step=1, limit=4
    $region2: #{tpu_custom_call.1} parent=1 // loop_pre_header
      _
    $region3: #{tpu_custom_call.1} parent=1 // loop_header
      %s17 = sphi 0, %s21
      %p18 = scmp.ge.s32.totalorder %s17, 4
      %s24 = sphi 0, %s36
      %s25 = sphi 0, %s32
      %s26 = sphi 0, %s24
      %s27 = sphi 0, %s25
      %s28 = sphi 0, %s26
      %s29 = sphi 0, %s27
      %s41 = sphi 0, %s43
      %s44 = sphi 0, %s41
      %s45 = sphi 0, %s44
      %s61 = sphi 0, %s45
      %s67 = sphi 0, %s69
      %s70 = sphi 0, %s67
      %s71 = sphi 0, %s70
      %s87 = sphi 0, %s71
      %s91 = sphi 0, %s91
      %s93 = sphi 0, %s91
      %s94 = sphi 0, %s93
      %s108 = sphi 0, %s94
      %s112 = sphi 0, %s112
      %s114 = sphi 0, %s112
      %s115 = sphi 0, %s114
      %s129 = sphi 0, %s115
      %s133 = sphi 0, %s133
      %s135 = sphi 0, %s133
      %s136 = sphi 0, %s135
      %s150 = sphi 0, %s136
      %s154 = sphi 0, %s154
      %s156 = sphi 0, %s154
      %s157 = sphi 0, %s156
      %s171 = sphi 0, %s157
      %s175 = sphi 0, %s175
      %s177 = sphi 0, %s175
      %s178 = sphi 0, %s177
      %s192 = sphi 0, %s178
      %s196 = sphi 0, %s196
      %s198 = sphi 0, %s196
      %s199 = sphi 0, %s198
      %s213 = sphi 0, %s199
      %s221 = sphi 0, %s223
      %s224 = sphi 0, %s221
      %s225 = sphi 0, %s224
      %s241 = sphi 0, %s225
    $region4: #{tpu_custom_call.1} parent=1 // loop_header_branch
      %20 = sbr.rel (%p18) target = $region8
    $region5: #{tpu_custom_call.1} parent=1 // loop_body
      %s22 = ssub.s32 %s17, 1
      %s23 = ssub.s32 %s17, 2
      %s30 = sadd.s32 1, %s25
      %p31 = scmp.ge.s32.totalorder %s30, 1
      %s32 = scalar_select %p31, 0, %s30
      %s33 = sadd.s32 1, %s24
      %s34 = scalar_select %p31, %s33, %s24
      %p35 = scmp.ge.s32.totalorder %s34, 2
      %s36 = scalar_select %p35, 0, %s34
      %s37 = ssub.s32 %s24, %s36
      %s38 = ssub.s32 %s25, %s32
      %s39 = sor.u32 %s37, %s38
      %p40 = scmp.eq.s32.totalorder %s39, 0
      %s42 = sadd.s32 %s41, 1
      %s43 = scalar_select %p40, %s41, %s42
      %p46 = pneg %p40
      %p47 = scmp.eq.s32.totalorder %s17, 1
      %p48 = por %p46, %p47
      %p49 = scmp.ne.s32.totalorder %s41, %s44
      %p50 = scmp.eq.s32.totalorder %s17, 0
      %p51 = por %p49, %p50
      %p52 = scmp.ne.s32.totalorder %s41, %s44
      %p53 = scmp.eq.s32.totalorder %s22, 1
      %p54 = por %p52, %p53
      %p55 = scmp.ne.s32.totalorder %s44, %s45
      %p56 = scmp.eq.s32.totalorder %s22, 0
      %p57 = por %p55, %p56
      %p58 = scmp.ne.s32.totalorder %s44, %s45
      %p59 = scmp.eq.s32.totalorder %s23, 1
      %p60 = por %p58, %p59
      %p62 = scmp.ne.s32.totalorder %s45, %s61
      %p63 = scmp.eq.s32.totalorder %s23, 0
      %p64 = por %p62, %p63
      %s65 = ssub.s32 %s24, %s36
      %p66 = scmp.eq.s32.totalorder %s65, 0
      %s68 = sadd.s32 %s67, 1
      %s69 = scalar_select %p66, %s67, %s68
      %p72 = pneg %p66
      %p73 = scmp.eq.s32.totalorder %s17, 1
      %p74 = por %p72, %p73
      %p75 = scmp.ne.s32.totalorder %s67, %s70
      %p76 = scmp.eq.s32.totalorder %s17, 0
      %p77 = por %p75, %p76
      %p78 = scmp.ne.s32.totalorder %s67, %s70
      %p79 = scmp.eq.s32.totalorder %s22, 1
      %p80 = por %p78, %p79
      %p81 = scmp.ne.s32.totalorder %s70, %s71
      %p82 = scmp.eq.s32.totalorder %s22, 0
      %p83 = por %p81, %p82
      %p84 = scmp.ne.s32.totalorder %s70, %s71
      %p85 = scmp.eq.s32.totalorder %s23, 1
      %p86 = por %p84, %p85
      %p88 = scmp.ne.s32.totalorder %s71, %s87
      %p89 = scmp.eq.s32.totalorder %s23, 0
      %p90 = por %p88, %p89
      %s92 = sadd.s32 %s91, 1
      %p95 = scmp.eq.s32.totalorder %s17, 1
      %p96 = scmp.ne.s32.totalorder %s91, %s93
      %p97 = scmp.eq.s32.totalorder %s17, 0
      %p98 = por %p96, %p97
      %p99 = scmp.ne.s32.totalorder %s91, %s93
      %p100 = scmp.eq.s32.totalorder %s22, 1
      %p101 = por %p99, %p100
      %p102 = scmp.ne.s32.totalorder %s93, %s94
      %p103 = scmp.eq.s32.totalorder %s22, 0
      %p104 = por %p102, %p103
      %p105 = scmp.ne.s32.totalorder %s93, %s94
      %p106 = scmp.eq.s32.totalorder %s23, 1
      %p107 = por %p105, %p106
      %p109 = scmp.ne.s32.totalorder %s94, %s108
      %p110 = scmp.eq.s32.totalorder %s23, 0
      %p111 = por %p109, %p110
      %s113 = sadd.s32 %s112, 1
      %p116 = scmp.eq.s32.totalorder %s17, 1
      %p117 = scmp.ne.s32.totalorder %s112, %s114
      %p118 = scmp.eq.s32.totalorder %s17, 0
      %p119 = por %p117, %p118
      %p120 = scmp.ne.s32.totalorder %s112, %s114
      %p121 = scmp.eq.s32.totalorder %s22, 1
      %p122 = por %p120, %p121
      %p123 = scmp.ne.s32.totalorder %s114, %s115
      %p124 = scmp.eq.s32.totalorder %s22, 0
      %p125 = por %p123, %p124
      %p126 = scmp.ne.s32.totalorder %s114, %s115
      %p127 = scmp.eq.s32.totalorder %s23, 1
      %p128 = por %p126, %p127
      %p130 = scmp.ne.s32.totalorder %s115, %s129
      %p131 = scmp.eq.s32.totalorder %s23, 0
      %p132 = por %p130, %p131
      %s134 = sadd.s32 %s133, 1
      %p137 = scmp.eq.s32.totalorder %s17, 1
      %p138 = scmp.ne.s32.totalorder %s133, %s135
      %p139 = scmp.eq.s32.totalorder %s17, 0
      %p140 = por %p138, %p139
      %p141 = scmp.ne.s32.totalorder %s133, %s135
      %p142 = scmp.eq.s32.totalorder %s22, 1
      %p143 = por %p141, %p142
      %p144 = scmp.ne.s32.totalorder %s135, %s136
      %p145 = scmp.eq.s32.totalorder %s22, 0
      %p146 = por %p144, %p145
      %p147 = scmp.ne.s32.totalorder %s135, %s136
      %p148 = scmp.eq.s32.totalorder %s23, 1
      %p149 = por %p147, %p148
      %p151 = scmp.ne.s32.totalorder %s136, %s150
      %p152 = scmp.eq.s32.totalorder %s23, 0
      %p153 = por %p151, %p152
      %s155 = sadd.s32 %s154, 1
      %p158 = scmp.eq.s32.totalorder %s17, 1
      %p159 = scmp.ne.s32.totalorder %s154, %s156
      %p160 = scmp.eq.s32.totalorder %s17, 0
      %p161 = por %p159, %p160
      %p162 = scmp.ne.s32.totalorder %s154, %s156
      %p163 = scmp.eq.s32.totalorder %s22, 1
      %p164 = por %p162, %p163
      %p165 = scmp.ne.s32.totalorder %s156, %s157
      %p166 = scmp.eq.s32.totalorder %s22, 0
      %p167 = por %p165, %p166
      %p168 = scmp.ne.s32.totalorder %s156, %s157
      %p169 = scmp.eq.s32.totalorder %s23, 1
      %p170 = por %p168, %p169
      %p172 = scmp.ne.s32.totalorder %s157, %s171
      %p173 = scmp.eq.s32.totalorder %s23, 0
      %p174 = por %p172, %p173
      %s176 = sadd.s32 %s175, 1
      %p179 = scmp.eq.s32.totalorder %s17, 1
      %p180 = scmp.ne.s32.totalorder %s175, %s177
      %p181 = scmp.eq.s32.totalorder %s17, 0
      %p182 = por %p180, %p181
      %p183 = scmp.ne.s32.totalorder %s175, %s177
      %p184 = scmp.eq.s32.totalorder %s22, 1
      %p185 = por %p183, %p184
      %p186 = scmp.ne.s32.totalorder %s177, %s178
      %p187 = scmp.eq.s32.totalorder %s22, 0
      %p188 = por %p186, %p187
      %p189 = scmp.ne.s32.totalorder %s177, %s178
      %p190 = scmp.eq.s32.totalorder %s23, 1
      %p191 = por %p189, %p190
      %p193 = scmp.ne.s32.totalorder %s178, %s192
      %p194 = scmp.eq.s32.totalorder %s23, 0
      %p195 = por %p193, %p194
      %s197 = sadd.s32 %s196, 1
      %p200 = scmp.eq.s32.totalorder %s17, 1
      %p201 = scmp.ne.s32.totalorder %s196, %s198
      %p202 = scmp.eq.s32.totalorder %s17, 0
      %p203 = por %p201, %p202
      %p204 = scmp.ne.s32.totalorder %s196, %s198
      %p205 = scmp.eq.s32.totalorder %s22, 1
      %p206 = por %p204, %p205
      %p207 = scmp.ne.s32.totalorder %s198, %s199
      %p208 = scmp.eq.s32.totalorder %s22, 0
      %p209 = por %p207, %p208
      %p210 = scmp.ne.s32.totalorder %s198, %s199
      %p211 = scmp.eq.s32.totalorder %s23, 1
      %p212 = por %p210, %p211
      %p214 = scmp.ne.s32.totalorder %s199, %s213
      %p215 = scmp.eq.s32.totalorder %s23, 0
      %p216 = por %p214, %p215
      %s217 = ssub.s32 %s24, %s36
      %s218 = ssub.s32 %s25, %s32
      %s219 = sor.u32 %s217, %s218
      %p220 = scmp.eq.s32.totalorder %s219, 0
      %s222 = sadd.s32 %s221, 1
      %s223 = scalar_select %p220, %s221, %s222
      %p226 = pneg %p220
      %p227 = scmp.eq.s32.totalorder %s17, 1
      %p228 = por %p226, %p227
      %p229 = scmp.ne.s32.totalorder %s221, %s224
      %p230 = scmp.eq.s32.totalorder %s17, 0
      %p231 = por %p229, %p230
      %p232 = scmp.ne.s32.totalorder %s221, %s224
      %p233 = scmp.eq.s32.totalorder %s22, 1
      %p234 = por %p232, %p233
      %p235 = scmp.ne.s32.totalorder %s224, %s225
      %p236 = scmp.eq.s32.totalorder %s22, 0
      %p237 = por %p235, %p236
      %p238 = scmp.ne.s32.totalorder %s224, %s225
      %p239 = scmp.eq.s32.totalorder %s23, 1
      %p240 = por %p238, %p239
      %p242 = scmp.ne.s32.totalorder %s225, %s241
      %p243 = scmp.eq.s32.totalorder %s23, 0
      %p244 = por %p242, %p243
      %p245 = scmp.le.s32.totalorder 1, %s17
      %p246 = scmp.lt.s32.totalorder %s17, 3
      %p247 = pnand %p245, %p246
      %p248 = pneg %p247
      // Predicated region
      $region9: #{tpu_custom_call.1} parent=5 // pred_check
        _
      $region10: #{tpu_custom_call.1} parent=5 // pred_check_branch
        %250 = sbr.rel (%p247) target = $region12
      $region11: #{tpu_custom_call.1} parent=5 // pred_region
        %s251 = ssub.s32 %s17, 1
        // Predicated region
        $region13: #{tpu_custom_call.1} parent=11 // pred_check
          %p252 = pneg %p104
        $region14: #{tpu_custom_call.1} parent=11 // pred_check_branch
          %254 = sbr.rel (%p252) target = $region16
        $region15: #{tpu_custom_call.1} parent=11 // pred_region
          _
        $region16: #{tpu_custom_call.1} parent=11 // pred_fallthru
          _
        // Predicated region
        $region17: #{tpu_custom_call.1} parent=11 // pred_check
          %p255 = pneg %p125
        $region18: #{tpu_custom_call.1} parent=11 // pred_check_branch
          %257 = sbr.rel (%p255) target = $region20
        $region19: #{tpu_custom_call.1} parent=11 // pred_region
          _
        $region20: #{tpu_custom_call.1} parent=11 // pred_fallthru
          _
        // Predicated region
        $region21: #{tpu_custom_call.1} parent=11 // pred_check
          %p258 = pneg %p146
        $region22: #{tpu_custom_call.1} parent=11 // pred_check_branch
          %260 = sbr.rel (%p258) target = $region24
        $region23: #{tpu_custom_call.1} parent=11 // pred_region
          _
        $region24: #{tpu_custom_call.1} parent=11 // pred_fallthru
          _
        // Predicated region
        $region25: #{tpu_custom_call.1} parent=11 // pred_check
          %p261 = pneg %p167
        $region26: #{tpu_custom_call.1} parent=11 // pred_check_branch
          %263 = sbr.rel (%p261) target = $region28
        $region27: #{tpu_custom_call.1} parent=11 // pred_region
          _
        $region28: #{tpu_custom_call.1} parent=11 // pred_fallthru
          _
        // Predicated region
        $region29: #{tpu_custom_call.1} parent=11 // pred_check
          %p264 = pneg %p188
        $region30: #{tpu_custom_call.1} parent=11 // pred_check_branch
          %266 = sbr.rel (%p264) target = $region32
        $region31: #{tpu_custom_call.1} parent=11 // pred_region
          _
        $region32: #{tpu_custom_call.1} parent=11 // pred_fallthru
          _
        // Predicated region
        $region33: #{tpu_custom_call.1} parent=11 // pred_check
          %p267 = pneg %p209
        $region34: #{tpu_custom_call.1} parent=11 // pred_check_branch
          %269 = sbr.rel (%p267) target = $region36
        $region35: #{tpu_custom_call.1} parent=11 // pred_region
          _
        $region36: #{tpu_custom_call.1} parent=11 // pred_fallthru
          _
      $region12: #{tpu_custom_call.1} parent=5 // pred_fallthru
        _
      %p270 = scmp.lt.s32.totalorder %s17, 2
      // Predicated region
      $region37: #{tpu_custom_call.1} parent=5 // pred_check
        %p271 = pneg %p270
      $region38: #{tpu_custom_call.1} parent=5 // pred_check_branch
        %273 = sbr.rel (%p271) target = $region40
      $region39: #{tpu_custom_call.1} parent=5 // pred_region
        // Predicated region
        $region41: #{tpu_custom_call.1} parent=39 // pred_check
          %p274 = pneg %p51
        $region42: #{tpu_custom_call.1} parent=39 // pred_check_branch
          %276 = sbr.rel (%p274) target = $region44
        $region43: #{tpu_custom_call.1} parent=39 // pred_region
          %s277 = smul.u32 2, %s25
          %p278 = scmp.lt.s32.totalorder %s24, 1
          %s279 = scalar_select %p278, %s24, 1
          %p280 = scmp.lt.s32.totalorder %s277, 1
          %s281 = scalar_select %p280, %s277, 1
          %s282 = smul.addr %s279, 2
          %s283 = sadd.s32 %s281, %s282
          %s284 = smul.addr %s283, 4
          %s285 = scalar_lea.vmem %s0, %s284
          %s286 = smul.u32 2, %s25
        $region44: #{tpu_custom_call.1} parent=39 // pred_fallthru
          _
        // Predicated region
        $region45: #{tpu_custom_call.1} parent=39 // pred_check
          %p287 = pneg %p77
        $region46: #{tpu_custom_call.1} parent=39 // pred_check_branch
          %289 = sbr.rel (%p287) target = $region48
        $region47: #{tpu_custom_call.1} parent=39 // pred_region
          %p290 = scmp.lt.s32.totalorder %s24, 1
          %s291 = scalar_select %p290, %s24, 1
          %s292 = smul.addr %s291, 32
          %s293 = smul.addr %s292, 4
          %s294 = scalar_lea.vmem %s1, %s293
        $region48: #{tpu_custom_call.1} parent=39 // pred_fallthru
          _
      $region40: #{tpu_custom_call.1} parent=5 // pred_fallthru
        _
      %p295 = scmp.le.s32.totalorder 1, %s17
      %p296 = scmp.lt.s32.totalorder %s17, 3
      %p297 = pnand %p295, %p296
      %p298 = pneg %p297
      // Predicated region
      $region49: #{tpu_custom_call.1} parent=5 // pred_check
        _
      $region50: #{tpu_custom_call.1} parent=5 // pred_check_branch
        %300 = sbr.rel (%p297) target = $region52
      $region51: #{tpu_custom_call.1} parent=5 // pred_region
        %s301 = ssub.s32 %s17, 1
        %s302 = smul.u32 2, %s27
        %p303 = scmp.lt.s32.totalorder %s26, 1
        %s304 = scalar_select %p303, %s26, 1
        %p305 = scmp.lt.s32.totalorder %s302, 1
        %s306 = scalar_select %p305, %s302, 1
        %s307 = smul.addr %s304, 2
        %s308 = sadd.s32 %s306, %s307
        %s309 = smul.addr %s308, 4
        %s310 = scalar_lea.vmem %s0, %s309
        %p311 = pneg %p57
        %p312 = pneg %p54
        %p313 = scmp.lt.s32.totalorder %s26, 1
        %s314 = scalar_select %p313, %s26, 1
        %s315 = smul.addr %s314, 32
        %s316 = smul.addr %s315, 4
        %s317 = scalar_lea.vmem %s1, %s316
        %p318 = pneg %p83
        %p319 = pneg %p80
        %p320 = pneg %p104
        %p321 = pneg %p101
        %p322 = pneg %p125
        %p323 = pneg %p122
        %p324 = pneg %p146
        %p325 = pneg %p143
        %p326 = pneg %p167
        %p327 = pneg %p164
        %p328 = pneg %p188
        %p329 = pneg %p185
        %p330 = pneg %p209
        %p331 = pneg %p206
        %p332 = pneg %p237
        %p333 = pneg %p234
        %s334 = sand.u32 %s224, 1
        %s335 = scalar_lea.sflag [#allocation3], %s334
        %s336 = sand.u32 %s224, 1
        %s337 = smul.addr %s336, 16
        %s338 = scalar_lea.vmem [#allocation2], %s337
        %s339 = smul.u32 2, %s27
        %p340 = scmp.lt.s32.totalorder %s26, 1
        %s341 = scalar_select %p340, %s26, 1
        %p342 = scmp.lt.s32.totalorder %s339, 1
        %s343 = scalar_select %p342, %s339, 1
        %s344 = smul.addr %s341, 2
        %s345 = sadd.s32 %s343, %s344
        %s346 = smul.addr %s345, 4
        %s347 = scalar_lea.vmem %s0, %s346
        %s348 = smul.u32 2, %s27
        %p349 = scmp.lt.s32.totalorder %s26, 1
        %s350 = scalar_select %p349, %s26, 1
        %s351 = smul.addr %s350, 32
        %s352 = smul.addr %s351, 4
        %s353 = scalar_lea.vmem %s1, %s352
        %s354 = smul.u32 2, %s27
        %v356 = vld [vmem:[%s347] sm:$0xff]
        %v357 = vld [vmem:[%s353] sm:$0xf]
        %v358 = vld [vmem:[%s353 + $0x4] sm:$0xf]
        %v359 = vld [vmem:[%s353 + $0x8] sm:$0xf]
        %v360 = vld [vmem:[%s353 + $0xc] sm:$0xf]
        %v361 = vld [vmem:[%s353 + $0x10] sm:$0xf]
        %v362 = vld [vmem:[%s353 + $0x14] sm:$0xf]
        %v363 = vld [vmem:[%s353 + $0x18] sm:$0xf]
        %v364 = vld [vmem:[%s353 + $0x1c] sm:$0xf]
        %v365 = vld [vmem:[%s353 + $0x20] sm:$0xf]
        %v366 = vld [vmem:[%s353 + $0x24] sm:$0xf]
        %v367 = vld [vmem:[%s353 + $0x28] sm:$0xf]
        %v368 = vld [vmem:[%s353 + $0x2c] sm:$0xf]
        %v369 = vld [vmem:[%s353 + $0x30] sm:$0xf]
        %v370 = vld [vmem:[%s353 + $0x34] sm:$0xf]
        %v371 = vld [vmem:[%s353 + $0x38] sm:$0xf]
        %v372 = vld [vmem:[%s353 + $0x3c] sm:$0xf]
        %v373 = vld [vmem:[%s353 + $0x40] sm:$0xf]
        %v374 = vld [vmem:[%s353 + $0x44] sm:$0xf]
        %v375 = vld [vmem:[%s353 + $0x48] sm:$0xf]
        %v376 = vld [vmem:[%s353 + $0x4c] sm:$0xf]
        %v377 = vld [vmem:[%s353 + $0x50] sm:$0xf]
        %v378 = vld [vmem:[%s353 + $0x54] sm:$0xf]
        %v379 = vld [vmem:[%s353 + $0x58] sm:$0xf]
        %v380 = vld [vmem:[%s353 + $0x5c] sm:$0xf]
        %v381 = vld [vmem:[%s353 + $0x60] sm:$0xf]
        %v382 = vld [vmem:[%s353 + $0x64] sm:$0xf]
        %v383 = vld [vmem:[%s353 + $0x68] sm:$0xf]
        %v384 = vld [vmem:[%s353 + $0x6c] sm:$0xf]
        %v385 = vld [vmem:[%s353 + $0x70] sm:$0xf]
        %v386 = vld [vmem:[%s353 + $0x74] sm:$0xf]
        %v387 = vld [vmem:[%s353 + $0x78] sm:$0xf]
        %v388 = vld [vmem:[%s353 + $0x7c] sm:$0xf]
        %v389 = vld [vmem:[%s7] sm:$0xf]
        %v390 = vld [vmem:[%s7 + $0x4] sm:$0xf]
        %v391 = vld [vmem:[%s7 + $0x8] sm:$0xf]
        %v392 = vld [vmem:[%s7 + $0xc] sm:$0xf]
        %v393 = vld [vmem:[%s7 + $0x10] sm:$0xf]
        %v394 = vld [vmem:[%s7 + $0x14] sm:$0xf]
        %v395 = vld [vmem:[%s7 + $0x18] sm:$0xf]
        %v396 = vld [vmem:[%s7 + $0x1c] sm:$0xf]
        %v397 = vld [vmem:[%s7 + $0x20] sm:$0xf]
        %v398 = vld [vmem:[%s7 + $0x24] sm:$0xf]
        %v399 = vld [vmem:[%s7 + $0x28] sm:$0xf]
        %v400 = vld [vmem:[%s7 + $0x2c] sm:$0xf]
        %v401 = vld [vmem:[%s7 + $0x30] sm:$0xf]
        %v402 = vld [vmem:[%s7 + $0x34] sm:$0xf]
        %v403 = vld [vmem:[%s7 + $0x38] sm:$0xf]
        %v404 = vld [vmem:[%s7 + $0x3c] sm:$0xf]
        %v405 = vld [vmem:[%s7 + $0x40] sm:$0xf]
        %v406 = vld [vmem:[%s7 + $0x44] sm:$0xf]
        %v407 = vld [vmem:[%s7 + $0x48] sm:$0xf]
        %v408 = vld [vmem:[%s7 + $0x4c] sm:$0xf]
        %v409 = vld [vmem:[%s7 + $0x50] sm:$0xf]
        %v410 = vld [vmem:[%s7 + $0x54] sm:$0xf]
        %v411 = vld [vmem:[%s7 + $0x58] sm:$0xf]
        %v412 = vld [vmem:[%s7 + $0x5c] sm:$0xf]
        %v413 = vld [vmem:[%s7 + $0x60] sm:$0xf]
        %v414 = vld [vmem:[%s7 + $0x64] sm:$0xf]
        %v415 = vld [vmem:[%s7 + $0x68] sm:$0xf]
        %v416 = vld [vmem:[%s7 + $0x6c] sm:$0xf]
        %v417 = vld [vmem:[%s7 + $0x70] sm:$0xf]
        %v418 = vld [vmem:[%s7 + $0x74] sm:$0xf]
        %v419 = vld [vmem:[%s7 + $0x78] sm:$0xf]
        %v420 = vld [vmem:[%s7 + $0x7c] sm:$0xf]
        %v421 = vld [vmem:[%s7 + $0x80] sm:$0xf]
        %v422 = vld [vmem:[%s7 + $0x84] sm:$0xf]
        %v423 = vld [vmem:[%s7 + $0x88] sm:$0xf]
        %v424 = vld [vmem:[%s7 + $0x8c] sm:$0xf]
        %v425 = vld [vmem:[%s7 + $0x90] sm:$0xf]
        %v426 = vld [vmem:[%s7 + $0x94] sm:$0xf]
        %v427 = vld [vmem:[%s7 + $0x98] sm:$0xf]
        %v428 = vld [vmem:[%s7 + $0x9c] sm:$0xf]
        %v429 = vld [vmem:[%s7 + $0xa0] sm:$0xf]
        %v430 = vld [vmem:[%s7 + $0xa4] sm:$0xf]
        %v431 = vld [vmem:[%s7 + $0xa8] sm:$0xf]
        %v432 = vld [vmem:[%s7 + $0xac] sm:$0xf]
        %v433 = vld [vmem:[%s7 + $0xb0] sm:$0xf]
        %v434 = vld [vmem:[%s7 + $0xb4] sm:$0xf]
        %v435 = vld [vmem:[%s7 + $0xb8] sm:$0xf]
        %v436 = vld [vmem:[%s7 + $0xbc] sm:$0xf]
        %v437 = vld [vmem:[%s7 + $0xc0] sm:$0xf]
        %v438 = vld [vmem:[%s7 + $0xc4] sm:$0xf]
        %v439 = vld [vmem:[%s7 + $0xc8] sm:$0xf]
        %v440 = vld [vmem:[%s7 + $0xcc] sm:$0xf]
        %v441 = vld [vmem:[%s7 + $0xd0] sm:$0xf]
        %v442 = vld [vmem:[%s7 + $0xd4] sm:$0xf]
        %v443 = vld [vmem:[%s7 + $0xd8] sm:$0xf]
        %v444 = vld [vmem:[%s7 + $0xdc] sm:$0xf]
        %v445 = vld [vmem:[%s7 + $0xe0] sm:$0xf]
        %v446 = vld [vmem:[%s2] sm:$0xf]
        %v447 = vld [vmem:[%s2 + $0x4] sm:$0xf]
        %v448 = vld [vmem:[%s2 + $0x8] sm:$0xf]
        %v449 = vld [vmem:[%s2 + $0xc] sm:$0xf]
        %v450 = vld [vmem:[%s2 + $0x10] sm:$0xf]
        %v451 = vld [vmem:[%s2 + $0x14] sm:$0xf]
        %v452 = vld [vmem:[%s2 + $0x18] sm:$0xf]
        %v453 = vld [vmem:[%s2 + $0x1c] sm:$0xf]
        %v454 = vld [vmem:[%s2 + $0x20] sm:$0xf]
        %v455 = vld [vmem:[%s2 + $0x24] sm:$0xf]
        %v456 = vld [vmem:[%s2 + $0x28] sm:$0xf]
        %v457 = vld [vmem:[%s2 + $0x2c] sm:$0xf]
        %v458 = vld [vmem:[%s2 + $0x30] sm:$0xf]
        %v459 = vld [vmem:[%s2 + $0x34] sm:$0xf]
        %v460 = vld [vmem:[%s2 + $0x38] sm:$0xf]
        %v461 = vld [vmem:[%s2 + $0x3c] sm:$0xf]
        %v462 = vld [vmem:[%s2 + $0x40] sm:$0xf]
        %v463 = vld [vmem:[%s2 + $0x44] sm:$0xf]
        %v464 = vld [vmem:[%s2 + $0x48] sm:$0xf]
        %v465 = vld [vmem:[%s2 + $0x4c] sm:$0xf]
        %v466 = vld [vmem:[%s2 + $0x50] sm:$0xf]
        %v467 = vld [vmem:[%s2 + $0x54] sm:$0xf]
        %v468 = vld [vmem:[%s2 + $0x58] sm:$0xf]
        %v469 = vld [vmem:[%s2 + $0x5c] sm:$0xf]
        %v470 = vld [vmem:[%s2 + $0x60] sm:$0xf]
        %v471 = vld [vmem:[%s2 + $0x64] sm:$0xf]
        %v472 = vld [vmem:[%s2 + $0x68] sm:$0xf]
        %v473 = vld [vmem:[%s2 + $0x6c] sm:$0xf]
        %v474 = vld [vmem:[%s2 + $0x70] sm:$0xf]
        %v475 = vld [vmem:[%s2 + $0x74] sm:$0xf]
        %v476 = vld [vmem:[%s2 + $0x78] sm:$0xf]
        %v477 = vld [vmem:[%s2 + $0x7c] sm:$0xf]
        %v510 = vunpack.c.l.b16 %v446
        %v511 = vunpack.c.l.b16 %v447
        %v512 = vunpack.c.l.b16 %v448
        %v513 = vunpack.c.l.b16 %v449
        %v514 = vunpack.c.l.b16 %v450
        %v515 = vunpack.c.l.b16 %v451
        %v516 = vunpack.c.l.b16 %v452
        %v517 = vunpack.c.l.b16 %v453
        %v518 = vunpack.c.l.b16 %v454
        %v519 = vunpack.c.l.b16 %v455
        %v520 = vunpack.c.l.b16 %v456
        %v521 = vunpack.c.l.b16 %v457
        %v522 = vunpack.c.l.b16 %v458
        %v523 = vunpack.c.l.b16 %v459
        %v524 = vunpack.c.l.b16 %v460
        %v525 = vunpack.c.l.b16 %v461
        %v526 = vunpack.c.l.b16 %v462
        %v527 = vunpack.c.l.b16 %v463
        %v528 = vunpack.c.l.b16 %v464
        %v529 = vunpack.c.l.b16 %v465
        %v530 = vunpack.c.l.b16 %v466
        %v531 = vunpack.c.l.b16 %v467
        %v532 = vunpack.c.l.b16 %v468
        %v533 = vunpack.c.l.b16 %v469
        %v534 = vunpack.c.l.b16 %v470
        %v535 = vunpack.c.l.b16 %v471
        %v536 = vunpack.c.l.b16 %v472
        %v537 = vunpack.c.l.b16 %v473
        %v538 = vunpack.c.l.b16 %v474
        %v539 = vunpack.c.l.b16 %v475
        %v540 = vunpack.c.l.b16 %v476
        %v541 = vunpack.c.l.b16 %v477
        %v542 = vpack.c.b16 %v511, %v510
        %v543 = vpack.c.b16 %v513, %v512
        %v544 = vpack.c.b16 %v515, %v514
        %v545 = vpack.c.b16 %v517, %v516
        %v546 = vpack.c.b16 %v519, %v518
        %v547 = vpack.c.b16 %v521, %v520
        %v548 = vpack.c.b16 %v523, %v522
        %v549 = vpack.c.b16 %v525, %v524
        %v550 = vpack.c.b16 %v527, %v526
        %v551 = vpack.c.b16 %v529, %v528
        %v552 = vpack.c.b16 %v531, %v530
        %v553 = vpack.c.b16 %v533, %v532
        %v554 = vpack.c.b16 %v535, %v534
        %v555 = vpack.c.b16 %v537, %v536
        %v556 = vpack.c.b16 %v539, %v538
        %v557 = vpack.c.b16 %v541, %v540
        %v559 = vunpack.c.l.b16 %v356
        %v560 = vunpack.c.h.b16 %v356
        %v561 = vpack.c.b16 %v559, %v559
        %v562 = vpack.c.b16 %v560, %v560
        %vm563 = vcmask 64512
        %v565 = vsel %vm563, %v542, 0
        %v568 = vsel %vm563, %v543, 0
        %v571 = vsel %vm563, %v544, 0
        %v574 = vsel %vm563, %v545, 0
        %v577 = vsel %vm563, %v546, 0
        %v580 = vsel %vm563, %v547, 0
        %v583 = vsel %vm563, %v548, 0
        %v586 = vsel %vm563, %v549, 0
        %v589 = vsel %vm563, %v550, 0
        %v592 = vsel %vm563, %v551, 0
        %v595 = vsel %vm563, %v552, 0
        %v598 = vsel %vm563, %v553, 0
        %v601 = vsel %vm563, %v554, 0
        %v604 = vsel %vm563, %v555, 0
        %v607 = vsel %vm563, %v556, 0
        %v610 = vsel %vm563, %v557, 0
        %vm612 = vcmask 1043456
        %v614 = vsel %vm612, %v561, 0
        %v617 = vsel %vm612, %v562, 0
        %619 = vmatpush.bf16.msra.mxu0 0
        %620 = vmatpush.bf16.msra.mxu0 0
        %621 = vmatpush.bf16.msra.mxu0 0
        %622 = vmatpush.bf16.msra.mxu0 0
        %623 = vmatpush.bf16.msra.mxu0 0
        %624 = vmatpush.bf16.msra.mxu0 0
        %625 = vmatpush.bf16.msra.mxu0 0
        %626 = vmatpush.bf16.msra.mxu0 %v614
        %627 = vmatmul.bf16.gmra.mxu0 %v565
        %v628 = vpop.f32.mrf.mxu0
        %v629 = vadd.f32 0.0, %v628
        %v630 = vpop.f32.mrf.mxu0
        %v631 = vadd.f32 0.0, %v630
        %632 = vmatmul.bf16.gmra.mxu0 %v568
        %v633 = vpop.f32.mrf.mxu0
        %v634 = vadd.f32 0.0, %v633
        %v635 = vpop.f32.mrf.mxu0
        %v636 = vadd.f32 0.0, %v635
        %637 = vmatmul.bf16.gmra.mxu0 %v571
        %v638 = vpop.f32.mrf.mxu0
        %v639 = vadd.f32 0.0, %v638
        %v640 = vpop.f32.mrf.mxu0
        %v641 = vadd.f32 0.0, %v640
        %642 = vmatmul.bf16.gmra.mxu0 %v574
        %v643 = vpop.f32.mrf.mxu0
        %v644 = vadd.f32 0.0, %v643
        %v645 = vpop.f32.mrf.mxu0
        %v646 = vadd.f32 0.0, %v645
        %647 = vmatmul.bf16.gmra.mxu0 %v577
        %v648 = vpop.f32.mrf.mxu0
        %v649 = vadd.f32 0.0, %v648
        %v650 = vpop.f32.mrf.mxu0
        %v651 = vadd.f32 0.0, %v650
        %652 = vmatmul.bf16.gmra.mxu0 %v580
        %v653 = vpop.f32.mrf.mxu0
        %v654 = vadd.f32 0.0, %v653
        %v655 = vpop.f32.mrf.mxu0
        %v656 = vadd.f32 0.0, %v655
        %657 = vmatmul.bf16.gmra.mxu0 %v583
        %v658 = vpop.f32.mrf.mxu0
        %v659 = vadd.f32 0.0, %v658
        %v660 = vpop.f32.mrf.mxu0
        %v661 = vadd.f32 0.0, %v660
        %662 = vmatmul.bf16.gmra.mxu0 %v586
        %v663 = vpop.f32.mrf.mxu0
        %v664 = vadd.f32 0.0, %v663
        %v665 = vpop.f32.mrf.mxu0
        %v666 = vadd.f32 0.0, %v665
        %667 = vmatmul.bf16.gmra.mxu0 %v589
        %v668 = vpop.f32.mrf.mxu0
        %v669 = vadd.f32 0.0, %v668
        %v670 = vpop.f32.mrf.mxu0
        %v671 = vadd.f32 0.0, %v670
        %672 = vmatmul.bf16.gmra.mxu0 %v592
        %v673 = vpop.f32.mrf.mxu0
        %v674 = vadd.f32 0.0, %v673
        %v675 = vpop.f32.mrf.mxu0
        %v676 = vadd.f32 0.0, %v675
        %677 = vmatmul.bf16.gmra.mxu0 %v595
        %v678 = vpop.f32.mrf.mxu0
        %v679 = vadd.f32 0.0, %v678
        %v680 = vpop.f32.mrf.mxu0
        %v681 = vadd.f32 0.0, %v680
        %682 = vmatmul.bf16.gmra.mxu0 %v598
        %v683 = vpop.f32.mrf.mxu0
        %v684 = vadd.f32 0.0, %v683
        %v685 = vpop.f32.mrf.mxu0
        %v686 = vadd.f32 0.0, %v685
        %687 = vmatmul.bf16.gmra.mxu0 %v601
        %v688 = vpop.f32.mrf.mxu0
        %v689 = vadd.f32 0.0, %v688
        %v690 = vpop.f32.mrf.mxu0
        %v691 = vadd.f32 0.0, %v690
        %692 = vmatmul.bf16.gmra.mxu0 %v604
        %v693 = vpop.f32.mrf.mxu0
        %v694 = vadd.f32 0.0, %v693
        %v695 = vpop.f32.mrf.mxu0
        %v696 = vadd.f32 0.0, %v695
        %697 = vmatmul.bf16.gmra.mxu0 %v607
        %v698 = vpop.f32.mrf.mxu0
        %v699 = vadd.f32 0.0, %v698
        %v700 = vpop.f32.mrf.mxu0
        %v701 = vadd.f32 0.0, %v700
        %702 = vmatmul.bf16.gmra.mxu0 %v610
        %v703 = vpop.f32.mrf.mxu0
        %v704 = vadd.f32 0.0, %v703
        %v705 = vpop.f32.mrf.mxu0
        %v706 = vadd.f32 0.0, %v705
        %707 = vdwg.mxu0
        %708 = vmatpush.bf16.msra.mxu0 0
        %709 = vmatpush.bf16.msra.mxu0 0
        %710 = vmatpush.bf16.msra.mxu0 0
        %711 = vmatpush.bf16.msra.mxu0 0
        %712 = vmatpush.bf16.msra.mxu0 0
        %713 = vmatpush.bf16.msra.mxu0 0
        %714 = vmatpush.bf16.msra.mxu0 0
        %715 = vmatpush.bf16.msra.mxu0 %v617
        %716 = vmatmul.bf16.gmra.mxu0 %v565
        %v717 = vpop.f32.mrf.mxu0
        %v718 = vadd.f32 0.0, %v717
        %v719 = vpop.f32.mrf.mxu0
        %v720 = vadd.f32 0.0, %v719
        %721 = vmatmul.bf16.gmra.mxu0 %v568
        %v722 = vpop.f32.mrf.mxu0
        %v723 = vadd.f32 0.0, %v722
        %v724 = vpop.f32.mrf.mxu0
        %v725 = vadd.f32 0.0, %v724
        %726 = vmatmul.bf16.gmra.mxu0 %v571
        %v727 = vpop.f32.mrf.mxu0
        %v728 = vadd.f32 0.0, %v727
        %v729 = vpop.f32.mrf.mxu0
        %v730 = vadd.f32 0.0, %v729
        %731 = vmatmul.bf16.gmra.mxu0 %v574
        %v732 = vpop.f32.mrf.mxu0
        %v733 = vadd.f32 0.0, %v732
        %v734 = vpop.f32.mrf.mxu0
        %v735 = vadd.f32 0.0, %v734
        %736 = vmatmul.bf16.gmra.mxu0 %v577
        %v737 = vpop.f32.mrf.mxu0
        %v738 = vadd.f32 0.0, %v737
        %v739 = vpop.f32.mrf.mxu0
        %v740 = vadd.f32 0.0, %v739
        %741 = vmatmul.bf16.gmra.mxu0 %v580
        %v742 = vpop.f32.mrf.mxu0
        %v743 = vadd.f32 0.0, %v742
        %v744 = vpop.f32.mrf.mxu0
        %v745 = vadd.f32 0.0, %v744
        %746 = vmatmul.bf16.gmra.mxu0 %v583
        %v747 = vpop.f32.mrf.mxu0
        %v748 = vadd.f32 0.0, %v747
        %v749 = vpop.f32.mrf.mxu0
        %v750 = vadd.f32 0.0, %v749
        %751 = vmatmul.bf16.gmra.mxu0 %v586
        %v752 = vpop.f32.mrf.mxu0
        %v753 = vadd.f32 0.0, %v752
        %v754 = vpop.f32.mrf.mxu0
        %v755 = vadd.f32 0.0, %v754
        %756 = vmatmul.bf16.gmra.mxu0 %v589
        %v757 = vpop.f32.mrf.mxu0
        %v758 = vadd.f32 0.0, %v757
        %v759 = vpop.f32.mrf.mxu0
        %v760 = vadd.f32 0.0, %v759
        %761 = vmatmul.bf16.gmra.mxu0 %v592
        %v762 = vpop.f32.mrf.mxu0
        %v763 = vadd.f32 0.0, %v762
        %v764 = vpop.f32.mrf.mxu0
        %v765 = vadd.f32 0.0, %v764
        %766 = vmatmul.bf16.gmra.mxu0 %v595
        %v767 = vpop.f32.mrf.mxu0
        %v768 = vadd.f32 0.0, %v767
        %v769 = vpop.f32.mrf.mxu0
        %v770 = vadd.f32 0.0, %v769
        %771 = vmatmul.bf16.gmra.mxu0 %v598
        %v772 = vpop.f32.mrf.mxu0
        %v773 = vadd.f32 0.0, %v772
        %v774 = vpop.f32.mrf.mxu0
        %v775 = vadd.f32 0.0, %v774
        %776 = vmatmul.bf16.gmra.mxu0 %v601
        %v777 = vpop.f32.mrf.mxu0
        %v778 = vadd.f32 0.0, %v777
        %v779 = vpop.f32.mrf.mxu0
        %v780 = vadd.f32 0.0, %v779
        %781 = vmatmul.bf16.gmra.mxu0 %v604
        %v782 = vpop.f32.mrf.mxu0
        %v783 = vadd.f32 0.0, %v782
        %v784 = vpop.f32.mrf.mxu0
        %v785 = vadd.f32 0.0, %v784
        %786 = vmatmul.bf16.gmra.mxu0 %v607
        %v787 = vpop.f32.mrf.mxu0
        %v788 = vadd.f32 0.0, %v787
        %v789 = vpop.f32.mrf.mxu0
        %v790 = vadd.f32 0.0, %v789
        %791 = vmatmul.bf16.gmra.mxu0 %v610
        %v792 = vpop.f32.mrf.mxu0
        %v793 = vadd.f32 0.0, %v792
        %v794 = vpop.f32.mrf.mxu0
        %v795 = vadd.f32 0.0, %v794
        %796 = vdwg.mxu0
        %v797 = vpack.c.bf16 %v718, %v629
        %v798 = vpack.c.bf16 %v720, %v631
        %v799 = vpack.c.bf16 %v723, %v634
        %v800 = vpack.c.bf16 %v725, %v636
        %v801 = vpack.c.bf16 %v728, %v639
        %v802 = vpack.c.bf16 %v730, %v641
        %v803 = vpack.c.bf16 %v733, %v644
        %v804 = vpack.c.bf16 %v735, %v646
        %v805 = vpack.c.bf16 %v738, %v649
        %v806 = vpack.c.bf16 %v740, %v651
        %v807 = vpack.c.bf16 %v743, %v654
        %v808 = vpack.c.bf16 %v745, %v656
        %v809 = vpack.c.bf16 %v748, %v659
        %v810 = vpack.c.bf16 %v750, %v661
        %v811 = vpack.c.bf16 %v753, %v664
        %v812 = vpack.c.bf16 %v755, %v666
        %v813 = vpack.c.bf16 %v758, %v669
        %v814 = vpack.c.bf16 %v760, %v671
        %v815 = vpack.c.bf16 %v763, %v674
        %v816 = vpack.c.bf16 %v765, %v676
        %v817 = vpack.c.bf16 %v768, %v679
        %v818 = vpack.c.bf16 %v770, %v681
        %v819 = vpack.c.bf16 %v773, %v684
        %v820 = vpack.c.bf16 %v775, %v686
        %v821 = vpack.c.bf16 %v778, %v689
        %v822 = vpack.c.bf16 %v780, %v691
        %v823 = vpack.c.bf16 %v783, %v694
        %v824 = vpack.c.bf16 %v785, %v696
        %v825 = vpack.c.bf16 %v788, %v699
        %v826 = vpack.c.bf16 %v790, %v701
        %v827 = vpack.c.bf16 %v793, %v704
        %v828 = vpack.c.bf16 %v795, %v706
        %830 = vset.pattern.permute.xlu0 0
        %831 = vperm.xlu0 %830, %v389
        %v832 = vpop.permute.xlu0 %831
        %v835 = vunpack.c.l.s4 839922192
        %v836 = vunpack.c.0.s8 %v835
        %v837 = vperm.slane %v832, %v836
        %839 = vset.pattern.permute.xlu0 0
        %840 = vperm.xlu0 %839, %v390
        %v841 = vpop.permute.xlu0 %840
        %v844 = vunpack.c.l.s4 839922192
        %v845 = vunpack.c.0.s8 %v844
        %v846 = vperm.slane %v841, %v845
        %848 = vset.pattern.permute.xlu0 0
        %849 = vperm.xlu0 %848, %v391
        %v850 = vpop.permute.xlu0 %849
        %v853 = vunpack.c.l.s4 839922192
        %v854 = vunpack.c.0.s8 %v853
        %v855 = vperm.slane %v850, %v854
        %857 = vset.pattern.permute.xlu0 0
        %858 = vperm.xlu0 %857, %v392
        %v859 = vpop.permute.xlu0 %858
        %v862 = vunpack.c.l.s4 839922192
        %v863 = vunpack.c.0.s8 %v862
        %v864 = vperm.slane %v859, %v863
        %866 = vset.pattern.permute.xlu0 0
        %867 = vperm.xlu0 %866, %v393
        %v868 = vpop.permute.xlu0 %867
        %v871 = vunpack.c.l.s4 839922192
        %v872 = vunpack.c.0.s8 %v871
        %v873 = vperm.slane %v868, %v872
        %875 = vset.pattern.permute.xlu0 0
        %876 = vperm.xlu0 %875, %v394
        %v877 = vpop.permute.xlu0 %876
        %v880 = vunpack.c.l.s4 839922192
        %v881 = vunpack.c.0.s8 %v880
        %v882 = vperm.slane %v877, %v881
        %884 = vset.pattern.permute.xlu0 0
        %885 = vperm.xlu0 %884, %v395
        %v886 = vpop.permute.xlu0 %885
        %v889 = vunpack.c.l.s4 839922192
        %v890 = vunpack.c.0.s8 %v889
        %v891 = vperm.slane %v886, %v890
        %893 = vset.pattern.permute.xlu0 0
        %894 = vperm.xlu0 %893, %v396
        %v895 = vpop.permute.xlu0 %894
        %v898 = vunpack.c.l.s4 839922192
        %v899 = vunpack.c.0.s8 %v898
        %v900 = vperm.slane %v895, %v899
        %902 = vset.pattern.permute.xlu0 0
        %903 = vperm.xlu0 %902, %v397
        %v904 = vpop.permute.xlu0 %903
        %v907 = vunpack.c.l.s4 839922192
        %v908 = vunpack.c.0.s8 %v907
        %v909 = vperm.slane %v904, %v908
        %911 = vset.pattern.permute.xlu0 0
        %912 = vperm.xlu0 %911, %v398
        %v913 = vpop.permute.xlu0 %912
        %v916 = vunpack.c.l.s4 839922192
        %v917 = vunpack.c.0.s8 %v916
        %v918 = vperm.slane %v913, %v917
        %920 = vset.pattern.permute.xlu0 0
        %921 = vperm.xlu0 %920, %v399
        %v922 = vpop.permute.xlu0 %921
        %v925 = vunpack.c.l.s4 839922192
        %v926 = vunpack.c.0.s8 %v925
        %v927 = vperm.slane %v922, %v926
        %929 = vset.pattern.permute.xlu0 0
        %930 = vperm.xlu0 %929, %v400
        %v931 = vpop.permute.xlu0 %930
        %v934 = vunpack.c.l.s4 839922192
        %v935 = vunpack.c.0.s8 %v934
        %v936 = vperm.slane %v931, %v935
        %938 = vset.pattern.permute.xlu0 0
        %939 = vperm.xlu0 %938, %v401
        %v940 = vpop.permute.xlu0 %939
        %v943 = vunpack.c.l.s4 839922192
        %v944 = vunpack.c.0.s8 %v943
        %v945 = vperm.slane %v940, %v944
        %947 = vset.pattern.permute.xlu0 0
        %948 = vperm.xlu0 %947, %v402
        %v949 = vpop.permute.xlu0 %948
        %v952 = vunpack.c.l.s4 839922192
        %v953 = vunpack.c.0.s8 %v952
        %v954 = vperm.slane %v949, %v953
        %956 = vset.pattern.permute.xlu0 0
        %957 = vperm.xlu0 %956, %v403
        %v958 = vpop.permute.xlu0 %957
        %v961 = vunpack.c.l.s4 839922192
        %v962 = vunpack.c.0.s8 %v961
        %v963 = vperm.slane %v958, %v962
        %965 = vset.pattern.permute.xlu0 0
        %966 = vperm.xlu0 %965, %v404
        %v967 = vpop.permute.xlu0 %966
        %v970 = vunpack.c.l.s4 839922192
        %v971 = vunpack.c.0.s8 %v970
        %v972 = vperm.slane %v967, %v971
        %974 = vset.pattern.permute.xlu0 0
        %975 = vperm.xlu0 %974, %v405
        %v976 = vpop.permute.xlu0 %975
        %v979 = vunpack.c.l.s4 839922192
        %v980 = vunpack.c.0.s8 %v979
        %v981 = vperm.slane %v976, %v980
        %983 = vset.pattern.permute.xlu0 0
        %984 = vperm.xlu0 %983, %v406
        %v985 = vpop.permute.xlu0 %984
        %v988 = vunpack.c.l.s4 839922192
        %v989 = vunpack.c.0.s8 %v988
        %v990 = vperm.slane %v985, %v989
        %992 = vset.pattern.permute.xlu0 0
        %993 = vperm.xlu0 %992, %v407
        %v994 = vpop.permute.xlu0 %993
        %v997 = vunpack.c.l.s4 839922192
        %v998 = vunpack.c.0.s8 %v997
        %v999 = vperm.slane %v994, %v998
        %1001 = vset.pattern.permute.xlu0 0
        %1002 = vperm.xlu0 %1001, %v408
        %v1003 = vpop.permute.xlu0 %1002
        %v1006 = vunpack.c.l.s4 839922192
        %v1007 = vunpack.c.0.s8 %v1006
        %v1008 = vperm.slane %v1003, %v1007
        %1010 = vset.pattern.permute.xlu0 0
        %1011 = vperm.xlu0 %1010, %v409
        %v1012 = vpop.permute.xlu0 %1011
        %v1015 = vunpack.c.l.s4 839922192
        %v1016 = vunpack.c.0.s8 %v1015
        %v1017 = vperm.slane %v1012, %v1016
        %1019 = vset.pattern.permute.xlu0 0
        %1020 = vperm.xlu0 %1019, %v410
        %v1021 = vpop.permute.xlu0 %1020
        %v1024 = vunpack.c.l.s4 839922192
        %v1025 = vunpack.c.0.s8 %v1024
        %v1026 = vperm.slane %v1021, %v1025
        %1028 = vset.pattern.permute.xlu0 0
        %1029 = vperm.xlu0 %1028, %v411
        %v1030 = vpop.permute.xlu0 %1029
        %v1033 = vunpack.c.l.s4 839922192
        %v1034 = vunpack.c.0.s8 %v1033
        %v1035 = vperm.slane %v1030, %v1034
        %1037 = vset.pattern.permute.xlu0 0
        %1038 = vperm.xlu0 %1037, %v412
        %v1039 = vpop.permute.xlu0 %1038
        %v1042 = vunpack.c.l.s4 839922192
        %v1043 = vunpack.c.0.s8 %v1042
        %v1044 = vperm.slane %v1039, %v1043
        %1046 = vset.pattern.permute.xlu0 0
        %1047 = vperm.xlu0 %1046, %v413
        %v1048 = vpop.permute.xlu0 %1047
        %v1051 = vunpack.c.l.s4 839922192
        %v1052 = vunpack.c.0.s8 %v1051
        %v1053 = vperm.slane %v1048, %v1052
        %1055 = vset.pattern.permute.xlu0 0
        %1056 = vperm.xlu0 %1055, %v414
        %v1057 = vpop.permute.xlu0 %1056
        %v1060 = vunpack.c.l.s4 839922192
        %v1061 = vunpack.c.0.s8 %v1060
        %v1062 = vperm.slane %v1057, %v1061
        %1064 = vset.pattern.permute.xlu0 0
        %1065 = vperm.xlu0 %1064, %v415
        %v1066 = vpop.permute.xlu0 %1065
        %v1069 = vunpack.c.l.s4 839922192
        %v1070 = vunpack.c.0.s8 %v1069
        %v1071 = vperm.slane %v1066, %v1070
        %1073 = vset.pattern.permute.xlu0 0
        %1074 = vperm.xlu0 %1073, %v416
        %v1075 = vpop.permute.xlu0 %1074
        %v1078 = vunpack.c.l.s4 839922192
        %v1079 = vunpack.c.0.s8 %v1078
        %v1080 = vperm.slane %v1075, %v1079
        %1082 = vset.pattern.permute.xlu0 0
        %1083 = vperm.xlu0 %1082, %v417
        %v1084 = vpop.permute.xlu0 %1083
        %v1087 = vunpack.c.l.s4 839922192
        %v1088 = vunpack.c.0.s8 %v1087
        %v1089 = vperm.slane %v1084, %v1088
        %1091 = vset.pattern.permute.xlu0 0
        %1092 = vperm.xlu0 %1091, %v418
        %v1093 = vpop.permute.xlu0 %1092
        %v1096 = vunpack.c.l.s4 839922192
        %v1097 = vunpack.c.0.s8 %v1096
        %v1098 = vperm.slane %v1093, %v1097
        %1100 = vset.pattern.permute.xlu0 0
        %1101 = vperm.xlu0 %1100, %v419
        %v1102 = vpop.permute.xlu0 %1101
        %v1105 = vunpack.c.l.s4 839922192
        %v1106 = vunpack.c.0.s8 %v1105
        %v1107 = vperm.slane %v1102, %v1106
        %1109 = vset.pattern.permute.xlu0 0
        %1110 = vperm.xlu0 %1109, %v420
        %v1111 = vpop.permute.xlu0 %1110
        %v1114 = vunpack.c.l.s4 839922192
        %v1115 = vunpack.c.0.s8 %v1114
        %v1116 = vperm.slane %v1111, %v1115
        %v1117 = vunpack.c.l.bf16 %v797
        %v1118 = vunpack.c.h.bf16 %v797
        %v1119 = vunpack.c.l.bf16 %v798
        %v1120 = vunpack.c.h.bf16 %v798
        %v1121 = vunpack.c.l.bf16 %v799
        %v1122 = vunpack.c.h.bf16 %v799
        %v1123 = vunpack.c.l.bf16 %v800
        %v1124 = vunpack.c.h.bf16 %v800
        %v1125 = vunpack.c.l.bf16 %v801
        %v1126 = vunpack.c.h.bf16 %v801
        %v1127 = vunpack.c.l.bf16 %v802
        %v1128 = vunpack.c.h.bf16 %v802
        %v1129 = vunpack.c.l.bf16 %v803
        %v1130 = vunpack.c.h.bf16 %v803
        %v1131 = vunpack.c.l.bf16 %v804
        %v1132 = vunpack.c.h.bf16 %v804
        %v1133 = vunpack.c.l.bf16 %v805
        %v1134 = vunpack.c.h.bf16 %v805
        %v1135 = vunpack.c.l.bf16 %v806
        %v1136 = vunpack.c.h.bf16 %v806
        %v1137 = vunpack.c.l.bf16 %v807
        %v1138 = vunpack.c.h.bf16 %v807
        %v1139 = vunpack.c.l.bf16 %v808
        %v1140 = vunpack.c.h.bf16 %v808
        %v1141 = vunpack.c.l.bf16 %v809
        %v1142 = vunpack.c.h.bf16 %v809
        %v1143 = vunpack.c.l.bf16 %v810
        %v1144 = vunpack.c.h.bf16 %v810
        %v1145 = vunpack.c.l.bf16 %v811
        %v1146 = vunpack.c.h.bf16 %v811
        %v1147 = vunpack.c.l.bf16 %v812
        %v1148 = vunpack.c.h.bf16 %v812
        %v1149 = vunpack.c.l.bf16 %v813
        %v1150 = vunpack.c.h.bf16 %v813
        %v1151 = vunpack.c.l.bf16 %v814
        %v1152 = vunpack.c.h.bf16 %v814
        %v1153 = vunpack.c.l.bf16 %v815
        %v1154 = vunpack.c.h.bf16 %v815
        %v1155 = vunpack.c.l.bf16 %v816
        %v1156 = vunpack.c.h.bf16 %v816
        %v1157 = vunpack.c.l.bf16 %v817
        %v1158 = vunpack.c.h.bf16 %v817
        %v1159 = vunpack.c.l.bf16 %v818
        %v1160 = vunpack.c.h.bf16 %v818
        %v1161 = vunpack.c.l.bf16 %v819
        %v1162 = vunpack.c.h.bf16 %v819
        %v1163 = vunpack.c.l.bf16 %v820
        %v1164 = vunpack.c.h.bf16 %v820
        %v1165 = vunpack.c.l.bf16 %v821
        %v1166 = vunpack.c.h.bf16 %v821
        %v1167 = vunpack.c.l.bf16 %v822
        %v1168 = vunpack.c.h.bf16 %v822
        %v1169 = vunpack.c.l.bf16 %v823
        %v1170 = vunpack.c.h.bf16 %v823
        %v1171 = vunpack.c.l.bf16 %v824
        %v1172 = vunpack.c.h.bf16 %v824
        %v1173 = vunpack.c.l.bf16 %v825
        %v1174 = vunpack.c.h.bf16 %v825
        %v1175 = vunpack.c.l.bf16 %v826
        %v1176 = vunpack.c.h.bf16 %v826
        %v1177 = vunpack.c.l.bf16 %v827
        %v1178 = vunpack.c.h.bf16 %v827
        %v1179 = vunpack.c.l.bf16 %v828
        %v1180 = vunpack.c.h.bf16 %v828
        %v1181 = vunpack.c.l.bf16 %v837
        %v1182 = vunpack.c.l.bf16 %v846
        %v1183 = vunpack.c.l.bf16 %v855
        %v1184 = vunpack.c.l.bf16 %v864
        %v1185 = vunpack.c.l.bf16 %v873
        %v1186 = vunpack.c.l.bf16 %v882
        %v1187 = vunpack.c.l.bf16 %v891
        %v1188 = vunpack.c.l.bf16 %v900
        %v1189 = vunpack.c.l.bf16 %v909
        %v1190 = vunpack.c.l.bf16 %v918
        %v1191 = vunpack.c.l.bf16 %v927
        %v1192 = vunpack.c.l.bf16 %v936
        %v1193 = vunpack.c.l.bf16 %v945
        %v1194 = vunpack.c.l.bf16 %v954
        %v1195 = vunpack.c.l.bf16 %v963
        %v1196 = vunpack.c.l.bf16 %v972
        %v1197 = vunpack.c.l.bf16 %v981
        %v1198 = vunpack.c.l.bf16 %v990
        %v1199 = vunpack.c.l.bf16 %v999
        %v1200 = vunpack.c.l.bf16 %v1008
        %v1201 = vunpack.c.l.bf16 %v1017
        %v1202 = vunpack.c.l.bf16 %v1026
        %v1203 = vunpack.c.l.bf16 %v1035
        %v1204 = vunpack.c.l.bf16 %v1044
        %v1205 = vunpack.c.l.bf16 %v1053
        %v1206 = vunpack.c.l.bf16 %v1062
        %v1207 = vunpack.c.l.bf16 %v1071
        %v1208 = vunpack.c.l.bf16 %v1080
        %v1209 = vunpack.c.l.bf16 %v1089
        %v1210 = vunpack.c.l.bf16 %v1098
        %v1211 = vunpack.c.l.bf16 %v1107
        %v1212 = vunpack.c.l.bf16 %v1116
        %v1213 = vadd.f32 %v1117, %v1181
        %v1214 = vadd.f32 %v1118, %v1181
        %v1215 = vadd.f32 %v1119, %v1182
        %v1216 = vadd.f32 %v1120, %v1182
        %v1217 = vadd.f32 %v1121, %v1183
        %v1218 = vadd.f32 %v1122, %v1183
        %v1219 = vadd.f32 %v1123, %v1184
        %v1220 = vadd.f32 %v1124, %v1184
        %v1221 = vadd.f32 %v1125, %v1185
        %v1222 = vadd.f32 %v1126, %v1185
        %v1223 = vadd.f32 %v1127, %v1186
        %v1224 = vadd.f32 %v1128, %v1186
        %v1225 = vadd.f32 %v1129, %v1187
        %v1226 = vadd.f32 %v1130, %v1187
        %v1227 = vadd.f32 %v1131, %v1188
        %v1228 = vadd.f32 %v1132, %v1188
        %v1229 = vadd.f32 %v1133, %v1189
        %v1230 = vadd.f32 %v1134, %v1189
        %v1231 = vadd.f32 %v1135, %v1190
        %v1232 = vadd.f32 %v1136, %v1190
        %v1233 = vadd.f32 %v1137, %v1191
        %v1234 = vadd.f32 %v1138, %v1191
        %v1235 = vadd.f32 %v1139, %v1192
        %v1236 = vadd.f32 %v1140, %v1192
        %v1237 = vadd.f32 %v1141, %v1193
        %v1238 = vadd.f32 %v1142, %v1193
        %v1239 = vadd.f32 %v1143, %v1194
        %v1240 = vadd.f32 %v1144, %v1194
        %v1241 = vadd.f32 %v1145, %v1195
        %v1242 = vadd.f32 %v1146, %v1195
        %v1243 = vadd.f32 %v1147, %v1196
        %v1244 = vadd.f32 %v1148, %v1196
        %v1245 = vadd.f32 %v1149, %v1197
        %v1246 = vadd.f32 %v1150, %v1197
        %v1247 = vadd.f32 %v1151, %v1198
        %v1248 = vadd.f32 %v1152, %v1198
        %v1249 = vadd.f32 %v1153, %v1199
        %v1250 = vadd.f32 %v1154, %v1199
        %v1251 = vadd.f32 %v1155, %v1200
        %v1252 = vadd.f32 %v1156, %v1200
        %v1253 = vadd.f32 %v1157, %v1201
        %v1254 = vadd.f32 %v1158, %v1201
        %v1255 = vadd.f32 %v1159, %v1202
        %v1256 = vadd.f32 %v1160, %v1202
        %v1257 = vadd.f32 %v1161, %v1203
        %v1258 = vadd.f32 %v1162, %v1203
        %v1259 = vadd.f32 %v1163, %v1204
        %v1260 = vadd.f32 %v1164, %v1204
        %v1261 = vadd.f32 %v1165, %v1205
        %v1262 = vadd.f32 %v1166, %v1205
        %v1263 = vadd.f32 %v1167, %v1206
        %v1264 = vadd.f32 %v1168, %v1206
        %v1265 = vadd.f32 %v1169, %v1207
        %v1266 = vadd.f32 %v1170, %v1207
        %v1267 = vadd.f32 %v1171, %v1208
        %v1268 = vadd.f32 %v1172, %v1208
        %v1269 = vadd.f32 %v1173, %v1209
        %v1270 = vadd.f32 %v1174, %v1209
        %v1271 = vadd.f32 %v1175, %v1210
        %v1272 = vadd.f32 %v1176, %v1210
        %v1273 = vadd.f32 %v1177, %v1211
        %v1274 = vadd.f32 %v1178, %v1211
        %v1275 = vadd.f32 %v1179, %v1212
        %v1276 = vadd.f32 %v1180, %v1212
        %v1277 = vpack.c.bf16 %v1214, %v1213
        %v1278 = vpack.c.bf16 %v1216, %v1215
        %v1279 = vpack.c.bf16 %v1218, %v1217
        %v1280 = vpack.c.bf16 %v1220, %v1219
        %v1281 = vpack.c.bf16 %v1222, %v1221
        %v1282 = vpack.c.bf16 %v1224, %v1223
        %v1283 = vpack.c.bf16 %v1226, %v1225
        %v1284 = vpack.c.bf16 %v1228, %v1227
        %v1285 = vpack.c.bf16 %v1230, %v1229
        %v1286 = vpack.c.bf16 %v1232, %v1231
        %v1287 = vpack.c.bf16 %v1234, %v1233
        %v1288 = vpack.c.bf16 %v1236, %v1235
        %v1289 = vpack.c.bf16 %v1238, %v1237
        %v1290 = vpack.c.bf16 %v1240, %v1239
        %v1291 = vpack.c.bf16 %v1242, %v1241
        %v1292 = vpack.c.bf16 %v1244, %v1243
        %v1293 = vpack.c.bf16 %v1246, %v1245
        %v1294 = vpack.c.bf16 %v1248, %v1247
        %v1295 = vpack.c.bf16 %v1250, %v1249
        %v1296 = vpack.c.bf16 %v1252, %v1251
        %v1297 = vpack.c.bf16 %v1254, %v1253
        %v1298 = vpack.c.bf16 %v1256, %v1255
        %v1299 = vpack.c.bf16 %v1258, %v1257
        %v1300 = vpack.c.bf16 %v1260, %v1259
        %v1301 = vpack.c.bf16 %v1262, %v1261
        %v1302 = vpack.c.bf16 %v1264, %v1263
        %v1303 = vpack.c.bf16 %v1266, %v1265
        %v1304 = vpack.c.bf16 %v1268, %v1267
        %v1305 = vpack.c.bf16 %v1270, %v1269
        %v1306 = vpack.c.bf16 %v1272, %v1271
        %v1307 = vpack.c.bf16 %v1274, %v1273
        %v1308 = vpack.c.bf16 %v1276, %v1275
        %v1309 = vunpack.c.l.bf16 %v1277
        %v1310 = vunpack.c.h.bf16 %v1277
        %v1311 = vunpack.c.l.bf16 %v1278
        %v1312 = vunpack.c.h.bf16 %v1278
        %v1313 = vunpack.c.l.bf16 %v1279
        %v1314 = vunpack.c.h.bf16 %v1279
        %v1315 = vunpack.c.l.bf16 %v1280
        %v1316 = vunpack.c.h.bf16 %v1280
        %v1317 = vunpack.c.l.bf16 %v1281
        %v1318 = vunpack.c.h.bf16 %v1281
        %v1319 = vunpack.c.l.bf16 %v1282
        %v1320 = vunpack.c.h.bf16 %v1282
        %v1321 = vunpack.c.l.bf16 %v1283
        %v1322 = vunpack.c.h.bf16 %v1283
        %v1323 = vunpack.c.l.bf16 %v1284
        %v1324 = vunpack.c.h.bf16 %v1284
        %v1325 = vunpack.c.l.bf16 %v1285
        %v1326 = vunpack.c.h.bf16 %v1285
        %v1327 = vunpack.c.l.bf16 %v1286
        %v1328 = vunpack.c.h.bf16 %v1286
        %v1329 = vunpack.c.l.bf16 %v1287
        %v1330 = vunpack.c.h.bf16 %v1287
        %v1331 = vunpack.c.l.bf16 %v1288
        %v1332 = vunpack.c.h.bf16 %v1288
        %v1333 = vunpack.c.l.bf16 %v1289
        %v1334 = vunpack.c.h.bf16 %v1289
        %v1335 = vunpack.c.l.bf16 %v1290
        %v1336 = vunpack.c.h.bf16 %v1290
        %v1337 = vunpack.c.l.bf16 %v1291
        %v1338 = vunpack.c.h.bf16 %v1291
        %v1339 = vunpack.c.l.bf16 %v1292
        %v1340 = vunpack.c.h.bf16 %v1292
        %v1341 = vunpack.c.l.bf16 %v1293
        %v1342 = vunpack.c.h.bf16 %v1293
        %v1343 = vunpack.c.l.bf16 %v1294
        %v1344 = vunpack.c.h.bf16 %v1294
        %v1345 = vunpack.c.l.bf16 %v1295
        %v1346 = vunpack.c.h.bf16 %v1295
        %v1347 = vunpack.c.l.bf16 %v1296
        %v1348 = vunpack.c.h.bf16 %v1296
        %v1349 = vunpack.c.l.bf16 %v1297
        %v1350 = vunpack.c.h.bf16 %v1297
        %v1351 = vunpack.c.l.bf16 %v1298
        %v1352 = vunpack.c.h.bf16 %v1298
        %v1353 = vunpack.c.l.bf16 %v1299
        %v1354 = vunpack.c.h.bf16 %v1299
        %v1355 = vunpack.c.l.bf16 %v1300
        %v1356 = vunpack.c.h.bf16 %v1300
        %v1357 = vunpack.c.l.bf16 %v1301
        %v1358 = vunpack.c.h.bf16 %v1301
        %v1359 = vunpack.c.l.bf16 %v1302
        %v1360 = vunpack.c.h.bf16 %v1302
        %v1361 = vunpack.c.l.bf16 %v1303
        %v1362 = vunpack.c.h.bf16 %v1303
        %v1363 = vunpack.c.l.bf16 %v1304
        %v1364 = vunpack.c.h.bf16 %v1304
        %v1365 = vunpack.c.l.bf16 %v1305
        %v1366 = vunpack.c.h.bf16 %v1305
        %v1367 = vunpack.c.l.bf16 %v1306
        %v1368 = vunpack.c.h.bf16 %v1306
        %v1369 = vunpack.c.l.bf16 %v1307
        %v1370 = vunpack.c.h.bf16 %v1307
        %v1371 = vunpack.c.l.bf16 %v1308
        %v1372 = vunpack.c.h.bf16 %v1308
        %v1373 = vmax.f32 %v1309, 0.0
        %v1374 = vmax.f32 %v1310, 0.0
        %v1375 = vmax.f32 %v1311, 0.0
        %v1376 = vmax.f32 %v1312, 0.0
        %v1377 = vmax.f32 %v1313, 0.0
        %v1378 = vmax.f32 %v1314, 0.0
        %v1379 = vmax.f32 %v1315, 0.0
        %v1380 = vmax.f32 %v1316, 0.0
        %v1381 = vmax.f32 %v1317, 0.0
        %v1382 = vmax.f32 %v1318, 0.0
        %v1383 = vmax.f32 %v1319, 0.0
        %v1384 = vmax.f32 %v1320, 0.0
        %v1385 = vmax.f32 %v1321, 0.0
        %v1386 = vmax.f32 %v1322, 0.0
        %v1387 = vmax.f32 %v1323, 0.0
        %v1388 = vmax.f32 %v1324, 0.0
        %v1389 = vmax.f32 %v1325, 0.0
        %v1390 = vmax.f32 %v1326, 0.0
        %v1391 = vmax.f32 %v1327, 0.0
        %v1392 = vmax.f32 %v1328, 0.0
        %v1393 = vmax.f32 %v1329, 0.0
        %v1394 = vmax.f32 %v1330, 0.0
        %v1395 = vmax.f32 %v1331, 0.0
        %v1396 = vmax.f32 %v1332, 0.0
        %v1397 = vmax.f32 %v1333, 0.0
        %v1398 = vmax.f32 %v1334, 0.0
        %v1399 = vmax.f32 %v1335, 0.0
        %v1400 = vmax.f32 %v1336, 0.0
        %v1401 = vmax.f32 %v1337, 0.0
        %v1402 = vmax.f32 %v1338, 0.0
        %v1403 = vmax.f32 %v1339, 0.0
        %v1404 = vmax.f32 %v1340, 0.0
        %v1405 = vmax.f32 %v1341, 0.0
        %v1406 = vmax.f32 %v1342, 0.0
        %v1407 = vmax.f32 %v1343, 0.0
        %v1408 = vmax.f32 %v1344, 0.0
        %v1409 = vmax.f32 %v1345, 0.0
        %v1410 = vmax.f32 %v1346, 0.0
        %v1411 = vmax.f32 %v1347, 0.0
        %v1412 = vmax.f32 %v1348, 0.0
        %v1413 = vmax.f32 %v1349, 0.0
        %v1414 = vmax.f32 %v1350, 0.0
        %v1415 = vmax.f32 %v1351, 0.0
        %v1416 = vmax.f32 %v1352, 0.0
        %v1417 = vmax.f32 %v1353, 0.0
        %v1418 = vmax.f32 %v1354, 0.0
        %v1419 = vmax.f32 %v1355, 0.0
        %v1420 = vmax.f32 %v1356, 0.0
        %v1421 = vmax.f32 %v1357, 0.0
        %v1422 = vmax.f32 %v1358, 0.0
        %v1423 = vmax.f32 %v1359, 0.0
        %v1424 = vmax.f32 %v1360, 0.0
        %v1425 = vmax.f32 %v1361, 0.0
        %v1426 = vmax.f32 %v1362, 0.0
        %v1427 = vmax.f32 %v1363, 0.0
        %v1428 = vmax.f32 %v1364, 0.0
        %v1429 = vmax.f32 %v1365, 0.0
        %v1430 = vmax.f32 %v1366, 0.0
        %v1431 = vmax.f32 %v1367, 0.0
        %v1432 = vmax.f32 %v1368, 0.0
        %v1433 = vmax.f32 %v1369, 0.0
        %v1434 = vmax.f32 %v1370, 0.0
        %v1435 = vmax.f32 %v1371, 0.0
        %v1436 = vmax.f32 %v1372, 0.0
        %v1437 = vpack.c.bf16 %v1375, %v1373
        %v1438 = vpack.c.bf16 %v1376, %v1374
        %v1439 = vpack.c.bf16 %v1379, %v1377
        %v1440 = vpack.c.bf16 %v1380, %v1378
        %v1441 = vpack.c.bf16 %v1383, %v1381
        %v1442 = vpack.c.bf16 %v1384, %v1382
        %v1443 = vpack.c.bf16 %v1387, %v1385
        %v1444 = vpack.c.bf16 %v1388, %v1386
        %v1445 = vpack.c.bf16 %v1391, %v1389
        %v1446 = vpack.c.bf16 %v1392, %v1390
        %v1447 = vpack.c.bf16 %v1395, %v1393
        %v1448 = vpack.c.bf16 %v1396, %v1394
        %v1449 = vpack.c.bf16 %v1399, %v1397
        %v1450 = vpack.c.bf16 %v1400, %v1398
        %v1451 = vpack.c.bf16 %v1403, %v1401
        %v1452 = vpack.c.bf16 %v1404, %v1402
        %v1453 = vpack.c.bf16 %v1407, %v1405
        %v1454 = vpack.c.bf16 %v1408, %v1406
        %v1455 = vpack.c.bf16 %v1411, %v1409
        %v1456 = vpack.c.bf16 %v1412, %v1410
        %v1457 = vpack.c.bf16 %v1415, %v1413
        %v1458 = vpack.c.bf16 %v1416, %v1414
        %v1459 = vpack.c.bf16 %v1419, %v1417
        %v1460 = vpack.c.bf16 %v1420, %v1418
        %v1461 = vpack.c.bf16 %v1423, %v1421
        %v1462 = vpack.c.bf16 %v1424, %v1422
        %v1463 = vpack.c.bf16 %v1427, %v1425
        %v1464 = vpack.c.bf16 %v1428, %v1426
        %v1465 = vpack.c.bf16 %v1431, %v1429
        %v1466 = vpack.c.bf16 %v1432, %v1430
        %v1467 = vpack.c.bf16 %v1435, %v1433
        %v1468 = vpack.c.bf16 %v1436, %v1434
        %v1469 = vld [vmem:[%s3] sm:$0xff]
        %v1470 = vld [vmem:[%s3 + $0x8] sm:$0xff]
        %v1471 = vld [vmem:[%s3 + $0x10] sm:$0xff]
        %v1472 = vld [vmem:[%s3 + $0x18] sm:$0xff]
        %v1473 = vld [vmem:[%s3 + $0x20] sm:$0xff]
        %v1474 = vld [vmem:[%s3 + $0x28] sm:$0xff]
        %v1475 = vld [vmem:[%s3 + $0x30] sm:$0xff]
        %v1476 = vld [vmem:[%s3 + $0x38] sm:$0xff]
        %v1477 = vld [vmem:[%s3 + $0x40] sm:$0xff]
        %v1478 = vld [vmem:[%s3 + $0x48] sm:$0xff]
        %v1479 = vld [vmem:[%s3 + $0x50] sm:$0xff]
        %v1480 = vld [vmem:[%s3 + $0x58] sm:$0xff]
        %v1481 = vld [vmem:[%s3 + $0x60] sm:$0xff]
        %v1482 = vld [vmem:[%s3 + $0x68] sm:$0xff]
        %v1483 = vld [vmem:[%s3 + $0x70] sm:$0xff]
        %v1484 = vld [vmem:[%s3 + $0x78] sm:$0xff]
        %v1485 = vld [vmem:[%s3 + $0x80] sm:$0xff]
        %v1486 = vld [vmem:[%s3 + $0x88] sm:$0xff]
        %v1487 = vld [vmem:[%s3 + $0x90] sm:$0xff]
        %v1488 = vld [vmem:[%s3 + $0x98] sm:$0xff]
        %v1489 = vld [vmem:[%s3 + $0xa0] sm:$0xff]
        %v1490 = vld [vmem:[%s3 + $0xa8] sm:$0xff]
        %v1491 = vld [vmem:[%s3 + $0xb0] sm:$0xff]
        %v1492 = vld [vmem:[%s3 + $0xb8] sm:$0xff]
        %v1493 = vld [vmem:[%s3 + $0xc0] sm:$0xff]
        %v1494 = vld [vmem:[%s3 + $0xc8] sm:$0xff]
        %v1495 = vld [vmem:[%s3 + $0xd0] sm:$0xff]
        %v1496 = vld [vmem:[%s3 + $0xd8] sm:$0xff]
        %v1497 = vld [vmem:[%s3 + $0xe0] sm:$0xff]
        %v1498 = vld [vmem:[%s3 + $0xe8] sm:$0xff]
        %v1499 = vld [vmem:[%s3 + $0xf0] sm:$0xff]
        %v1500 = vld [vmem:[%s3 + $0xf8] sm:$0xff]
        %v1533 = vunpack.c.l.b16 %v1469
        %v1534 = vunpack.c.h.b16 %v1469
        %v1535 = vunpack.c.l.b16 %v1470
        %v1536 = vunpack.c.h.b16 %v1470
        %v1537 = vunpack.c.l.b16 %v1471
        %v1538 = vunpack.c.h.b16 %v1471
        %v1539 = vunpack.c.l.b16 %v1472
        %v1540 = vunpack.c.h.b16 %v1472
        %v1541 = vunpack.c.l.b16 %v1473
        %v1542 = vunpack.c.h.b16 %v1473
        %v1543 = vunpack.c.l.b16 %v1474
        %v1544 = vunpack.c.h.b16 %v1474
        %v1545 = vunpack.c.l.b16 %v1475
        %v1546 = vunpack.c.h.b16 %v1475
        %v1547 = vunpack.c.l.b16 %v1476
        %v1548 = vunpack.c.h.b16 %v1476
        %v1549 = vunpack.c.l.b16 %v1477
        %v1550 = vunpack.c.h.b16 %v1477
        %v1551 = vunpack.c.l.b16 %v1478
        %v1552 = vunpack.c.h.b16 %v1478
        %v1553 = vunpack.c.l.b16 %v1479
        %v1554 = vunpack.c.h.b16 %v1479
        %v1555 = vunpack.c.l.b16 %v1480
        %v1556 = vunpack.c.h.b16 %v1480
        %v1557 = vunpack.c.l.b16 %v1481
        %v1558 = vunpack.c.h.b16 %v1481
        %v1559 = vunpack.c.l.b16 %v1482
        %v1560 = vunpack.c.h.b16 %v1482
        %v1561 = vunpack.c.l.b16 %v1483
        %v1562 = vunpack.c.h.b16 %v1483
        %v1563 = vunpack.c.l.b16 %v1484
        %v1564 = vunpack.c.h.b16 %v1484
        %v1565 = vunpack.c.l.b16 %v1485
        %v1566 = vunpack.c.h.b16 %v1485
        %v1567 = vunpack.c.l.b16 %v1486
        %v1568 = vunpack.c.h.b16 %v1486
        %v1569 = vunpack.c.l.b16 %v1487
        %v1570 = vunpack.c.h.b16 %v1487
        %v1571 = vunpack.c.l.b16 %v1488
        %v1572 = vunpack.c.h.b16 %v1488
        %v1573 = vunpack.c.l.b16 %v1489
        %v1574 = vunpack.c.h.b16 %v1489
        %v1575 = vunpack.c.l.b16 %v1490
        %v1576 = vunpack.c.h.b16 %v1490
        %v1577 = vunpack.c.l.b16 %v1491
        %v1578 = vunpack.c.h.b16 %v1491
        %v1579 = vunpack.c.l.b16 %v1492
        %v1580 = vunpack.c.h.b16 %v1492
        %v1581 = vunpack.c.l.b16 %v1493
        %v1582 = vunpack.c.h.b16 %v1493
        %v1583 = vunpack.c.l.b16 %v1494
        %v1584 = vunpack.c.h.b16 %v1494
        %v1585 = vunpack.c.l.b16 %v1495
        %v1586 = vunpack.c.h.b16 %v1495
        %v1587 = vunpack.c.l.b16 %v1496
        %v1588 = vunpack.c.h.b16 %v1496
        %v1589 = vunpack.c.l.b16 %v1497
        %v1590 = vunpack.c.h.b16 %v1497
        %v1591 = vunpack.c.l.b16 %v1498
        %v1592 = vunpack.c.h.b16 %v1498
        %v1593 = vunpack.c.l.b16 %v1499
        %v1594 = vunpack.c.h.b16 %v1499
        %v1595 = vunpack.c.l.b16 %v1500
        %v1596 = vunpack.c.h.b16 %v1500
        %v1597 = vpack.c.b16 %v1535, %v1533
        %v1598 = vpack.c.b16 %v1536, %v1534
        %v1599 = vpack.c.b16 %v1539, %v1537
        %v1600 = vpack.c.b16 %v1540, %v1538
        %v1601 = vpack.c.b16 %v1543, %v1541
        %v1602 = vpack.c.b16 %v1544, %v1542
        %v1603 = vpack.c.b16 %v1547, %v1545
        %v1604 = vpack.c.b16 %v1548, %v1546
        %v1605 = vpack.c.b16 %v1551, %v1549
        %v1606 = vpack.c.b16 %v1552, %v1550
        %v1607 = vpack.c.b16 %v1555, %v1553
        %v1608 = vpack.c.b16 %v1556, %v1554
        %v1609 = vpack.c.b16 %v1559, %v1557
        %v1610 = vpack.c.b16 %v1560, %v1558
        %v1611 = vpack.c.b16 %v1563, %v1561
        %v1612 = vpack.c.b16 %v1564, %v1562
        %v1613 = vpack.c.b16 %v1567, %v1565
        %v1614 = vpack.c.b16 %v1568, %v1566
        %v1615 = vpack.c.b16 %v1571, %v1569
        %v1616 = vpack.c.b16 %v1572, %v1570
        %v1617 = vpack.c.b16 %v1575, %v1573
        %v1618 = vpack.c.b16 %v1576, %v1574
        %v1619 = vpack.c.b16 %v1579, %v1577
        %v1620 = vpack.c.b16 %v1580, %v1578
        %v1621 = vpack.c.b16 %v1583, %v1581
        %v1622 = vpack.c.b16 %v1584, %v1582
        %v1623 = vpack.c.b16 %v1587, %v1585
        %v1624 = vpack.c.b16 %v1588, %v1586
        %v1625 = vpack.c.b16 %v1591, %v1589
        %v1626 = vpack.c.b16 %v1592, %v1590
        %v1627 = vpack.c.b16 %v1595, %v1593
        %v1628 = vpack.c.b16 %v1596, %v1594
        %1661 = vmatpush.bf16.msra.mxu0 %v1451
        %1662 = vmatpush.bf16.msra.mxu0 %v1449
        %1663 = vmatpush.bf16.msra.mxu0 %v1447
        %1664 = vmatpush.bf16.msra.mxu0 %v1445
        %1665 = vmatpush.bf16.msra.mxu0 %v1443
        %1666 = vmatpush.bf16.msra.mxu0 %v1441
        %1667 = vmatpush.bf16.msra.mxu0 %v1439
        %1668 = vmatpush.bf16.msra.mxu0 %v1437
        %1669 = vmatmul.bf16.gmra.mxu0 %v1597
        %v1670 = vpop.f32.mrf.mxu0
        %v1671 = vadd.f32 0.0, %v1670
        %v1672 = vpop.f32.mrf.mxu0
        %v1673 = vadd.f32 0.0, %v1672
        %1674 = vmatmul.bf16.gmra.mxu0 %v1599
        %v1675 = vpop.f32.mrf.mxu0
        %v1676 = vadd.f32 0.0, %v1675
        %v1677 = vpop.f32.mrf.mxu0
        %v1678 = vadd.f32 0.0, %v1677
        %1679 = vmatmul.bf16.gmra.mxu0 %v1601
        %v1680 = vpop.f32.mrf.mxu0
        %v1681 = vadd.f32 0.0, %v1680
        %v1682 = vpop.f32.mrf.mxu0
        %v1683 = vadd.f32 0.0, %v1682
        %1684 = vmatmul.bf16.gmra.mxu0 %v1603
        %v1685 = vpop.f32.mrf.mxu0
        %v1686 = vadd.f32 0.0, %v1685
        %v1687 = vpop.f32.mrf.mxu0
        %v1688 = vadd.f32 0.0, %v1687
        %1689 = vmatmul.bf16.gmra.mxu0 %v1605
        %v1690 = vpop.f32.mrf.mxu0
        %v1691 = vadd.f32 0.0, %v1690
        %v1692 = vpop.f32.mrf.mxu0
        %v1693 = vadd.f32 0.0, %v1692
        %1694 = vmatmul.bf16.gmra.mxu0 %v1607
        %v1695 = vpop.f32.mrf.mxu0
        %v1696 = vadd.f32 0.0, %v1695
        %v1697 = vpop.f32.mrf.mxu0
        %v1698 = vadd.f32 0.0, %v1697
        %1699 = vmatmul.bf16.gmra.mxu0 %v1609
        %v1700 = vpop.f32.mrf.mxu0
        %v1701 = vadd.f32 0.0, %v1700
        %v1702 = vpop.f32.mrf.mxu0
        %v1703 = vadd.f32 0.0, %v1702
        %1704 = vmatmul.bf16.gmra.mxu0 %v1611
        %v1705 = vpop.f32.mrf.mxu0
        %v1706 = vadd.f32 0.0, %v1705
        %v1707 = vpop.f32.mrf.mxu0
        %v1708 = vadd.f32 0.0, %v1707
        %1709 = vmatmul.bf16.gmra.mxu0 %v1613
        %v1710 = vpop.f32.mrf.mxu0
        %v1711 = vadd.f32 0.0, %v1710
        %v1712 = vpop.f32.mrf.mxu0
        %v1713 = vadd.f32 0.0, %v1712
        %1714 = vmatmul.bf16.gmra.mxu0 %v1615
        %v1715 = vpop.f32.mrf.mxu0
        %v1716 = vadd.f32 0.0, %v1715
        %v1717 = vpop.f32.mrf.mxu0
        %v1718 = vadd.f32 0.0, %v1717
        %1719 = vmatmul.bf16.gmra.mxu0 %v1617
        %v1720 = vpop.f32.mrf.mxu0
        %v1721 = vadd.f32 0.0, %v1720
        %v1722 = vpop.f32.mrf.mxu0
        %v1723 = vadd.f32 0.0, %v1722
        %1724 = vmatmul.bf16.gmra.mxu0 %v1619
        %v1725 = vpop.f32.mrf.mxu0
        %v1726 = vadd.f32 0.0, %v1725
        %v1727 = vpop.f32.mrf.mxu0
        %v1728 = vadd.f32 0.0, %v1727
        %1729 = vmatmul.bf16.gmra.mxu0 %v1621
        %v1730 = vpop.f32.mrf.mxu0
        %v1731 = vadd.f32 0.0, %v1730
        %v1732 = vpop.f32.mrf.mxu0
        %v1733 = vadd.f32 0.0, %v1732
        %1734 = vmatmul.bf16.gmra.mxu0 %v1623
        %v1735 = vpop.f32.mrf.mxu0
        %v1736 = vadd.f32 0.0, %v1735
        %v1737 = vpop.f32.mrf.mxu0
        %v1738 = vadd.f32 0.0, %v1737
        %1739 = vmatmul.bf16.gmra.mxu0 %v1625
        %v1740 = vpop.f32.mrf.mxu0
        %v1741 = vadd.f32 0.0, %v1740
        %v1742 = vpop.f32.mrf.mxu0
        %v1743 = vadd.f32 0.0, %v1742
        %1744 = vmatmul.bf16.gmra.mxu0 %v1627
        %v1745 = vpop.f32.mrf.mxu0
        %v1746 = vadd.f32 0.0, %v1745
        %v1747 = vpop.f32.mrf.mxu0
        %v1748 = vadd.f32 0.0, %v1747
        %1749 = vdwg.mxu0
        %1750 = vmatpush.bf16.msra.mxu0 %v1467
        %1751 = vmatpush.bf16.msra.mxu0 %v1465
        %1752 = vmatpush.bf16.msra.mxu0 %v1463
        %1753 = vmatpush.bf16.msra.mxu0 %v1461
        %1754 = vmatpush.bf16.msra.mxu0 %v1459
        %1755 = vmatpush.bf16.msra.mxu0 %v1457
        %1756 = vmatpush.bf16.msra.mxu0 %v1455
        %1757 = vmatpush.bf16.msra.mxu0 %v1453
        %1758 = vmatmul.bf16.gmra.mxu0 %v1598
        %v1759 = vpop.f32.mrf.mxu0
        %v1760 = vadd.f32 %v1671, %v1759
        %v1761 = vpop.f32.mrf.mxu0
        %v1762 = vadd.f32 %v1673, %v1761
        %1763 = vmatmul.bf16.gmra.mxu0 %v1600
        %v1764 = vpop.f32.mrf.mxu0
        %v1765 = vadd.f32 %v1676, %v1764
        %v1766 = vpop.f32.mrf.mxu0
        %v1767 = vadd.f32 %v1678, %v1766
        %1768 = vmatmul.bf16.gmra.mxu0 %v1602
        %v1769 = vpop.f32.mrf.mxu0
        %v1770 = vadd.f32 %v1681, %v1769
        %v1771 = vpop.f32.mrf.mxu0
        %v1772 = vadd.f32 %v1683, %v1771
        %1773 = vmatmul.bf16.gmra.mxu0 %v1604
        %v1774 = vpop.f32.mrf.mxu0
        %v1775 = vadd.f32 %v1686, %v1774
        %v1776 = vpop.f32.mrf.mxu0
        %v1777 = vadd.f32 %v1688, %v1776
        %1778 = vmatmul.bf16.gmra.mxu0 %v1606
        %v1779 = vpop.f32.mrf.mxu0
        %v1780 = vadd.f32 %v1691, %v1779
        %v1781 = vpop.f32.mrf.mxu0
        %v1782 = vadd.f32 %v1693, %v1781
        %1783 = vmatmul.bf16.gmra.mxu0 %v1608
        %v1784 = vpop.f32.mrf.mxu0
        %v1785 = vadd.f32 %v1696, %v1784
        %v1786 = vpop.f32.mrf.mxu0
        %v1787 = vadd.f32 %v1698, %v1786
        %1788 = vmatmul.bf16.gmra.mxu0 %v1610
        %v1789 = vpop.f32.mrf.mxu0
        %v1790 = vadd.f32 %v1701, %v1789
        %v1791 = vpop.f32.mrf.mxu0
        %v1792 = vadd.f32 %v1703, %v1791
        %1793 = vmatmul.bf16.gmra.mxu0 %v1612
        %v1794 = vpop.f32.mrf.mxu0
        %v1795 = vadd.f32 %v1706, %v1794
        %v1796 = vpop.f32.mrf.mxu0
        %v1797 = vadd.f32 %v1708, %v1796
        %1798 = vmatmul.bf16.gmra.mxu0 %v1614
        %v1799 = vpop.f32.mrf.mxu0
        %v1800 = vadd.f32 %v1711, %v1799
        %v1801 = vpop.f32.mrf.mxu0
        %v1802 = vadd.f32 %v1713, %v1801
        %1803 = vmatmul.bf16.gmra.mxu0 %v1616
        %v1804 = vpop.f32.mrf.mxu0
        %v1805 = vadd.f32 %v1716, %v1804
        %v1806 = vpop.f32.mrf.mxu0
        %v1807 = vadd.f32 %v1718, %v1806
        %1808 = vmatmul.bf16.gmra.mxu0 %v1618
        %v1809 = vpop.f32.mrf.mxu0
        %v1810 = vadd.f32 %v1721, %v1809
        %v1811 = vpop.f32.mrf.mxu0
        %v1812 = vadd.f32 %v1723, %v1811
        %1813 = vmatmul.bf16.gmra.mxu0 %v1620
        %v1814 = vpop.f32.mrf.mxu0
        %v1815 = vadd.f32 %v1726, %v1814
        %v1816 = vpop.f32.mrf.mxu0
        %v1817 = vadd.f32 %v1728, %v1816
        %1818 = vmatmul.bf16.gmra.mxu0 %v1622
        %v1819 = vpop.f32.mrf.mxu0
        %v1820 = vadd.f32 %v1731, %v1819
        %v1821 = vpop.f32.mrf.mxu0
        %v1822 = vadd.f32 %v1733, %v1821
        %1823 = vmatmul.bf16.gmra.mxu0 %v1624
        %v1824 = vpop.f32.mrf.mxu0
        %v1825 = vadd.f32 %v1736, %v1824
        %v1826 = vpop.f32.mrf.mxu0
        %v1827 = vadd.f32 %v1738, %v1826
        %1828 = vmatmul.bf16.gmra.mxu0 %v1626
        %v1829 = vpop.f32.mrf.mxu0
        %v1830 = vadd.f32 %v1741, %v1829
        %v1831 = vpop.f32.mrf.mxu0
        %v1832 = vadd.f32 %v1743, %v1831
        %1833 = vmatmul.bf16.gmra.mxu0 %v1628
        %v1834 = vpop.f32.mrf.mxu0
        %v1835 = vadd.f32 %v1746, %v1834
        %v1836 = vpop.f32.mrf.mxu0
        %v1837 = vadd.f32 %v1748, %v1836
        %1838 = vdwg.mxu0
        %1839 = vmatpush.bf16.msra.mxu0 %v1452
        %1840 = vmatpush.bf16.msra.mxu0 %v1450
        %1841 = vmatpush.bf16.msra.mxu0 %v1448
        %1842 = vmatpush.bf16.msra.mxu0 %v1446
        %1843 = vmatpush.bf16.msra.mxu0 %v1444
        %1844 = vmatpush.bf16.msra.mxu0 %v1442
        %1845 = vmatpush.bf16.msra.mxu0 %v1440
        %1846 = vmatpush.bf16.msra.mxu0 %v1438
        %1847 = vmatmul.bf16.gmra.mxu0 %v1597
        %v1848 = vpop.f32.mrf.mxu0
        %v1849 = vadd.f32 0.0, %v1848
        %v1850 = vpop.f32.mrf.mxu0
        %v1851 = vadd.f32 0.0, %v1850
        %1852 = vmatmul.bf16.gmra.mxu0 %v1599
        %v1853 = vpop.f32.mrf.mxu0
        %v1854 = vadd.f32 0.0, %v1853
        %v1855 = vpop.f32.mrf.mxu0
        %v1856 = vadd.f32 0.0, %v1855
        %1857 = vmatmul.bf16.gmra.mxu0 %v1601
        %v1858 = vpop.f32.mrf.mxu0
        %v1859 = vadd.f32 0.0, %v1858
        %v1860 = vpop.f32.mrf.mxu0
        %v1861 = vadd.f32 0.0, %v1860
        %1862 = vmatmul.bf16.gmra.mxu0 %v1603
        %v1863 = vpop.f32.mrf.mxu0
        %v1864 = vadd.f32 0.0, %v1863
        %v1865 = vpop.f32.mrf.mxu0
        %v1866 = vadd.f32 0.0, %v1865
        %1867 = vmatmul.bf16.gmra.mxu0 %v1605
        %v1868 = vpop.f32.mrf.mxu0
        %v1869 = vadd.f32 0.0, %v1868
        %v1870 = vpop.f32.mrf.mxu0
        %v1871 = vadd.f32 0.0, %v1870
        %1872 = vmatmul.bf16.gmra.mxu0 %v1607
        %v1873 = vpop.f32.mrf.mxu0
        %v1874 = vadd.f32 0.0, %v1873
        %v1875 = vpop.f32.mrf.mxu0
        %v1876 = vadd.f32 0.0, %v1875
        %1877 = vmatmul.bf16.gmra.mxu0 %v1609
        %v1878 = vpop.f32.mrf.mxu0
        %v1879 = vadd.f32 0.0, %v1878
        %v1880 = vpop.f32.mrf.mxu0
        %v1881 = vadd.f32 0.0, %v1880
        %1882 = vmatmul.bf16.gmra.mxu0 %v1611
        %v1883 = vpop.f32.mrf.mxu0
        %v1884 = vadd.f32 0.0, %v1883
        %v1885 = vpop.f32.mrf.mxu0
        %v1886 = vadd.f32 0.0, %v1885
        %1887 = vmatmul.bf16.gmra.mxu0 %v1613
        %v1888 = vpop.f32.mrf.mxu0
        %v1889 = vadd.f32 0.0, %v1888
        %v1890 = vpop.f32.mrf.mxu0
        %v1891 = vadd.f32 0.0, %v1890
        %1892 = vmatmul.bf16.gmra.mxu0 %v1615
        %v1893 = vpop.f32.mrf.mxu0
        %v1894 = vadd.f32 0.0, %v1893
        %v1895 = vpop.f32.mrf.mxu0
        %v1896 = vadd.f32 0.0, %v1895
        %1897 = vmatmul.bf16.gmra.mxu0 %v1617
        %v1898 = vpop.f32.mrf.mxu0
        %v1899 = vadd.f32 0.0, %v1898
        %v1900 = vpop.f32.mrf.mxu0
        %v1901 = vadd.f32 0.0, %v1900
        %1902 = vmatmul.bf16.gmra.mxu0 %v1619
        %v1903 = vpop.f32.mrf.mxu0
        %v1904 = vadd.f32 0.0, %v1903
        %v1905 = vpop.f32.mrf.mxu0
        %v1906 = vadd.f32 0.0, %v1905
        %1907 = vmatmul.bf16.gmra.mxu0 %v1621
        %v1908 = vpop.f32.mrf.mxu0
        %v1909 = vadd.f32 0.0, %v1908
        %v1910 = vpop.f32.mrf.mxu0
        %v1911 = vadd.f32 0.0, %v1910
        %1912 = vmatmul.bf16.gmra.mxu0 %v1623
        %v1913 = vpop.f32.mrf.mxu0
        %v1914 = vadd.f32 0.0, %v1913
        %v1915 = vpop.f32.mrf.mxu0
        %v1916 = vadd.f32 0.0, %v1915
        %1917 = vmatmul.bf16.gmra.mxu0 %v1625
        %v1918 = vpop.f32.mrf.mxu0
        %v1919 = vadd.f32 0.0, %v1918
        %v1920 = vpop.f32.mrf.mxu0
        %v1921 = vadd.f32 0.0, %v1920
        %1922 = vmatmul.bf16.gmra.mxu0 %v1627
        %v1923 = vpop.f32.mrf.mxu0
        %v1924 = vadd.f32 0.0, %v1923
        %v1925 = vpop.f32.mrf.mxu0
        %v1926 = vadd.f32 0.0, %v1925
        %1927 = vdwg.mxu0
        %1928 = vmatpush.bf16.msra.mxu0 %v1468
        %1929 = vmatpush.bf16.msra.mxu0 %v1466
        %1930 = vmatpush.bf16.msra.mxu0 %v1464
        %1931 = vmatpush.bf16.msra.mxu0 %v1462
        %1932 = vmatpush.bf16.msra.mxu0 %v1460
        %1933 = vmatpush.bf16.msra.mxu0 %v1458
        %1934 = vmatpush.bf16.msra.mxu0 %v1456
        %1935 = vmatpush.bf16.msra.mxu0 %v1454
        %1936 = vmatmul.bf16.gmra.mxu0 %v1598
        %v1937 = vpop.f32.mrf.mxu0
        %v1938 = vadd.f32 %v1849, %v1937
        %v1939 = vpop.f32.mrf.mxu0
        %v1940 = vadd.f32 %v1851, %v1939
        %1941 = vmatmul.bf16.gmra.mxu0 %v1600
        %v1942 = vpop.f32.mrf.mxu0
        %v1943 = vadd.f32 %v1854, %v1942
        %v1944 = vpop.f32.mrf.mxu0
        %v1945 = vadd.f32 %v1856, %v1944
        %1946 = vmatmul.bf16.gmra.mxu0 %v1602
        %v1947 = vpop.f32.mrf.mxu0
        %v1948 = vadd.f32 %v1859, %v1947
        %v1949 = vpop.f32.mrf.mxu0
        %v1950 = vadd.f32 %v1861, %v1949
        %1951 = vmatmul.bf16.gmra.mxu0 %v1604
        %v1952 = vpop.f32.mrf.mxu0
        %v1953 = vadd.f32 %v1864, %v1952
        %v1954 = vpop.f32.mrf.mxu0
        %v1955 = vadd.f32 %v1866, %v1954
        %1956 = vmatmul.bf16.gmra.mxu0 %v1606
        %v1957 = vpop.f32.mrf.mxu0
        %v1958 = vadd.f32 %v1869, %v1957
        %v1959 = vpop.f32.mrf.mxu0
        %v1960 = vadd.f32 %v1871, %v1959
        %1961 = vmatmul.bf16.gmra.mxu0 %v1608
        %v1962 = vpop.f32.mrf.mxu0
        %v1963 = vadd.f32 %v1874, %v1962
        %v1964 = vpop.f32.mrf.mxu0
        %v1965 = vadd.f32 %v1876, %v1964
        %1966 = vmatmul.bf16.gmra.mxu0 %v1610
        %v1967 = vpop.f32.mrf.mxu0
        %v1968 = vadd.f32 %v1879, %v1967
        %v1969 = vpop.f32.mrf.mxu0
        %v1970 = vadd.f32 %v1881, %v1969
        %1971 = vmatmul.bf16.gmra.mxu0 %v1612
        %v1972 = vpop.f32.mrf.mxu0
        %v1973 = vadd.f32 %v1884, %v1972
        %v1974 = vpop.f32.mrf.mxu0
        %v1975 = vadd.f32 %v1886, %v1974
        %1976 = vmatmul.bf16.gmra.mxu0 %v1614
        %v1977 = vpop.f32.mrf.mxu0
        %v1978 = vadd.f32 %v1889, %v1977
        %v1979 = vpop.f32.mrf.mxu0
        %v1980 = vadd.f32 %v1891, %v1979
        %1981 = vmatmul.bf16.gmra.mxu0 %v1616
        %v1982 = vpop.f32.mrf.mxu0
        %v1983 = vadd.f32 %v1894, %v1982
        %v1984 = vpop.f32.mrf.mxu0
        %v1985 = vadd.f32 %v1896, %v1984
        %1986 = vmatmul.bf16.gmra.mxu0 %v1618
        %v1987 = vpop.f32.mrf.mxu0
        %v1988 = vadd.f32 %v1899, %v1987
        %v1989 = vpop.f32.mrf.mxu0
        %v1990 = vadd.f32 %v1901, %v1989
        %1991 = vmatmul.bf16.gmra.mxu0 %v1620
        %v1992 = vpop.f32.mrf.mxu0
        %v1993 = vadd.f32 %v1904, %v1992
        %v1994 = vpop.f32.mrf.mxu0
        %v1995 = vadd.f32 %v1906, %v1994
        %1996 = vmatmul.bf16.gmra.mxu0 %v1622
        %v1997 = vpop.f32.mrf.mxu0
        %v1998 = vadd.f32 %v1909, %v1997
        %v1999 = vpop.f32.mrf.mxu0
        %v2000 = vadd.f32 %v1911, %v1999
        %2001 = vmatmul.bf16.gmra.mxu0 %v1624
        %v2002 = vpop.f32.mrf.mxu0
        %v2003 = vadd.f32 %v1914, %v2002
        %v2004 = vpop.f32.mrf.mxu0
        %v2005 = vadd.f32 %v1916, %v2004
        %2006 = vmatmul.bf16.gmra.mxu0 %v1626
        %v2007 = vpop.f32.mrf.mxu0
        %v2008 = vadd.f32 %v1919, %v2007
        %v2009 = vpop.f32.mrf.mxu0
        %v2010 = vadd.f32 %v1921, %v2009
        %2011 = vmatmul.bf16.gmra.mxu0 %v1628
        %v2012 = vpop.f32.mrf.mxu0
        %v2013 = vadd.f32 %v1924, %v2012
        %v2014 = vpop.f32.mrf.mxu0
        %v2015 = vadd.f32 %v1926, %v2014
        %2016 = vdwg.mxu0
        %v2017 = vpack.c.bf16 %v1938, %v1760
        %v2018 = vpack.c.bf16 %v1940, %v1762
        %v2019 = vpack.c.bf16 %v1943, %v1765
        %v2020 = vpack.c.bf16 %v1945, %v1767
        %v2021 = vpack.c.bf16 %v1948, %v1770
        %v2022 = vpack.c.bf16 %v1950, %v1772
        %v2023 = vpack.c.bf16 %v1953, %v1775
        %v2024 = vpack.c.bf16 %v1955, %v1777
        %v2025 = vpack.c.bf16 %v1958, %v1780
        %v2026 = vpack.c.bf16 %v1960, %v1782
        %v2027 = vpack.c.bf16 %v1963, %v1785
        %v2028 = vpack.c.bf16 %v1965, %v1787
        %v2029 = vpack.c.bf16 %v1968, %v1790
        %v2030 = vpack.c.bf16 %v1970, %v1792
        %v2031 = vpack.c.bf16 %v1973, %v1795
        %v2032 = vpack.c.bf16 %v1975, %v1797
        %v2033 = vpack.c.bf16 %v1978, %v1800
        %v2034 = vpack.c.bf16 %v1980, %v1802
        %v2035 = vpack.c.bf16 %v1983, %v1805
        %v2036 = vpack.c.bf16 %v1985, %v1807
        %v2037 = vpack.c.bf16 %v1988, %v1810
        %v2038 = vpack.c.bf16 %v1990, %v1812
        %v2039 = vpack.c.bf16 %v1993, %v1815
        %v2040 = vpack.c.bf16 %v1995, %v1817
        %v2041 = vpack.c.bf16 %v1998, %v1820
        %v2042 = vpack.c.bf16 %v2000, %v1822
        %v2043 = vpack.c.bf16 %v2003, %v1825
        %v2044 = vpack.c.bf16 %v2005, %v1827
        %v2045 = vpack.c.bf16 %v2008, %v1830
        %v2046 = vpack.c.bf16 %v2010, %v1832
        %v2047 = vpack.c.bf16 %v2013, %v1835
        %v2048 = vpack.c.bf16 %v2015, %v1837
        %2050 = vset.pattern.permute.xlu0 0
        %2051 = vperm.xlu0 %2050, %v357
        %v2052 = vpop.permute.xlu0 %2051
        %v2055 = vunpack.c.l.s4 839922192
        %v2056 = vunpack.c.0.s8 %v2055
        %v2057 = vperm.slane %v2052, %v2056
        %2059 = vset.pattern.permute.xlu0 0
        %2060 = vperm.xlu0 %2059, %v358
        %v2061 = vpop.permute.xlu0 %2060
        %v2064 = vunpack.c.l.s4 839922192
        %v2065 = vunpack.c.0.s8 %v2064
        %v2066 = vperm.slane %v2061, %v2065
        %2068 = vset.pattern.permute.xlu0 0
        %2069 = vperm.xlu0 %2068, %v359
        %v2070 = vpop.permute.xlu0 %2069
        %v2073 = vunpack.c.l.s4 839922192
        %v2074 = vunpack.c.0.s8 %v2073
        %v2075 = vperm.slane %v2070, %v2074
        %2077 = vset.pattern.permute.xlu0 0
        %2078 = vperm.xlu0 %2077, %v360
        %v2079 = vpop.permute.xlu0 %2078
        %v2082 = vunpack.c.l.s4 839922192
        %v2083 = vunpack.c.0.s8 %v2082
        %v2084 = vperm.slane %v2079, %v2083
        %2086 = vset.pattern.permute.xlu0 0
        %2087 = vperm.xlu0 %2086, %v361
        %v2088 = vpop.permute.xlu0 %2087
        %v2091 = vunpack.c.l.s4 839922192
        %v2092 = vunpack.c.0.s8 %v2091
        %v2093 = vperm.slane %v2088, %v2092
        %2095 = vset.pattern.permute.xlu0 0
        %2096 = vperm.xlu0 %2095, %v362
        %v2097 = vpop.permute.xlu0 %2096
        %v2100 = vunpack.c.l.s4 839922192
        %v2101 = vunpack.c.0.s8 %v2100
        %v2102 = vperm.slane %v2097, %v2101
        %2104 = vset.pattern.permute.xlu0 0
        %2105 = vperm.xlu0 %2104, %v363
        %v2106 = vpop.permute.xlu0 %2105
        %v2109 = vunpack.c.l.s4 839922192
        %v2110 = vunpack.c.0.s8 %v2109
        %v2111 = vperm.slane %v2106, %v2110
        %2113 = vset.pattern.permute.xlu0 0
        %2114 = vperm.xlu0 %2113, %v364
        %v2115 = vpop.permute.xlu0 %2114
        %v2118 = vunpack.c.l.s4 839922192
        %v2119 = vunpack.c.0.s8 %v2118
        %v2120 = vperm.slane %v2115, %v2119
        %2122 = vset.pattern.permute.xlu0 0
        %2123 = vperm.xlu0 %2122, %v365
        %v2124 = vpop.permute.xlu0 %2123
        %v2127 = vunpack.c.l.s4 839922192
        %v2128 = vunpack.c.0.s8 %v2127
        %v2129 = vperm.slane %v2124, %v2128
        %2131 = vset.pattern.permute.xlu0 0
        %2132 = vperm.xlu0 %2131, %v366
        %v2133 = vpop.permute.xlu0 %2132
        %v2136 = vunpack.c.l.s4 839922192
        %v2137 = vunpack.c.0.s8 %v2136
        %v2138 = vperm.slane %v2133, %v2137
        %2140 = vset.pattern.permute.xlu0 0
        %2141 = vperm.xlu0 %2140, %v367
        %v2142 = vpop.permute.xlu0 %2141
        %v2145 = vunpack.c.l.s4 839922192
        %v2146 = vunpack.c.0.s8 %v2145
        %v2147 = vperm.slane %v2142, %v2146
        %2149 = vset.pattern.permute.xlu0 0
        %2150 = vperm.xlu0 %2149, %v368
        %v2151 = vpop.permute.xlu0 %2150
        %v2154 = vunpack.c.l.s4 839922192
        %v2155 = vunpack.c.0.s8 %v2154
        %v2156 = vperm.slane %v2151, %v2155
        %2158 = vset.pattern.permute.xlu0 0
        %2159 = vperm.xlu0 %2158, %v369
        %v2160 = vpop.permute.xlu0 %2159
        %v2163 = vunpack.c.l.s4 839922192
        %v2164 = vunpack.c.0.s8 %v2163
        %v2165 = vperm.slane %v2160, %v2164
        %2167 = vset.pattern.permute.xlu0 0
        %2168 = vperm.xlu0 %2167, %v370
        %v2169 = vpop.permute.xlu0 %2168
        %v2172 = vunpack.c.l.s4 839922192
        %v2173 = vunpack.c.0.s8 %v2172
        %v2174 = vperm.slane %v2169, %v2173
        %2176 = vset.pattern.permute.xlu0 0
        %2177 = vperm.xlu0 %2176, %v371
        %v2178 = vpop.permute.xlu0 %2177
        %v2181 = vunpack.c.l.s4 839922192
        %v2182 = vunpack.c.0.s8 %v2181
        %v2183 = vperm.slane %v2178, %v2182
        %2185 = vset.pattern.permute.xlu0 0
        %2186 = vperm.xlu0 %2185, %v372
        %v2187 = vpop.permute.xlu0 %2186
        %v2190 = vunpack.c.l.s4 839922192
        %v2191 = vunpack.c.0.s8 %v2190
        %v2192 = vperm.slane %v2187, %v2191
        %2194 = vset.pattern.permute.xlu0 0
        %2195 = vperm.xlu0 %2194, %v373
        %v2196 = vpop.permute.xlu0 %2195
        %v2199 = vunpack.c.l.s4 839922192
        %v2200 = vunpack.c.0.s8 %v2199
        %v2201 = vperm.slane %v2196, %v2200
        %2203 = vset.pattern.permute.xlu0 0
        %2204 = vperm.xlu0 %2203, %v374
        %v2205 = vpop.permute.xlu0 %2204
        %v2208 = vunpack.c.l.s4 839922192
        %v2209 = vunpack.c.0.s8 %v2208
        %v2210 = vperm.slane %v2205, %v2209
        %2212 = vset.pattern.permute.xlu0 0
        %2213 = vperm.xlu0 %2212, %v375
        %v2214 = vpop.permute.xlu0 %2213
        %v2217 = vunpack.c.l.s4 839922192
        %v2218 = vunpack.c.0.s8 %v2217
        %v2219 = vperm.slane %v2214, %v2218
        %2221 = vset.pattern.permute.xlu0 0
        %2222 = vperm.xlu0 %2221, %v376
        %v2223 = vpop.permute.xlu0 %2222
        %v2226 = vunpack.c.l.s4 839922192
        %v2227 = vunpack.c.0.s8 %v2226
        %v2228 = vperm.slane %v2223, %v2227
        %2230 = vset.pattern.permute.xlu0 0
        %2231 = vperm.xlu0 %2230, %v377
        %v2232 = vpop.permute.xlu0 %2231
        %v2235 = vunpack.c.l.s4 839922192
        %v2236 = vunpack.c.0.s8 %v2235
        %v2237 = vperm.slane %v2232, %v2236
        %2239 = vset.pattern.permute.xlu0 0
        %2240 = vperm.xlu0 %2239, %v378
        %v2241 = vpop.permute.xlu0 %2240
        %v2244 = vunpack.c.l.s4 839922192
        %v2245 = vunpack.c.0.s8 %v2244
        %v2246 = vperm.slane %v2241, %v2245
        %2248 = vset.pattern.permute.xlu0 0
        %2249 = vperm.xlu0 %2248, %v379
        %v2250 = vpop.permute.xlu0 %2249
        %v2253 = vunpack.c.l.s4 839922192
        %v2254 = vunpack.c.0.s8 %v2253
        %v2255 = vperm.slane %v2250, %v2254
        %2257 = vset.pattern.permute.xlu0 0
        %2258 = vperm.xlu0 %2257, %v380
        %v2259 = vpop.permute.xlu0 %2258
        %v2262 = vunpack.c.l.s4 839922192
        %v2263 = vunpack.c.0.s8 %v2262
        %v2264 = vperm.slane %v2259, %v2263
        %2266 = vset.pattern.permute.xlu0 0
        %2267 = vperm.xlu0 %2266, %v381
        %v2268 = vpop.permute.xlu0 %2267
        %v2271 = vunpack.c.l.s4 839922192
        %v2272 = vunpack.c.0.s8 %v2271
        %v2273 = vperm.slane %v2268, %v2272
        %2275 = vset.pattern.permute.xlu0 0
        %2276 = vperm.xlu0 %2275, %v382
        %v2277 = vpop.permute.xlu0 %2276
        %v2280 = vunpack.c.l.s4 839922192
        %v2281 = vunpack.c.0.s8 %v2280
        %v2282 = vperm.slane %v2277, %v2281
        %2284 = vset.pattern.permute.xlu0 0
        %2285 = vperm.xlu0 %2284, %v383
        %v2286 = vpop.permute.xlu0 %2285
        %v2289 = vunpack.c.l.s4 839922192
        %v2290 = vunpack.c.0.s8 %v2289
        %v2291 = vperm.slane %v2286, %v2290
        %2293 = vset.pattern.permute.xlu0 0
        %2294 = vperm.xlu0 %2293, %v384
        %v2295 = vpop.permute.xlu0 %2294
        %v2298 = vunpack.c.l.s4 839922192
        %v2299 = vunpack.c.0.s8 %v2298
        %v2300 = vperm.slane %v2295, %v2299
        %2302 = vset.pattern.permute.xlu0 0
        %2303 = vperm.xlu0 %2302, %v385
        %v2304 = vpop.permute.xlu0 %2303
        %v2307 = vunpack.c.l.s4 839922192
        %v2308 = vunpack.c.0.s8 %v2307
        %v2309 = vperm.slane %v2304, %v2308
        %2311 = vset.pattern.permute.xlu0 0
        %2312 = vperm.xlu0 %2311, %v386
        %v2313 = vpop.permute.xlu0 %2312
        %v2316 = vunpack.c.l.s4 839922192
        %v2317 = vunpack.c.0.s8 %v2316
        %v2318 = vperm.slane %v2313, %v2317
        %2320 = vset.pattern.permute.xlu0 0
        %2321 = vperm.xlu0 %2320, %v387
        %v2322 = vpop.permute.xlu0 %2321
        %v2325 = vunpack.c.l.s4 839922192
        %v2326 = vunpack.c.0.s8 %v2325
        %v2327 = vperm.slane %v2322, %v2326
        %2329 = vset.pattern.permute.xlu0 0
        %2330 = vperm.xlu0 %2329, %v388
        %v2331 = vpop.permute.xlu0 %2330
        %v2334 = vunpack.c.l.s4 839922192
        %v2335 = vunpack.c.0.s8 %v2334
        %v2336 = vperm.slane %v2331, %v2335
        %v2337 = vunpack.c.l.bf16 %v2017
        %v2338 = vunpack.c.h.bf16 %v2017
        %v2339 = vunpack.c.l.bf16 %v2018
        %v2340 = vunpack.c.h.bf16 %v2018
        %v2341 = vunpack.c.l.bf16 %v2019
        %v2342 = vunpack.c.h.bf16 %v2019
        %v2343 = vunpack.c.l.bf16 %v2020
        %v2344 = vunpack.c.h.bf16 %v2020
        %v2345 = vunpack.c.l.bf16 %v2021
        %v2346 = vunpack.c.h.bf16 %v2021
        %v2347 = vunpack.c.l.bf16 %v2022
        %v2348 = vunpack.c.h.bf16 %v2022
        %v2349 = vunpack.c.l.bf16 %v2023
        %v2350 = vunpack.c.h.bf16 %v2023
        %v2351 = vunpack.c.l.bf16 %v2024
        %v2352 = vunpack.c.h.bf16 %v2024
        %v2353 = vunpack.c.l.bf16 %v2025
        %v2354 = vunpack.c.h.bf16 %v2025
        %v2355 = vunpack.c.l.bf16 %v2026
        %v2356 = vunpack.c.h.bf16 %v2026
        %v2357 = vunpack.c.l.bf16 %v2027
        %v2358 = vunpack.c.h.bf16 %v2027
        %v2359 = vunpack.c.l.bf16 %v2028
        %v2360 = vunpack.c.h.bf16 %v2028
        %v2361 = vunpack.c.l.bf16 %v2029
        %v2362 = vunpack.c.h.bf16 %v2029
        %v2363 = vunpack.c.l.bf16 %v2030
        %v2364 = vunpack.c.h.bf16 %v2030
        %v2365 = vunpack.c.l.bf16 %v2031
        %v2366 = vunpack.c.h.bf16 %v2031
        %v2367 = vunpack.c.l.bf16 %v2032
        %v2368 = vunpack.c.h.bf16 %v2032
        %v2369 = vunpack.c.l.bf16 %v2033
        %v2370 = vunpack.c.h.bf16 %v2033
        %v2371 = vunpack.c.l.bf16 %v2034
        %v2372 = vunpack.c.h.bf16 %v2034
        %v2373 = vunpack.c.l.bf16 %v2035
        %v2374 = vunpack.c.h.bf16 %v2035
        %v2375 = vunpack.c.l.bf16 %v2036
        %v2376 = vunpack.c.h.bf16 %v2036
        %v2377 = vunpack.c.l.bf16 %v2037
        %v2378 = vunpack.c.h.bf16 %v2037
        %v2379 = vunpack.c.l.bf16 %v2038
        %v2380 = vunpack.c.h.bf16 %v2038
        %v2381 = vunpack.c.l.bf16 %v2039
        %v2382 = vunpack.c.h.bf16 %v2039
        %v2383 = vunpack.c.l.bf16 %v2040
        %v2384 = vunpack.c.h.bf16 %v2040
        %v2385 = vunpack.c.l.bf16 %v2041
        %v2386 = vunpack.c.h.bf16 %v2041
        %v2387 = vunpack.c.l.bf16 %v2042
        %v2388 = vunpack.c.h.bf16 %v2042
        %v2389 = vunpack.c.l.bf16 %v2043
        %v2390 = vunpack.c.h.bf16 %v2043
        %v2391 = vunpack.c.l.bf16 %v2044
        %v2392 = vunpack.c.h.bf16 %v2044
        %v2393 = vunpack.c.l.bf16 %v2045
        %v2394 = vunpack.c.h.bf16 %v2045
        %v2395 = vunpack.c.l.bf16 %v2046
        %v2396 = vunpack.c.h.bf16 %v2046
        %v2397 = vunpack.c.l.bf16 %v2047
        %v2398 = vunpack.c.h.bf16 %v2047
        %v2399 = vunpack.c.l.bf16 %v2048
        %v2400 = vunpack.c.h.bf16 %v2048
        %v2401 = vunpack.c.l.bf16 %v2057
        %v2402 = vunpack.c.l.bf16 %v2066
        %v2403 = vunpack.c.l.bf16 %v2075
        %v2404 = vunpack.c.l.bf16 %v2084
        %v2405 = vunpack.c.l.bf16 %v2093
        %v2406 = vunpack.c.l.bf16 %v2102
        %v2407 = vunpack.c.l.bf16 %v2111
        %v2408 = vunpack.c.l.bf16 %v2120
        %v2409 = vunpack.c.l.bf16 %v2129
        %v2410 = vunpack.c.l.bf16 %v2138
        %v2411 = vunpack.c.l.bf16 %v2147
        %v2412 = vunpack.c.l.bf16 %v2156
        %v2413 = vunpack.c.l.bf16 %v2165
        %v2414 = vunpack.c.l.bf16 %v2174
        %v2415 = vunpack.c.l.bf16 %v2183
        %v2416 = vunpack.c.l.bf16 %v2192
        %v2417 = vunpack.c.l.bf16 %v2201
        %v2418 = vunpack.c.l.bf16 %v2210
        %v2419 = vunpack.c.l.bf16 %v2219
        %v2420 = vunpack.c.l.bf16 %v2228
        %v2421 = vunpack.c.l.bf16 %v2237
        %v2422 = vunpack.c.l.bf16 %v2246
        %v2423 = vunpack.c.l.bf16 %v2255
        %v2424 = vunpack.c.l.bf16 %v2264
        %v2425 = vunpack.c.l.bf16 %v2273
        %v2426 = vunpack.c.l.bf16 %v2282
        %v2427 = vunpack.c.l.bf16 %v2291
        %v2428 = vunpack.c.l.bf16 %v2300
        %v2429 = vunpack.c.l.bf16 %v2309
        %v2430 = vunpack.c.l.bf16 %v2318
        %v2431 = vunpack.c.l.bf16 %v2327
        %v2432 = vunpack.c.l.bf16 %v2336
        %v2433 = vadd.f32 %v2337, %v2401
        %v2434 = vadd.f32 %v2338, %v2401
        %v2435 = vadd.f32 %v2339, %v2402
        %v2436 = vadd.f32 %v2340, %v2402
        %v2437 = vadd.f32 %v2341, %v2403
        %v2438 = vadd.f32 %v2342, %v2403
        %v2439 = vadd.f32 %v2343, %v2404
        %v2440 = vadd.f32 %v2344, %v2404
        %v2441 = vadd.f32 %v2345, %v2405
        %v2442 = vadd.f32 %v2346, %v2405
        %v2443 = vadd.f32 %v2347, %v2406
        %v2444 = vadd.f32 %v2348, %v2406
        %v2445 = vadd.f32 %v2349, %v2407
        %v2446 = vadd.f32 %v2350, %v2407
        %v2447 = vadd.f32 %v2351, %v2408
        %v2448 = vadd.f32 %v2352, %v2408
        %v2449 = vadd.f32 %v2353, %v2409
        %v2450 = vadd.f32 %v2354, %v2409
        %v2451 = vadd.f32 %v2355, %v2410
        %v2452 = vadd.f32 %v2356, %v2410
        %v2453 = vadd.f32 %v2357, %v2411
        %v2454 = vadd.f32 %v2358, %v2411
        %v2455 = vadd.f32 %v2359, %v2412
        %v2456 = vadd.f32 %v2360, %v2412
        %v2457 = vadd.f32 %v2361, %v2413
        %v2458 = vadd.f32 %v2362, %v2413
        %v2459 = vadd.f32 %v2363, %v2414
        %v2460 = vadd.f32 %v2364, %v2414
        %v2461 = vadd.f32 %v2365, %v2415
        %v2462 = vadd.f32 %v2366, %v2415
        %v2463 = vadd.f32 %v2367, %v2416
        %v2464 = vadd.f32 %v2368, %v2416
        %v2465 = vadd.f32 %v2369, %v2417
        %v2466 = vadd.f32 %v2370, %v2417
        %v2467 = vadd.f32 %v2371, %v2418
        %v2468 = vadd.f32 %v2372, %v2418
        %v2469 = vadd.f32 %v2373, %v2419
        %v2470 = vadd.f32 %v2374, %v2419
        %v2471 = vadd.f32 %v2375, %v2420
        %v2472 = vadd.f32 %v2376, %v2420
        %v2473 = vadd.f32 %v2377, %v2421
        %v2474 = vadd.f32 %v2378, %v2421
        %v2475 = vadd.f32 %v2379, %v2422
        %v2476 = vadd.f32 %v2380, %v2422
        %v2477 = vadd.f32 %v2381, %v2423
        %v2478 = vadd.f32 %v2382, %v2423
        %v2479 = vadd.f32 %v2383, %v2424
        %v2480 = vadd.f32 %v2384, %v2424
        %v2481 = vadd.f32 %v2385, %v2425
        %v2482 = vadd.f32 %v2386, %v2425
        %v2483 = vadd.f32 %v2387, %v2426
        %v2484 = vadd.f32 %v2388, %v2426
        %v2485 = vadd.f32 %v2389, %v2427
        %v2486 = vadd.f32 %v2390, %v2427
        %v2487 = vadd.f32 %v2391, %v2428
        %v2488 = vadd.f32 %v2392, %v2428
        %v2489 = vadd.f32 %v2393, %v2429
        %v2490 = vadd.f32 %v2394, %v2429
        %v2491 = vadd.f32 %v2395, %v2430
        %v2492 = vadd.f32 %v2396, %v2430
        %v2493 = vadd.f32 %v2397, %v2431
        %v2494 = vadd.f32 %v2398, %v2431
        %v2495 = vadd.f32 %v2399, %v2432
        %v2496 = vadd.f32 %v2400, %v2432
        %v2497 = vpack.c.bf16 %v2434, %v2433
        %v2498 = vpack.c.bf16 %v2436, %v2435
        %v2499 = vpack.c.bf16 %v2438, %v2437
        %v2500 = vpack.c.bf16 %v2440, %v2439
        %v2501 = vpack.c.bf16 %v2442, %v2441
        %v2502 = vpack.c.bf16 %v2444, %v2443
        %v2503 = vpack.c.bf16 %v2446, %v2445
        %v2504 = vpack.c.bf16 %v2448, %v2447
        %v2505 = vpack.c.bf16 %v2450, %v2449
        %v2506 = vpack.c.bf16 %v2452, %v2451
        %v2507 = vpack.c.bf16 %v2454, %v2453
        %v2508 = vpack.c.bf16 %v2456, %v2455
        %v2509 = vpack.c.bf16 %v2458, %v2457
        %v2510 = vpack.c.bf16 %v2460, %v2459
        %v2511 = vpack.c.bf16 %v2462, %v2461
        %v2512 = vpack.c.bf16 %v2464, %v2463
        %v2513 = vpack.c.bf16 %v2466, %v2465
        %v2514 = vpack.c.bf16 %v2468, %v2467
        %v2515 = vpack.c.bf16 %v2470, %v2469
        %v2516 = vpack.c.bf16 %v2472, %v2471
        %v2517 = vpack.c.bf16 %v2474, %v2473
        %v2518 = vpack.c.bf16 %v2476, %v2475
        %v2519 = vpack.c.bf16 %v2478, %v2477
        %v2520 = vpack.c.bf16 %v2480, %v2479
        %v2521 = vpack.c.bf16 %v2482, %v2481
        %v2522 = vpack.c.bf16 %v2484, %v2483
        %v2523 = vpack.c.bf16 %v2486, %v2485
        %v2524 = vpack.c.bf16 %v2488, %v2487
        %v2525 = vpack.c.bf16 %v2490, %v2489
        %v2526 = vpack.c.bf16 %v2492, %v2491
        %v2527 = vpack.c.bf16 %v2494, %v2493
        %v2528 = vpack.c.bf16 %v2496, %v2495
        %v2529 = vunpack.c.l.bf16 %v2497
        %v2530 = vunpack.c.h.bf16 %v2497
        %v2531 = vunpack.c.l.bf16 %v2498
        %v2532 = vunpack.c.h.bf16 %v2498
        %v2533 = vunpack.c.l.bf16 %v2499
        %v2534 = vunpack.c.h.bf16 %v2499
        %v2535 = vunpack.c.l.bf16 %v2500
        %v2536 = vunpack.c.h.bf16 %v2500
        %v2537 = vunpack.c.l.bf16 %v2501
        %v2538 = vunpack.c.h.bf16 %v2501
        %v2539 = vunpack.c.l.bf16 %v2502
        %v2540 = vunpack.c.h.bf16 %v2502
        %v2541 = vunpack.c.l.bf16 %v2503
        %v2542 = vunpack.c.h.bf16 %v2503
        %v2543 = vunpack.c.l.bf16 %v2504
        %v2544 = vunpack.c.h.bf16 %v2504
        %v2545 = vunpack.c.l.bf16 %v2505
        %v2546 = vunpack.c.h.bf16 %v2505
        %v2547 = vunpack.c.l.bf16 %v2506
        %v2548 = vunpack.c.h.bf16 %v2506
        %v2549 = vunpack.c.l.bf16 %v2507
        %v2550 = vunpack.c.h.bf16 %v2507
        %v2551 = vunpack.c.l.bf16 %v2508
        %v2552 = vunpack.c.h.bf16 %v2508
        %v2553 = vunpack.c.l.bf16 %v2509
        %v2554 = vunpack.c.h.bf16 %v2509
        %v2555 = vunpack.c.l.bf16 %v2510
        %v2556 = vunpack.c.h.bf16 %v2510
        %v2557 = vunpack.c.l.bf16 %v2511
        %v2558 = vunpack.c.h.bf16 %v2511
        %v2559 = vunpack.c.l.bf16 %v2512
        %v2560 = vunpack.c.h.bf16 %v2512
        %v2561 = vunpack.c.l.bf16 %v2513
        %v2562 = vunpack.c.h.bf16 %v2513
        %v2563 = vunpack.c.l.bf16 %v2514
        %v2564 = vunpack.c.h.bf16 %v2514
        %v2565 = vunpack.c.l.bf16 %v2515
        %v2566 = vunpack.c.h.bf16 %v2515
        %v2567 = vunpack.c.l.bf16 %v2516
        %v2568 = vunpack.c.h.bf16 %v2516
        %v2569 = vunpack.c.l.bf16 %v2517
        %v2570 = vunpack.c.h.bf16 %v2517
        %v2571 = vunpack.c.l.bf16 %v2518
        %v2572 = vunpack.c.h.bf16 %v2518
        %v2573 = vunpack.c.l.bf16 %v2519
        %v2574 = vunpack.c.h.bf16 %v2519
        %v2575 = vunpack.c.l.bf16 %v2520
        %v2576 = vunpack.c.h.bf16 %v2520
        %v2577 = vunpack.c.l.bf16 %v2521
        %v2578 = vunpack.c.h.bf16 %v2521
        %v2579 = vunpack.c.l.bf16 %v2522
        %v2580 = vunpack.c.h.bf16 %v2522
        %v2581 = vunpack.c.l.bf16 %v2523
        %v2582 = vunpack.c.h.bf16 %v2523
        %v2583 = vunpack.c.l.bf16 %v2524
        %v2584 = vunpack.c.h.bf16 %v2524
        %v2585 = vunpack.c.l.bf16 %v2525
        %v2586 = vunpack.c.h.bf16 %v2525
        %v2587 = vunpack.c.l.bf16 %v2526
        %v2588 = vunpack.c.h.bf16 %v2526
        %v2589 = vunpack.c.l.bf16 %v2527
        %v2590 = vunpack.c.h.bf16 %v2527
        %v2591 = vunpack.c.l.bf16 %v2528
        %v2592 = vunpack.c.h.bf16 %v2528
        %v2593 = vmax.f32 %v2529, 0.0
        %v2594 = vmax.f32 %v2530, 0.0
        %v2595 = vmax.f32 %v2531, 0.0
        %v2596 = vmax.f32 %v2532, 0.0
        %v2597 = vmax.f32 %v2533, 0.0
        %v2598 = vmax.f32 %v2534, 0.0
        %v2599 = vmax.f32 %v2535, 0.0
        %v2600 = vmax.f32 %v2536, 0.0
        %v2601 = vmax.f32 %v2537, 0.0
        %v2602 = vmax.f32 %v2538, 0.0
        %v2603 = vmax.f32 %v2539, 0.0
        %v2604 = vmax.f32 %v2540, 0.0
        %v2605 = vmax.f32 %v2541, 0.0
        %v2606 = vmax.f32 %v2542, 0.0
        %v2607 = vmax.f32 %v2543, 0.0
        %v2608 = vmax.f32 %v2544, 0.0
        %v2609 = vmax.f32 %v2545, 0.0
        %v2610 = vmax.f32 %v2546, 0.0
        %v2611 = vmax.f32 %v2547, 0.0
        %v2612 = vmax.f32 %v2548, 0.0
        %v2613 = vmax.f32 %v2549, 0.0
        %v2614 = vmax.f32 %v2550, 0.0
        %v2615 = vmax.f32 %v2551, 0.0
        %v2616 = vmax.f32 %v2552, 0.0
        %v2617 = vmax.f32 %v2553, 0.0
        %v2618 = vmax.f32 %v2554, 0.0
        %v2619 = vmax.f32 %v2555, 0.0
        %v2620 = vmax.f32 %v2556, 0.0
        %v2621 = vmax.f32 %v2557, 0.0
        %v2622 = vmax.f32 %v2558, 0.0
        %v2623 = vmax.f32 %v2559, 0.0
        %v2624 = vmax.f32 %v2560, 0.0
        %v2625 = vmax.f32 %v2561, 0.0
        %v2626 = vmax.f32 %v2562, 0.0
        %v2627 = vmax.f32 %v2563, 0.0
        %v2628 = vmax.f32 %v2564, 0.0
        %v2629 = vmax.f32 %v2565, 0.0
        %v2630 = vmax.f32 %v2566, 0.0
        %v2631 = vmax.f32 %v2567, 0.0
        %v2632 = vmax.f32 %v2568, 0.0
        %v2633 = vmax.f32 %v2569, 0.0
        %v2634 = vmax.f32 %v2570, 0.0
        %v2635 = vmax.f32 %v2571, 0.0
        %v2636 = vmax.f32 %v2572, 0.0
        %v2637 = vmax.f32 %v2573, 0.0
        %v2638 = vmax.f32 %v2574, 0.0
        %v2639 = vmax.f32 %v2575, 0.0
        %v2640 = vmax.f32 %v2576, 0.0
        %v2641 = vmax.f32 %v2577, 0.0
        %v2642 = vmax.f32 %v2578, 0.0
        %v2643 = vmax.f32 %v2579, 0.0
        %v2644 = vmax.f32 %v2580, 0.0
        %v2645 = vmax.f32 %v2581, 0.0
        %v2646 = vmax.f32 %v2582, 0.0
        %v2647 = vmax.f32 %v2583, 0.0
        %v2648 = vmax.f32 %v2584, 0.0
        %v2649 = vmax.f32 %v2585, 0.0
        %v2650 = vmax.f32 %v2586, 0.0
        %v2651 = vmax.f32 %v2587, 0.0
        %v2652 = vmax.f32 %v2588, 0.0
        %v2653 = vmax.f32 %v2589, 0.0
        %v2654 = vmax.f32 %v2590, 0.0
        %v2655 = vmax.f32 %v2591, 0.0
        %v2656 = vmax.f32 %v2592, 0.0
        %v2657 = vpack.c.bf16 %v2595, %v2593
        %v2658 = vpack.c.bf16 %v2596, %v2594
        %v2659 = vpack.c.bf16 %v2599, %v2597
        %v2660 = vpack.c.bf16 %v2600, %v2598
        %v2661 = vpack.c.bf16 %v2603, %v2601
        %v2662 = vpack.c.bf16 %v2604, %v2602
        %v2663 = vpack.c.bf16 %v2607, %v2605
        %v2664 = vpack.c.bf16 %v2608, %v2606
        %v2665 = vpack.c.bf16 %v2611, %v2609
        %v2666 = vpack.c.bf16 %v2612, %v2610
        %v2667 = vpack.c.bf16 %v2615, %v2613
        %v2668 = vpack.c.bf16 %v2616, %v2614
        %v2669 = vpack.c.bf16 %v2619, %v2617
        %v2670 = vpack.c.bf16 %v2620, %v2618
        %v2671 = vpack.c.bf16 %v2623, %v2621
        %v2672 = vpack.c.bf16 %v2624, %v2622
        %v2673 = vpack.c.bf16 %v2627, %v2625
        %v2674 = vpack.c.bf16 %v2628, %v2626
        %v2675 = vpack.c.bf16 %v2631, %v2629
        %v2676 = vpack.c.bf16 %v2632, %v2630
        %v2677 = vpack.c.bf16 %v2635, %v2633
        %v2678 = vpack.c.bf16 %v2636, %v2634
        %v2679 = vpack.c.bf16 %v2639, %v2637
        %v2680 = vpack.c.bf16 %v2640, %v2638
        %v2681 = vpack.c.bf16 %v2643, %v2641
        %v2682 = vpack.c.bf16 %v2644, %v2642
        %v2683 = vpack.c.bf16 %v2647, %v2645
        %v2684 = vpack.c.bf16 %v2648, %v2646
        %v2685 = vpack.c.bf16 %v2651, %v2649
        %v2686 = vpack.c.bf16 %v2652, %v2650
        %v2687 = vpack.c.bf16 %v2655, %v2653
        %v2688 = vpack.c.bf16 %v2656, %v2654
        %v2689 = vld [vmem:[%s4] sm:$0xff]
        %v2690 = vld [vmem:[%s4 + $0x8] sm:$0xff]
        %v2691 = vld [vmem:[%s4 + $0x10] sm:$0xff]
        %v2692 = vld [vmem:[%s4 + $0x18] sm:$0xff]
        %v2693 = vld [vmem:[%s4 + $0x20] sm:$0xff]
        %v2694 = vld [vmem:[%s4 + $0x28] sm:$0xff]
        %v2695 = vld [vmem:[%s4 + $0x30] sm:$0xff]
        %v2696 = vld [vmem:[%s4 + $0x38] sm:$0xff]
        %v2697 = vld [vmem:[%s4 + $0x40] sm:$0xff]
        %v2698 = vld [vmem:[%s4 + $0x48] sm:$0xff]
        %v2699 = vld [vmem:[%s4 + $0x50] sm:$0xff]
        %v2700 = vld [vmem:[%s4 + $0x58] sm:$0xff]
        %v2701 = vld [vmem:[%s4 + $0x60] sm:$0xff]
        %v2702 = vld [vmem:[%s4 + $0x68] sm:$0xff]
        %v2703 = vld [vmem:[%s4 + $0x70] sm:$0xff]
        %v2704 = vld [vmem:[%s4 + $0x78] sm:$0xff]
        %v2721 = vunpack.c.l.b16 %v2689
        %v2722 = vunpack.c.h.b16 %v2689
        %v2723 = vunpack.c.l.b16 %v2690
        %v2724 = vunpack.c.h.b16 %v2690
        %v2725 = vunpack.c.l.b16 %v2691
        %v2726 = vunpack.c.h.b16 %v2691
        %v2727 = vunpack.c.l.b16 %v2692
        %v2728 = vunpack.c.h.b16 %v2692
        %v2729 = vunpack.c.l.b16 %v2693
        %v2730 = vunpack.c.h.b16 %v2693
        %v2731 = vunpack.c.l.b16 %v2694
        %v2732 = vunpack.c.h.b16 %v2694
        %v2733 = vunpack.c.l.b16 %v2695
        %v2734 = vunpack.c.h.b16 %v2695
        %v2735 = vunpack.c.l.b16 %v2696
        %v2736 = vunpack.c.h.b16 %v2696
        %v2737 = vunpack.c.l.b16 %v2697
        %v2738 = vunpack.c.h.b16 %v2697
        %v2739 = vunpack.c.l.b16 %v2698
        %v2740 = vunpack.c.h.b16 %v2698
        %v2741 = vunpack.c.l.b16 %v2699
        %v2742 = vunpack.c.h.b16 %v2699
        %v2743 = vunpack.c.l.b16 %v2700
        %v2744 = vunpack.c.h.b16 %v2700
        %v2745 = vunpack.c.l.b16 %v2701
        %v2746 = vunpack.c.h.b16 %v2701
        %v2747 = vunpack.c.l.b16 %v2702
        %v2748 = vunpack.c.h.b16 %v2702
        %v2749 = vunpack.c.l.b16 %v2703
        %v2750 = vunpack.c.h.b16 %v2703
        %v2751 = vunpack.c.l.b16 %v2704
        %v2752 = vunpack.c.h.b16 %v2704
        %v2753 = vpack.c.b16 %v2723, %v2721
        %v2754 = vpack.c.b16 %v2724, %v2722
        %v2755 = vpack.c.b16 %v2727, %v2725
        %v2756 = vpack.c.b16 %v2728, %v2726
        %v2757 = vpack.c.b16 %v2731, %v2729
        %v2758 = vpack.c.b16 %v2732, %v2730
        %v2759 = vpack.c.b16 %v2735, %v2733
        %v2760 = vpack.c.b16 %v2736, %v2734
        %v2761 = vpack.c.b16 %v2739, %v2737
        %v2762 = vpack.c.b16 %v2740, %v2738
        %v2763 = vpack.c.b16 %v2743, %v2741
        %v2764 = vpack.c.b16 %v2744, %v2742
        %v2765 = vpack.c.b16 %v2747, %v2745
        %v2766 = vpack.c.b16 %v2748, %v2746
        %v2767 = vpack.c.b16 %v2751, %v2749
        %v2768 = vpack.c.b16 %v2752, %v2750
        %2785 = vmatpush.bf16.msra.mxu0 %v2671
        %2786 = vmatpush.bf16.msra.mxu0 %v2669
        %2787 = vmatpush.bf16.msra.mxu0 %v2667
        %2788 = vmatpush.bf16.msra.mxu0 %v2665
        %2789 = vmatpush.bf16.msra.mxu0 %v2663
        %2790 = vmatpush.bf16.msra.mxu0 %v2661
        %2791 = vmatpush.bf16.msra.mxu0 %v2659
        %2792 = vmatpush.bf16.msra.mxu0 %v2657
        %2793 = vmatmul.bf16.gmra.mxu0 %v2753
        %v2794 = vpop.f32.mrf.mxu0
        %v2795 = vadd.f32 0.0, %v2794
        %v2796 = vpop.f32.mrf.mxu0
        %v2797 = vadd.f32 0.0, %v2796
        %2798 = vmatmul.bf16.gmra.mxu0 %v2755
        %v2799 = vpop.f32.mrf.mxu0
        %v2800 = vadd.f32 0.0, %v2799
        %v2801 = vpop.f32.mrf.mxu0
        %v2802 = vadd.f32 0.0, %v2801
        %2803 = vmatmul.bf16.gmra.mxu0 %v2757
        %v2804 = vpop.f32.mrf.mxu0
        %v2805 = vadd.f32 0.0, %v2804
        %v2806 = vpop.f32.mrf.mxu0
        %v2807 = vadd.f32 0.0, %v2806
        %2808 = vmatmul.bf16.gmra.mxu0 %v2759
        %v2809 = vpop.f32.mrf.mxu0
        %v2810 = vadd.f32 0.0, %v2809
        %v2811 = vpop.f32.mrf.mxu0
        %v2812 = vadd.f32 0.0, %v2811
        %2813 = vmatmul.bf16.gmra.mxu0 %v2761
        %v2814 = vpop.f32.mrf.mxu0
        %v2815 = vadd.f32 0.0, %v2814
        %v2816 = vpop.f32.mrf.mxu0
        %v2817 = vadd.f32 0.0, %v2816
        %2818 = vmatmul.bf16.gmra.mxu0 %v2763
        %v2819 = vpop.f32.mrf.mxu0
        %v2820 = vadd.f32 0.0, %v2819
        %v2821 = vpop.f32.mrf.mxu0
        %v2822 = vadd.f32 0.0, %v2821
        %2823 = vmatmul.bf16.gmra.mxu0 %v2765
        %v2824 = vpop.f32.mrf.mxu0
        %v2825 = vadd.f32 0.0, %v2824
        %v2826 = vpop.f32.mrf.mxu0
        %v2827 = vadd.f32 0.0, %v2826
        %2828 = vmatmul.bf16.gmra.mxu0 %v2767
        %v2829 = vpop.f32.mrf.mxu0
        %v2830 = vadd.f32 0.0, %v2829
        %v2831 = vpop.f32.mrf.mxu0
        %v2832 = vadd.f32 0.0, %v2831
        %2833 = vdwg.mxu0
        %2834 = vmatpush.bf16.msra.mxu0 %v2687
        %2835 = vmatpush.bf16.msra.mxu0 %v2685
        %2836 = vmatpush.bf16.msra.mxu0 %v2683
        %2837 = vmatpush.bf16.msra.mxu0 %v2681
        %2838 = vmatpush.bf16.msra.mxu0 %v2679
        %2839 = vmatpush.bf16.msra.mxu0 %v2677
        %2840 = vmatpush.bf16.msra.mxu0 %v2675
        %2841 = vmatpush.bf16.msra.mxu0 %v2673
        %2842 = vmatmul.bf16.gmra.mxu0 %v2754
        %v2843 = vpop.f32.mrf.mxu0
        %v2844 = vadd.f32 %v2795, %v2843
        %v2845 = vpop.f32.mrf.mxu0
        %v2846 = vadd.f32 %v2797, %v2845
        %2847 = vmatmul.bf16.gmra.mxu0 %v2756
        %v2848 = vpop.f32.mrf.mxu0
        %v2849 = vadd.f32 %v2800, %v2848
        %v2850 = vpop.f32.mrf.mxu0
        %v2851 = vadd.f32 %v2802, %v2850
        %2852 = vmatmul.bf16.gmra.mxu0 %v2758
        %v2853 = vpop.f32.mrf.mxu0
        %v2854 = vadd.f32 %v2805, %v2853
        %v2855 = vpop.f32.mrf.mxu0
        %v2856 = vadd.f32 %v2807, %v2855
        %2857 = vmatmul.bf16.gmra.mxu0 %v2760
        %v2858 = vpop.f32.mrf.mxu0
        %v2859 = vadd.f32 %v2810, %v2858
        %v2860 = vpop.f32.mrf.mxu0
        %v2861 = vadd.f32 %v2812, %v2860
        %2862 = vmatmul.bf16.gmra.mxu0 %v2762
        %v2863 = vpop.f32.mrf.mxu0
        %v2864 = vadd.f32 %v2815, %v2863
        %v2865 = vpop.f32.mrf.mxu0
        %v2866 = vadd.f32 %v2817, %v2865
        %2867 = vmatmul.bf16.gmra.mxu0 %v2764
        %v2868 = vpop.f32.mrf.mxu0
        %v2869 = vadd.f32 %v2820, %v2868
        %v2870 = vpop.f32.mrf.mxu0
        %v2871 = vadd.f32 %v2822, %v2870
        %2872 = vmatmul.bf16.gmra.mxu0 %v2766
        %v2873 = vpop.f32.mrf.mxu0
        %v2874 = vadd.f32 %v2825, %v2873
        %v2875 = vpop.f32.mrf.mxu0
        %v2876 = vadd.f32 %v2827, %v2875
        %2877 = vmatmul.bf16.gmra.mxu0 %v2768
        %v2878 = vpop.f32.mrf.mxu0
        %v2879 = vadd.f32 %v2830, %v2878
        %v2880 = vpop.f32.mrf.mxu0
        %v2881 = vadd.f32 %v2832, %v2880
        %2882 = vdwg.mxu0
        %2883 = vmatpush.bf16.msra.mxu0 %v2672
        %2884 = vmatpush.bf16.msra.mxu0 %v2670
        %2885 = vmatpush.bf16.msra.mxu0 %v2668
        %2886 = vmatpush.bf16.msra.mxu0 %v2666
        %2887 = vmatpush.bf16.msra.mxu0 %v2664
        %2888 = vmatpush.bf16.msra.mxu0 %v2662
        %2889 = vmatpush.bf16.msra.mxu0 %v2660
        %2890 = vmatpush.bf16.msra.mxu0 %v2658
        %2891 = vmatmul.bf16.gmra.mxu0 %v2753
        %v2892 = vpop.f32.mrf.mxu0
        %v2893 = vadd.f32 0.0, %v2892
        %v2894 = vpop.f32.mrf.mxu0
        %v2895 = vadd.f32 0.0, %v2894
        %2896 = vmatmul.bf16.gmra.mxu0 %v2755
        %v2897 = vpop.f32.mrf.mxu0
        %v2898 = vadd.f32 0.0, %v2897
        %v2899 = vpop.f32.mrf.mxu0
        %v2900 = vadd.f32 0.0, %v2899
        %2901 = vmatmul.bf16.gmra.mxu0 %v2757
        %v2902 = vpop.f32.mrf.mxu0
        %v2903 = vadd.f32 0.0, %v2902
        %v2904 = vpop.f32.mrf.mxu0
        %v2905 = vadd.f32 0.0, %v2904
        %2906 = vmatmul.bf16.gmra.mxu0 %v2759
        %v2907 = vpop.f32.mrf.mxu0
        %v2908 = vadd.f32 0.0, %v2907
        %v2909 = vpop.f32.mrf.mxu0
        %v2910 = vadd.f32 0.0, %v2909
        %2911 = vmatmul.bf16.gmra.mxu0 %v2761
        %v2912 = vpop.f32.mrf.mxu0
        %v2913 = vadd.f32 0.0, %v2912
        %v2914 = vpop.f32.mrf.mxu0
        %v2915 = vadd.f32 0.0, %v2914
        %2916 = vmatmul.bf16.gmra.mxu0 %v2763
        %v2917 = vpop.f32.mrf.mxu0
        %v2918 = vadd.f32 0.0, %v2917
        %v2919 = vpop.f32.mrf.mxu0
        %v2920 = vadd.f32 0.0, %v2919
        %2921 = vmatmul.bf16.gmra.mxu0 %v2765
        %v2922 = vpop.f32.mrf.mxu0
        %v2923 = vadd.f32 0.0, %v2922
        %v2924 = vpop.f32.mrf.mxu0
        %v2925 = vadd.f32 0.0, %v2924
        %2926 = vmatmul.bf16.gmra.mxu0 %v2767
        %v2927 = vpop.f32.mrf.mxu0
        %v2928 = vadd.f32 0.0, %v2927
        %v2929 = vpop.f32.mrf.mxu0
        %v2930 = vadd.f32 0.0, %v2929
        %2931 = vdwg.mxu0
        %2932 = vmatpush.bf16.msra.mxu0 %v2688
        %2933 = vmatpush.bf16.msra.mxu0 %v2686
        %2934 = vmatpush.bf16.msra.mxu0 %v2684
        %2935 = vmatpush.bf16.msra.mxu0 %v2682
        %2936 = vmatpush.bf16.msra.mxu0 %v2680
        %2937 = vmatpush.bf16.msra.mxu0 %v2678
        %2938 = vmatpush.bf16.msra.mxu0 %v2676
        %2939 = vmatpush.bf16.msra.mxu0 %v2674
        %2940 = vmatmul.bf16.gmra.mxu0 %v2754
        %v2941 = vpop.f32.mrf.mxu0
        %v2942 = vadd.f32 %v2893, %v2941
        %v2943 = vpop.f32.mrf.mxu0
        %v2944 = vadd.f32 %v2895, %v2943
        %2945 = vmatmul.bf16.gmra.mxu0 %v2756
        %v2946 = vpop.f32.mrf.mxu0
        %v2947 = vadd.f32 %v2898, %v2946
        %v2948 = vpop.f32.mrf.mxu0
        %v2949 = vadd.f32 %v2900, %v2948
        %2950 = vmatmul.bf16.gmra.mxu0 %v2758
        %v2951 = vpop.f32.mrf.mxu0
        %v2952 = vadd.f32 %v2903, %v2951
        %v2953 = vpop.f32.mrf.mxu0
        %v2954 = vadd.f32 %v2905, %v2953
        %2955 = vmatmul.bf16.gmra.mxu0 %v2760
        %v2956 = vpop.f32.mrf.mxu0
        %v2957 = vadd.f32 %v2908, %v2956
        %v2958 = vpop.f32.mrf.mxu0
        %v2959 = vadd.f32 %v2910, %v2958
        %2960 = vmatmul.bf16.gmra.mxu0 %v2762
        %v2961 = vpop.f32.mrf.mxu0
        %v2962 = vadd.f32 %v2913, %v2961
        %v2963 = vpop.f32.mrf.mxu0
        %v2964 = vadd.f32 %v2915, %v2963
        %2965 = vmatmul.bf16.gmra.mxu0 %v2764
        %v2966 = vpop.f32.mrf.mxu0
        %v2967 = vadd.f32 %v2918, %v2966
        %v2968 = vpop.f32.mrf.mxu0
        %v2969 = vadd.f32 %v2920, %v2968
        %2970 = vmatmul.bf16.gmra.mxu0 %v2766
        %v2971 = vpop.f32.mrf.mxu0
        %v2972 = vadd.f32 %v2923, %v2971
        %v2973 = vpop.f32.mrf.mxu0
        %v2974 = vadd.f32 %v2925, %v2973
        %2975 = vmatmul.bf16.gmra.mxu0 %v2768
        %v2976 = vpop.f32.mrf.mxu0
        %v2977 = vadd.f32 %v2928, %v2976
        %v2978 = vpop.f32.mrf.mxu0
        %v2979 = vadd.f32 %v2930, %v2978
        %2980 = vdwg.mxu0
        %v2981 = vpack.c.bf16 %v2942, %v2844
        %v2982 = vpack.c.bf16 %v2944, %v2846
        %v2983 = vpack.c.bf16 %v2947, %v2849
        %v2984 = vpack.c.bf16 %v2949, %v2851
        %v2985 = vpack.c.bf16 %v2952, %v2854
        %v2986 = vpack.c.bf16 %v2954, %v2856
        %v2987 = vpack.c.bf16 %v2957, %v2859
        %v2988 = vpack.c.bf16 %v2959, %v2861
        %v2989 = vpack.c.bf16 %v2962, %v2864
        %v2990 = vpack.c.bf16 %v2964, %v2866
        %v2991 = vpack.c.bf16 %v2967, %v2869
        %v2992 = vpack.c.bf16 %v2969, %v2871
        %v2993 = vpack.c.bf16 %v2972, %v2874
        %v2994 = vpack.c.bf16 %v2974, %v2876
        %v2995 = vpack.c.bf16 %v2977, %v2879
        %v2996 = vpack.c.bf16 %v2979, %v2881
        %2998 = vset.pattern.permute.xlu0 0
        %2999 = vperm.xlu0 %2998, %v421
        %v3000 = vpop.permute.xlu0 %2999
        %v3003 = vunpack.c.l.s4 839922192
        %v3004 = vunpack.c.0.s8 %v3003
        %v3005 = vperm.slane %v3000, %v3004
        %3007 = vset.pattern.permute.xlu0 0
        %3008 = vperm.xlu0 %3007, %v422
        %v3009 = vpop.permute.xlu0 %3008
        %v3012 = vunpack.c.l.s4 839922192
        %v3013 = vunpack.c.0.s8 %v3012
        %v3014 = vperm.slane %v3009, %v3013
        %3016 = vset.pattern.permute.xlu0 0
        %3017 = vperm.xlu0 %3016, %v423
        %v3018 = vpop.permute.xlu0 %3017
        %v3021 = vunpack.c.l.s4 839922192
        %v3022 = vunpack.c.0.s8 %v3021
        %v3023 = vperm.slane %v3018, %v3022
        %3025 = vset.pattern.permute.xlu0 0
        %3026 = vperm.xlu0 %3025, %v424
        %v3027 = vpop.permute.xlu0 %3026
        %v3030 = vunpack.c.l.s4 839922192
        %v3031 = vunpack.c.0.s8 %v3030
        %v3032 = vperm.slane %v3027, %v3031
        %3034 = vset.pattern.permute.xlu0 0
        %3035 = vperm.xlu0 %3034, %v425
        %v3036 = vpop.permute.xlu0 %3035
        %v3039 = vunpack.c.l.s4 839922192
        %v3040 = vunpack.c.0.s8 %v3039
        %v3041 = vperm.slane %v3036, %v3040
        %3043 = vset.pattern.permute.xlu0 0
        %3044 = vperm.xlu0 %3043, %v426
        %v3045 = vpop.permute.xlu0 %3044
        %v3048 = vunpack.c.l.s4 839922192
        %v3049 = vunpack.c.0.s8 %v3048
        %v3050 = vperm.slane %v3045, %v3049
        %3052 = vset.pattern.permute.xlu0 0
        %3053 = vperm.xlu0 %3052, %v427
        %v3054 = vpop.permute.xlu0 %3053
        %v3057 = vunpack.c.l.s4 839922192
        %v3058 = vunpack.c.0.s8 %v3057
        %v3059 = vperm.slane %v3054, %v3058
        %3061 = vset.pattern.permute.xlu0 0
        %3062 = vperm.xlu0 %3061, %v428
        %v3063 = vpop.permute.xlu0 %3062
        %v3066 = vunpack.c.l.s4 839922192
        %v3067 = vunpack.c.0.s8 %v3066
        %v3068 = vperm.slane %v3063, %v3067
        %3070 = vset.pattern.permute.xlu0 0
        %3071 = vperm.xlu0 %3070, %v429
        %v3072 = vpop.permute.xlu0 %3071
        %v3075 = vunpack.c.l.s4 839922192
        %v3076 = vunpack.c.0.s8 %v3075
        %v3077 = vperm.slane %v3072, %v3076
        %3079 = vset.pattern.permute.xlu0 0
        %3080 = vperm.xlu0 %3079, %v430
        %v3081 = vpop.permute.xlu0 %3080
        %v3084 = vunpack.c.l.s4 839922192
        %v3085 = vunpack.c.0.s8 %v3084
        %v3086 = vperm.slane %v3081, %v3085
        %3088 = vset.pattern.permute.xlu0 0
        %3089 = vperm.xlu0 %3088, %v431
        %v3090 = vpop.permute.xlu0 %3089
        %v3093 = vunpack.c.l.s4 839922192
        %v3094 = vunpack.c.0.s8 %v3093
        %v3095 = vperm.slane %v3090, %v3094
        %3097 = vset.pattern.permute.xlu0 0
        %3098 = vperm.xlu0 %3097, %v432
        %v3099 = vpop.permute.xlu0 %3098
        %v3102 = vunpack.c.l.s4 839922192
        %v3103 = vunpack.c.0.s8 %v3102
        %v3104 = vperm.slane %v3099, %v3103
        %3106 = vset.pattern.permute.xlu0 0
        %3107 = vperm.xlu0 %3106, %v433
        %v3108 = vpop.permute.xlu0 %3107
        %v3111 = vunpack.c.l.s4 839922192
        %v3112 = vunpack.c.0.s8 %v3111
        %v3113 = vperm.slane %v3108, %v3112
        %3115 = vset.pattern.permute.xlu0 0
        %3116 = vperm.xlu0 %3115, %v434
        %v3117 = vpop.permute.xlu0 %3116
        %v3120 = vunpack.c.l.s4 839922192
        %v3121 = vunpack.c.0.s8 %v3120
        %v3122 = vperm.slane %v3117, %v3121
        %3124 = vset.pattern.permute.xlu0 0
        %3125 = vperm.xlu0 %3124, %v435
        %v3126 = vpop.permute.xlu0 %3125
        %v3129 = vunpack.c.l.s4 839922192
        %v3130 = vunpack.c.0.s8 %v3129
        %v3131 = vperm.slane %v3126, %v3130
        %3133 = vset.pattern.permute.xlu0 0
        %3134 = vperm.xlu0 %3133, %v436
        %v3135 = vpop.permute.xlu0 %3134
        %v3138 = vunpack.c.l.s4 839922192
        %v3139 = vunpack.c.0.s8 %v3138
        %v3140 = vperm.slane %v3135, %v3139
        %v3141 = vunpack.c.l.bf16 %v2981
        %v3142 = vunpack.c.h.bf16 %v2981
        %v3143 = vunpack.c.l.bf16 %v2982
        %v3144 = vunpack.c.h.bf16 %v2982
        %v3145 = vunpack.c.l.bf16 %v2983
        %v3146 = vunpack.c.h.bf16 %v2983
        %v3147 = vunpack.c.l.bf16 %v2984
        %v3148 = vunpack.c.h.bf16 %v2984
        %v3149 = vunpack.c.l.bf16 %v2985
        %v3150 = vunpack.c.h.bf16 %v2985
        %v3151 = vunpack.c.l.bf16 %v2986
        %v3152 = vunpack.c.h.bf16 %v2986
        %v3153 = vunpack.c.l.bf16 %v2987
        %v3154 = vunpack.c.h.bf16 %v2987
        %v3155 = vunpack.c.l.bf16 %v2988
        %v3156 = vunpack.c.h.bf16 %v2988
        %v3157 = vunpack.c.l.bf16 %v2989
        %v3158 = vunpack.c.h.bf16 %v2989
        %v3159 = vunpack.c.l.bf16 %v2990
        %v3160 = vunpack.c.h.bf16 %v2990
        %v3161 = vunpack.c.l.bf16 %v2991
        %v3162 = vunpack.c.h.bf16 %v2991
        %v3163 = vunpack.c.l.bf16 %v2992
        %v3164 = vunpack.c.h.bf16 %v2992
        %v3165 = vunpack.c.l.bf16 %v2993
        %v3166 = vunpack.c.h.bf16 %v2993
        %v3167 = vunpack.c.l.bf16 %v2994
        %v3168 = vunpack.c.h.bf16 %v2994
        %v3169 = vunpack.c.l.bf16 %v2995
        %v3170 = vunpack.c.h.bf16 %v2995
        %v3171 = vunpack.c.l.bf16 %v2996
        %v3172 = vunpack.c.h.bf16 %v2996
        %v3173 = vunpack.c.l.bf16 %v3005
        %v3174 = vunpack.c.l.bf16 %v3014
        %v3175 = vunpack.c.l.bf16 %v3023
        %v3176 = vunpack.c.l.bf16 %v3032
        %v3177 = vunpack.c.l.bf16 %v3041
        %v3178 = vunpack.c.l.bf16 %v3050
        %v3179 = vunpack.c.l.bf16 %v3059
        %v3180 = vunpack.c.l.bf16 %v3068
        %v3181 = vunpack.c.l.bf16 %v3077
        %v3182 = vunpack.c.l.bf16 %v3086
        %v3183 = vunpack.c.l.bf16 %v3095
        %v3184 = vunpack.c.l.bf16 %v3104
        %v3185 = vunpack.c.l.bf16 %v3113
        %v3186 = vunpack.c.l.bf16 %v3122
        %v3187 = vunpack.c.l.bf16 %v3131
        %v3188 = vunpack.c.l.bf16 %v3140
        %v3189 = vadd.f32 %v3141, %v3173
        %v3190 = vadd.f32 %v3142, %v3173
        %v3191 = vadd.f32 %v3143, %v3174
        %v3192 = vadd.f32 %v3144, %v3174
        %v3193 = vadd.f32 %v3145, %v3175
        %v3194 = vadd.f32 %v3146, %v3175
        %v3195 = vadd.f32 %v3147, %v3176
        %v3196 = vadd.f32 %v3148, %v3176
        %v3197 = vadd.f32 %v3149, %v3177
        %v3198 = vadd.f32 %v3150, %v3177
        %v3199 = vadd.f32 %v3151, %v3178
        %v3200 = vadd.f32 %v3152, %v3178
        %v3201 = vadd.f32 %v3153, %v3179
        %v3202 = vadd.f32 %v3154, %v3179
        %v3203 = vadd.f32 %v3155, %v3180
        %v3204 = vadd.f32 %v3156, %v3180
        %v3205 = vadd.f32 %v3157, %v3181
        %v3206 = vadd.f32 %v3158, %v3181
        %v3207 = vadd.f32 %v3159, %v3182
        %v3208 = vadd.f32 %v3160, %v3182
        %v3209 = vadd.f32 %v3161, %v3183
        %v3210 = vadd.f32 %v3162, %v3183
        %v3211 = vadd.f32 %v3163, %v3184
        %v3212 = vadd.f32 %v3164, %v3184
        %v3213 = vadd.f32 %v3165, %v3185
        %v3214 = vadd.f32 %v3166, %v3185
        %v3215 = vadd.f32 %v3167, %v3186
        %v3216 = vadd.f32 %v3168, %v3186
        %v3217 = vadd.f32 %v3169, %v3187
        %v3218 = vadd.f32 %v3170, %v3187
        %v3219 = vadd.f32 %v3171, %v3188
        %v3220 = vadd.f32 %v3172, %v3188
        %v3221 = vpack.c.bf16 %v3190, %v3189
        %v3222 = vpack.c.bf16 %v3192, %v3191
        %v3223 = vpack.c.bf16 %v3194, %v3193
        %v3224 = vpack.c.bf16 %v3196, %v3195
        %v3225 = vpack.c.bf16 %v3198, %v3197
        %v3226 = vpack.c.bf16 %v3200, %v3199
        %v3227 = vpack.c.bf16 %v3202, %v3201
        %v3228 = vpack.c.bf16 %v3204, %v3203
        %v3229 = vpack.c.bf16 %v3206, %v3205
        %v3230 = vpack.c.bf16 %v3208, %v3207
        %v3231 = vpack.c.bf16 %v3210, %v3209
        %v3232 = vpack.c.bf16 %v3212, %v3211
        %v3233 = vpack.c.bf16 %v3214, %v3213
        %v3234 = vpack.c.bf16 %v3216, %v3215
        %v3235 = vpack.c.bf16 %v3218, %v3217
        %v3236 = vpack.c.bf16 %v3220, %v3219
        %v3237 = vunpack.c.l.bf16 %v3221
        %v3238 = vunpack.c.h.bf16 %v3221
        %v3239 = vunpack.c.l.bf16 %v3222
        %v3240 = vunpack.c.h.bf16 %v3222
        %v3241 = vunpack.c.l.bf16 %v3223
        %v3242 = vunpack.c.h.bf16 %v3223
        %v3243 = vunpack.c.l.bf16 %v3224
        %v3244 = vunpack.c.h.bf16 %v3224
        %v3245 = vunpack.c.l.bf16 %v3225
        %v3246 = vunpack.c.h.bf16 %v3225
        %v3247 = vunpack.c.l.bf16 %v3226
        %v3248 = vunpack.c.h.bf16 %v3226
        %v3249 = vunpack.c.l.bf16 %v3227
        %v3250 = vunpack.c.h.bf16 %v3227
        %v3251 = vunpack.c.l.bf16 %v3228
        %v3252 = vunpack.c.h.bf16 %v3228
        %v3253 = vunpack.c.l.bf16 %v3229
        %v3254 = vunpack.c.h.bf16 %v3229
        %v3255 = vunpack.c.l.bf16 %v3230
        %v3256 = vunpack.c.h.bf16 %v3230
        %v3257 = vunpack.c.l.bf16 %v3231
        %v3258 = vunpack.c.h.bf16 %v3231
        %v3259 = vunpack.c.l.bf16 %v3232
        %v3260 = vunpack.c.h.bf16 %v3232
        %v3261 = vunpack.c.l.bf16 %v3233
        %v3262 = vunpack.c.h.bf16 %v3233
        %v3263 = vunpack.c.l.bf16 %v3234
        %v3264 = vunpack.c.h.bf16 %v3234
        %v3265 = vunpack.c.l.bf16 %v3235
        %v3266 = vunpack.c.h.bf16 %v3235
        %v3267 = vunpack.c.l.bf16 %v3236
        %v3268 = vunpack.c.h.bf16 %v3236
        %v3269 = vmax.f32 %v3237, 0.0
        %v3270 = vmax.f32 %v3238, 0.0
        %v3271 = vmax.f32 %v3239, 0.0
        %v3272 = vmax.f32 %v3240, 0.0
        %v3273 = vmax.f32 %v3241, 0.0
        %v3274 = vmax.f32 %v3242, 0.0
        %v3275 = vmax.f32 %v3243, 0.0
        %v3276 = vmax.f32 %v3244, 0.0
        %v3277 = vmax.f32 %v3245, 0.0
        %v3278 = vmax.f32 %v3246, 0.0
        %v3279 = vmax.f32 %v3247, 0.0
        %v3280 = vmax.f32 %v3248, 0.0
        %v3281 = vmax.f32 %v3249, 0.0
        %v3282 = vmax.f32 %v3250, 0.0
        %v3283 = vmax.f32 %v3251, 0.0
        %v3284 = vmax.f32 %v3252, 0.0
        %v3285 = vmax.f32 %v3253, 0.0
        %v3286 = vmax.f32 %v3254, 0.0
        %v3287 = vmax.f32 %v3255, 0.0
        %v3288 = vmax.f32 %v3256, 0.0
        %v3289 = vmax.f32 %v3257, 0.0
        %v3290 = vmax.f32 %v3258, 0.0
        %v3291 = vmax.f32 %v3259, 0.0
        %v3292 = vmax.f32 %v3260, 0.0
        %v3293 = vmax.f32 %v3261, 0.0
        %v3294 = vmax.f32 %v3262, 0.0
        %v3295 = vmax.f32 %v3263, 0.0
        %v3296 = vmax.f32 %v3264, 0.0
        %v3297 = vmax.f32 %v3265, 0.0
        %v3298 = vmax.f32 %v3266, 0.0
        %v3299 = vmax.f32 %v3267, 0.0
        %v3300 = vmax.f32 %v3268, 0.0
        %v3301 = vpack.c.bf16 %v3271, %v3269
        %v3302 = vpack.c.bf16 %v3272, %v3270
        %v3303 = vpack.c.bf16 %v3275, %v3273
        %v3304 = vpack.c.bf16 %v3276, %v3274
        %v3305 = vpack.c.bf16 %v3279, %v3277
        %v3306 = vpack.c.bf16 %v3280, %v3278
        %v3307 = vpack.c.bf16 %v3283, %v3281
        %v3308 = vpack.c.bf16 %v3284, %v3282
        %v3309 = vpack.c.bf16 %v3287, %v3285
        %v3310 = vpack.c.bf16 %v3288, %v3286
        %v3311 = vpack.c.bf16 %v3291, %v3289
        %v3312 = vpack.c.bf16 %v3292, %v3290
        %v3313 = vpack.c.bf16 %v3295, %v3293
        %v3314 = vpack.c.bf16 %v3296, %v3294
        %v3315 = vpack.c.bf16 %v3299, %v3297
        %v3316 = vpack.c.bf16 %v3300, %v3298
        %v3317 = vld [vmem:[%s5] sm:$0xf]
        %v3318 = vld [vmem:[%s5 + $0x4] sm:$0xf]
        %v3319 = vld [vmem:[%s5 + $0x8] sm:$0xf]
        %v3320 = vld [vmem:[%s5 + $0xc] sm:$0xf]
        %v3321 = vld [vmem:[%s5 + $0x10] sm:$0xf]
        %v3322 = vld [vmem:[%s5 + $0x14] sm:$0xf]
        %v3323 = vld [vmem:[%s5 + $0x18] sm:$0xf]
        %v3324 = vld [vmem:[%s5 + $0x1c] sm:$0xf]
        %v3333 = vunpack.c.l.b16 %v3317
        %v3334 = vunpack.c.l.b16 %v3318
        %v3335 = vunpack.c.l.b16 %v3319
        %v3336 = vunpack.c.l.b16 %v3320
        %v3337 = vunpack.c.l.b16 %v3321
        %v3338 = vunpack.c.l.b16 %v3322
        %v3339 = vunpack.c.l.b16 %v3323
        %v3340 = vunpack.c.l.b16 %v3324
        %v3341 = vpack.c.b16 %v3334, %v3333
        %v3342 = vpack.c.b16 %v3336, %v3335
        %v3343 = vpack.c.b16 %v3338, %v3337
        %v3344 = vpack.c.b16 %v3340, %v3339
        %3349 = vmatpush.bf16.msra.mxu0 %v3315
        %3350 = vmatpush.bf16.msra.mxu0 %v3313
        %3351 = vmatpush.bf16.msra.mxu0 %v3311
        %3352 = vmatpush.bf16.msra.mxu0 %v3309
        %3353 = vmatpush.bf16.msra.mxu0 %v3307
        %3354 = vmatpush.bf16.msra.mxu0 %v3305
        %3355 = vmatpush.bf16.msra.mxu0 %v3303
        %3356 = vmatpush.bf16.msra.mxu0 %v3301
        %3357 = vmatmul.bf16.gmra.mxu0 %v3341
        %v3358 = vpop.f32.mrf.mxu0
        %v3359 = vadd.f32 0.0, %v3358
        %v3360 = vpop.f32.mrf.mxu0
        %v3361 = vadd.f32 0.0, %v3360
        %3362 = vmatmul.bf16.gmra.mxu0 %v3342
        %v3363 = vpop.f32.mrf.mxu0
        %v3364 = vadd.f32 0.0, %v3363
        %v3365 = vpop.f32.mrf.mxu0
        %v3366 = vadd.f32 0.0, %v3365
        %3367 = vmatmul.bf16.gmra.mxu0 %v3343
        %v3368 = vpop.f32.mrf.mxu0
        %v3369 = vadd.f32 0.0, %v3368
        %v3370 = vpop.f32.mrf.mxu0
        %v3371 = vadd.f32 0.0, %v3370
        %3372 = vmatmul.bf16.gmra.mxu0 %v3344
        %v3373 = vpop.f32.mrf.mxu0
        %v3374 = vadd.f32 0.0, %v3373
        %v3375 = vpop.f32.mrf.mxu0
        %v3376 = vadd.f32 0.0, %v3375
        %3377 = vdwg.mxu0
        %3378 = vmatpush.bf16.msra.mxu0 %v3316
        %3379 = vmatpush.bf16.msra.mxu0 %v3314
        %3380 = vmatpush.bf16.msra.mxu0 %v3312
        %3381 = vmatpush.bf16.msra.mxu0 %v3310
        %3382 = vmatpush.bf16.msra.mxu0 %v3308
        %3383 = vmatpush.bf16.msra.mxu0 %v3306
        %3384 = vmatpush.bf16.msra.mxu0 %v3304
        %3385 = vmatpush.bf16.msra.mxu0 %v3302
        %3386 = vmatmul.bf16.gmra.mxu0 %v3341
        %v3387 = vpop.f32.mrf.mxu0
        %v3388 = vadd.f32 0.0, %v3387
        %v3389 = vpop.f32.mrf.mxu0
        %v3390 = vadd.f32 0.0, %v3389
        %3391 = vmatmul.bf16.gmra.mxu0 %v3342
        %v3392 = vpop.f32.mrf.mxu0
        %v3393 = vadd.f32 0.0, %v3392
        %v3394 = vpop.f32.mrf.mxu0
        %v3395 = vadd.f32 0.0, %v3394
        %3396 = vmatmul.bf16.gmra.mxu0 %v3343
        %v3397 = vpop.f32.mrf.mxu0
        %v3398 = vadd.f32 0.0, %v3397
        %v3399 = vpop.f32.mrf.mxu0
        %v3400 = vadd.f32 0.0, %v3399
        %3401 = vmatmul.bf16.gmra.mxu0 %v3344
        %v3402 = vpop.f32.mrf.mxu0
        %v3403 = vadd.f32 0.0, %v3402
        %v3404 = vpop.f32.mrf.mxu0
        %v3405 = vadd.f32 0.0, %v3404
        %3406 = vdwg.mxu0
        %v3407 = vpack.c.bf16 %v3388, %v3359
        %v3408 = vpack.c.bf16 %v3390, %v3361
        %v3409 = vpack.c.bf16 %v3393, %v3364
        %v3410 = vpack.c.bf16 %v3395, %v3366
        %v3411 = vpack.c.bf16 %v3398, %v3369
        %v3412 = vpack.c.bf16 %v3400, %v3371
        %v3413 = vpack.c.bf16 %v3403, %v3374
        %v3414 = vpack.c.bf16 %v3405, %v3376
        %3416 = vset.pattern.permute.xlu0 0
        %3417 = vperm.xlu0 %3416, %v437
        %v3418 = vpop.permute.xlu0 %3417
        %v3421 = vunpack.c.l.s4 839922192
        %v3422 = vunpack.c.0.s8 %v3421
        %v3423 = vperm.slane %v3418, %v3422
        %3425 = vset.pattern.permute.xlu0 0
        %3426 = vperm.xlu0 %3425, %v438
        %v3427 = vpop.permute.xlu0 %3426
        %v3430 = vunpack.c.l.s4 839922192
        %v3431 = vunpack.c.0.s8 %v3430
        %v3432 = vperm.slane %v3427, %v3431
        %3434 = vset.pattern.permute.xlu0 0
        %3435 = vperm.xlu0 %3434, %v439
        %v3436 = vpop.permute.xlu0 %3435
        %v3439 = vunpack.c.l.s4 839922192
        %v3440 = vunpack.c.0.s8 %v3439
        %v3441 = vperm.slane %v3436, %v3440
        %3443 = vset.pattern.permute.xlu0 0
        %3444 = vperm.xlu0 %3443, %v440
        %v3445 = vpop.permute.xlu0 %3444
        %v3448 = vunpack.c.l.s4 839922192
        %v3449 = vunpack.c.0.s8 %v3448
        %v3450 = vperm.slane %v3445, %v3449
        %3452 = vset.pattern.permute.xlu0 0
        %3453 = vperm.xlu0 %3452, %v441
        %v3454 = vpop.permute.xlu0 %3453
        %v3457 = vunpack.c.l.s4 839922192
        %v3458 = vunpack.c.0.s8 %v3457
        %v3459 = vperm.slane %v3454, %v3458
        %3461 = vset.pattern.permute.xlu0 0
        %3462 = vperm.xlu0 %3461, %v442
        %v3463 = vpop.permute.xlu0 %3462
        %v3466 = vunpack.c.l.s4 839922192
        %v3467 = vunpack.c.0.s8 %v3466
        %v3468 = vperm.slane %v3463, %v3467
        %3470 = vset.pattern.permute.xlu0 0
        %3471 = vperm.xlu0 %3470, %v443
        %v3472 = vpop.permute.xlu0 %3471
        %v3475 = vunpack.c.l.s4 839922192
        %v3476 = vunpack.c.0.s8 %v3475
        %v3477 = vperm.slane %v3472, %v3476
        %3479 = vset.pattern.permute.xlu0 0
        %3480 = vperm.xlu0 %3479, %v444
        %v3481 = vpop.permute.xlu0 %3480
        %v3484 = vunpack.c.l.s4 839922192
        %v3485 = vunpack.c.0.s8 %v3484
        %v3486 = vperm.slane %v3481, %v3485
        %v3487 = vunpack.c.l.bf16 %v3407
        %v3488 = vunpack.c.h.bf16 %v3407
        %v3489 = vunpack.c.l.bf16 %v3408
        %v3490 = vunpack.c.h.bf16 %v3408
        %v3491 = vunpack.c.l.bf16 %v3409
        %v3492 = vunpack.c.h.bf16 %v3409
        %v3493 = vunpack.c.l.bf16 %v3410
        %v3494 = vunpack.c.h.bf16 %v3410
        %v3495 = vunpack.c.l.bf16 %v3411
        %v3496 = vunpack.c.h.bf16 %v3411
        %v3497 = vunpack.c.l.bf16 %v3412
        %v3498 = vunpack.c.h.bf16 %v3412
        %v3499 = vunpack.c.l.bf16 %v3413
        %v3500 = vunpack.c.h.bf16 %v3413
        %v3501 = vunpack.c.l.bf16 %v3414
        %v3502 = vunpack.c.h.bf16 %v3414
        %v3503 = vunpack.c.l.bf16 %v3423
        %v3504 = vunpack.c.l.bf16 %v3432
        %v3505 = vunpack.c.l.bf16 %v3441
        %v3506 = vunpack.c.l.bf16 %v3450
        %v3507 = vunpack.c.l.bf16 %v3459
        %v3508 = vunpack.c.l.bf16 %v3468
        %v3509 = vunpack.c.l.bf16 %v3477
        %v3510 = vunpack.c.l.bf16 %v3486
        %v3511 = vadd.f32 %v3487, %v3503
        %v3512 = vadd.f32 %v3488, %v3503
        %v3513 = vadd.f32 %v3489, %v3504
        %v3514 = vadd.f32 %v3490, %v3504
        %v3515 = vadd.f32 %v3491, %v3505
        %v3516 = vadd.f32 %v3492, %v3505
        %v3517 = vadd.f32 %v3493, %v3506
        %v3518 = vadd.f32 %v3494, %v3506
        %v3519 = vadd.f32 %v3495, %v3507
        %v3520 = vadd.f32 %v3496, %v3507
        %v3521 = vadd.f32 %v3497, %v3508
        %v3522 = vadd.f32 %v3498, %v3508
        %v3523 = vadd.f32 %v3499, %v3509
        %v3524 = vadd.f32 %v3500, %v3509
        %v3525 = vadd.f32 %v3501, %v3510
        %v3526 = vadd.f32 %v3502, %v3510
        %v3527 = vpack.c.bf16 %v3512, %v3511
        %v3528 = vpack.c.bf16 %v3514, %v3513
        %v3529 = vpack.c.bf16 %v3516, %v3515
        %v3530 = vpack.c.bf16 %v3518, %v3517
        %v3531 = vpack.c.bf16 %v3520, %v3519
        %v3532 = vpack.c.bf16 %v3522, %v3521
        %v3533 = vpack.c.bf16 %v3524, %v3523
        %v3534 = vpack.c.bf16 %v3526, %v3525
        %v3535 = vunpack.c.l.bf16 %v3527
        %v3536 = vunpack.c.h.bf16 %v3527
        %v3537 = vunpack.c.l.bf16 %v3528
        %v3538 = vunpack.c.h.bf16 %v3528
        %v3539 = vunpack.c.l.bf16 %v3529
        %v3540 = vunpack.c.h.bf16 %v3529
        %v3541 = vunpack.c.l.bf16 %v3530
        %v3542 = vunpack.c.h.bf16 %v3530
        %v3543 = vunpack.c.l.bf16 %v3531
        %v3544 = vunpack.c.h.bf16 %v3531
        %v3545 = vunpack.c.l.bf16 %v3532
        %v3546 = vunpack.c.h.bf16 %v3532
        %v3547 = vunpack.c.l.bf16 %v3533
        %v3548 = vunpack.c.h.bf16 %v3533
        %v3549 = vunpack.c.l.bf16 %v3534
        %v3550 = vunpack.c.h.bf16 %v3534
        %v3551 = vmax.f32 %v3535, 0.0
        %v3552 = vmax.f32 %v3536, 0.0
        %v3553 = vmax.f32 %v3537, 0.0
        %v3554 = vmax.f32 %v3538, 0.0
        %v3555 = vmax.f32 %v3539, 0.0
        %v3556 = vmax.f32 %v3540, 0.0
        %v3557 = vmax.f32 %v3541, 0.0
        %v3558 = vmax.f32 %v3542, 0.0
        %v3559 = vmax.f32 %v3543, 0.0
        %v3560 = vmax.f32 %v3544, 0.0
        %v3561 = vmax.f32 %v3545, 0.0
        %v3562 = vmax.f32 %v3546, 0.0
        %v3563 = vmax.f32 %v3547, 0.0
        %v3564 = vmax.f32 %v3548, 0.0
        %v3565 = vmax.f32 %v3549, 0.0
        %v3566 = vmax.f32 %v3550, 0.0
        %v3567 = vpack.c.bf16 %v3553, %v3551
        %v3568 = vpack.c.bf16 %v3554, %v3552
        %v3569 = vpack.c.bf16 %v3557, %v3555
        %v3570 = vpack.c.bf16 %v3558, %v3556
        %v3571 = vpack.c.bf16 %v3561, %v3559
        %v3572 = vpack.c.bf16 %v3562, %v3560
        %v3573 = vpack.c.bf16 %v3565, %v3563
        %v3574 = vpack.c.bf16 %v3566, %v3564
        %v3575 = vld [vmem:[%s6] sm:$0xf]
        %v3576 = vunpack.c.l.bf16 %v445
        %3578 = vset.pattern.permute.xlu0 0
        %3579 = vperm.xlu0 %3578, %v3576
        %v3580 = vpop.permute.xlu0 %3579
        %vm3582 = vcmask 523264
        %v3584 = vsel %vm3582, %v3575, 0
        %3586 = vmatpush.bf16.msra.mxu0 0
        %3587 = vmatpush.bf16.msra.mxu0 0
        %3588 = vmatpush.bf16.msra.mxu0 0
        %3589 = vmatpush.bf16.msra.mxu0 0
        %3590 = vmatpush.bf16.msra.mxu0 %v3573
        %3591 = vmatpush.bf16.msra.mxu0 %v3571
        %3592 = vmatpush.bf16.msra.mxu0 %v3569
        %3593 = vmatpush.bf16.msra.mxu0 %v3567
        %3594 = vmatmul.bf16.gmra.mxu0 %v3584
        %v3595 = vpop.f32.mrf.mxu0
        %v3596 = vadd.f32 %v3580, %v3595
        %v3597 = vpop.f32.mrf.mxu0
        %3598 = vdwg.mxu0
        %3599 = vmatpush.bf16.msra.mxu0 0
        %3600 = vmatpush.bf16.msra.mxu0 0
        %3601 = vmatpush.bf16.msra.mxu0 0
        %3602 = vmatpush.bf16.msra.mxu0 0
        %3603 = vmatpush.bf16.msra.mxu0 %v3574
        %3604 = vmatpush.bf16.msra.mxu0 %v3572
        %3605 = vmatpush.bf16.msra.mxu0 %v3570
        %3606 = vmatpush.bf16.msra.mxu0 %v3568
        %3607 = vmatmul.bf16.gmra.mxu0 %v3584
        %v3608 = vpop.f32.mrf.mxu0
        %v3609 = vadd.f32 %v3580, %v3608
        %v3610 = vpop.f32.mrf.mxu0
        %3611 = vdwg.mxu0
        %3612 = vst [vmem:[%s338] sm:$0xff] %v3596
        %3613 = vst [vmem:[%s338 + $0x8] sm:$0xff] %v3609
        %s3614 = sand.u32 %s224, 1
        %s3615 = scalar_lea.sflag [#allocation3], %s3614
        %s3616 = sand.u32 %s224, 1
        %s3617 = smul.addr %s3616, 16
        %s3618 = scalar_lea.vmem [#allocation2], %s3617
        // Predicated region
        $region53: #{tpu_custom_call.1} parent=51 // pred_check
          %p3619 = pneg %p234
        $region54: #{tpu_custom_call.1} parent=51 // pred_check_branch
          %3621 = sbr.rel (%p3619) target = $region56
        $region55: #{tpu_custom_call.1} parent=51 // pred_region
          %s3622 = smul.u32 2, %s27
          %3624 = vsyncadd %s3615, 0
          %s3625 = smul.addr %s26, 2
          %s3626 = sadd.s32 %s3622, %s3625
          %s3627 = smul.addr %s3626, 8
          %s3628 = scalar_lea.hbm %s8, %s3627
          %s3630 = sshll.u32 %s3618, 4
          %s3631 = int_to_ptr.vmem [resolvable:$true] %s3630
          %s3632 = sshll.u32 %s3628, 4
          %s3633 = int_to_ptr.hbm [resolvable:$true] %s3632
          %3635 = dma.vmem_to_hbm [thread:$0]  %s3631, 256, %s3633, %s3615
        $region56: #{tpu_custom_call.1} parent=51 // pred_fallthru
          _
      $region52: #{tpu_custom_call.1} parent=5 // pred_fallthru
        _
      %p3636 = scmp.le.s32.totalorder 2, %s17
      // Predicated region
      $region57: #{tpu_custom_call.1} parent=5 // pred_check
        %p3637 = pneg %p3636
      $region58: #{tpu_custom_call.1} parent=5 // pred_check_branch
        %3639 = sbr.rel (%p3637) target = $region60
      $region59: #{tpu_custom_call.1} parent=5 // pred_region
        %s3640 = ssub.s32 %s17, 2
        // Predicated region
        $region61: #{tpu_custom_call.1} parent=59 // pred_check
          %p3641 = pneg %p240
        $region62: #{tpu_custom_call.1} parent=59 // pred_check_branch
          %3643 = sbr.rel (%p3641) target = $region64
        $region63: #{tpu_custom_call.1} parent=59 // pred_region
          %s3644 = sand.u32 %s225, 1
          %s3645 = scalar_lea.sflag [#allocation3], %s3644
          %s3646 = sand.u32 %s225, 1
          %s3647 = smul.addr %s3646, 16
          %s3648 = scalar_lea.vmem [#allocation2], %s3647
          %3650 = dma.done %s3645, 256
        $region64: #{tpu_custom_call.1} parent=59 // pred_fallthru
          _
      $region60: #{tpu_custom_call.1} parent=5 // pred_fallthru
        _
    $region6: #{tpu_custom_call.1} parent=1 // loop_footer
      %s21 = sadd.s32 1, %s17
    $region7: #{tpu_custom_call.1} parent=1 // loop_footer_branch
      %16 = sbr.rel target = $region3
    $region8: #{tpu_custom_call.1} parent=1 // loop_exit
      _
    %3651 = vsyncpa [#allocation3], 1
    %s3652 = scalar_lea.sflag [#allocation3], 1
    %3653 = vsyncpa %s3652, 1

</llo_original>
